<compile_context>
chip_gen: v7x
topology: tpu7x:2x2x1
jax: 0.10.0
libtpu: 0.0.40
codegen_flags: <defaults>
</compile_context>

<pallas_src>
import functools

import jax
import jax.numpy as jnp
from jax import lax
from jax.experimental import pallas as pl
from jax.experimental.pallas import tpu as pltpu

EPS = 1e-5  # PyTorch GroupNorm default eps


def _silu(x):
    return x * jax.nn.sigmoid(x)


# ---------------------------------------------------------------------------
# Generation-aware VMEM budget / tile picking
# ---------------------------------------------------------------------------
def _vmem_capacity_bytes():
    """VMEM capacity per TensorCore (v5e/v6e: 128 MiB, v7x: 64 MiB); safe fallback."""
    try:
        cap = int(getattr(pltpu.get_tpu_info(), "vmem_capacity_bytes", 0) or 0)
        if cap > 0:
            return cap
    except Exception:
        pass
    return 64 * 1024 * 1024  # conservative (v7x-sized) fallback


def _pick_row_tile(H, W, cmax, cdt, vmem_cap):
    """Largest divisor TH of H whose per-step live set fits a fraction of VMEM.
    Prefers >= 2 row tiles per image so the input/output pipeline double-buffers."""
    cb = jnp.dtype(cdt).itemsize
    # rough live bytes per tile row: f32 input (x2 buffers) + f32 temporaries (xp, g) +
    # cdt padded tile & slabs + f32 accumulator + cdt output (x2 buffers)
    per_row = W * cmax * (4 * 6 + cb * 3)
    fixed = 4 * 9 * cmax * cmax * cb  # double-buffered conv-weight blocks (both stages)
    budget = max(int(vmem_cap * 0.30) - fixed, 1 << 20)
    divs = [d for d in range(1, H + 1) if H % d == 0]
    fits = [d for d in divs if (d + 2) * per_row <= budget] or [1]
    multi = [d for d in fits if H // d >= 2]
    return max(multi) if multi else max(fits)


# ---------------------------------------------------------------------------
# In-kernel helpers
# ---------------------------------------------------------------------------
def _build_tile(xm_ref, xt_ref, xb_ref, ab_ref, row0, H, cdt):
    """Assemble the haloed tile (TH+2, W, C), apply the folded GN affine + SiLU, zero the
    out-of-image halo rows, zero-pad the W edges (VMEM only), and cast ONCE to cdt."""
    th, wv, c = xm_ref.shape[1], xm_ref.shape[2], xm_ref.shape[3]
    xp = jnp.concatenate([xt_ref[0], xm_ref[0], xb_ref[0]], axis=0).astype(jnp.float32)
    ab = ab_ref[0]                                   # (2, C) folded affine
    a = ab[0:1].reshape(1, 1, c)
    b = ab[1:2].reshape(1, 1, c)
    g = _silu(xp * a + b)
    rows = lax.broadcasted_iota(jnp.int32, (th + 2, 1, 1), 0) + row0
    g = jnp.where((rows >= 0) & (rows < H), g, 0.0)  # conv zero-padding rows (post-SiLU)
    zc = jnp.zeros((th + 2, 1, c), jnp.float32)
    gp = jnp.concatenate([zc, g, zc], axis=1)        # (TH+2, W+2, C) zero-padded columns
    return gp.astype(cdt)                            # single cast; slabs sliced at cdt


def _conv3x3(gp, w_ref, th, wv, cin, cout):
    """3x3 conv via 9 shifted (TH*W, Cin) @ (Cin, Cout) MXU matmuls on the padded tile."""
    acc = jnp.zeros((th * wv, cout), jnp.float32)
    for ky in range(3):
        for kx in range(3):
            slab = gp[ky:ky + th, kx:kx + wv, :].reshape(th * wv, cin)
            acc = acc + jnp.dot(slab, w_ref[ky * 3 + kx],
                                preferred_element_type=jnp.float32)
    return acc


# ---------------------------------------------------------------------------
# Pallas kernels
# ---------------------------------------------------------------------------
def _stage1_kernel(H, cdt, xm_ref, xt_ref, xb_ref, ab_ref, w_ref, bias_ref,
                   h_ref, sums_ref):
    """GN1 (folded affine) + SiLU + Conv3x3(Cin->Cout); emits per-row-tile GN2 partial sums."""
    th, wv, cin = xm_ref.shape[1], xm_ref.shape[2], xm_ref.shape[3]
    cout = h_ref.shape[3]
    row0 = pl.program_id(1) * th - 1
    gp = _build_tile(xm_ref, xt_ref, xb_ref, ab_ref, row0, H, cdt)
    acc = _conv3x3(gp, w_ref, th, wv, cin, cout) + bias_ref[...]
    hq = acc.astype(h_ref.dtype)
    h_ref[0] = hq.reshape(th, wv, cout)
    # GN2 partial sums from the (possibly bf16-rounded) values stage2 will actually read.
    hf = hq.astype(jnp.float32)
    s = jnp.sum(hf, axis=0, keepdims=True)
    s2 = jnp.sum(hf * hf, axis=0, keepdims=True)
    sums_ref[0, 0] = jnp.concatenate([s, s2], axis=0)


def _stage2_kernel(H, cdt, skip_proj, *refs):
    """GN2+FiLM (folded affine) + SiLU + Conv3x3(Cout->Cout) + skip connection."""
    if skip_proj:
        (hm_ref, ht_ref, hb_ref, ab_ref, w_ref, bias_ref,
         x_ref, ws_ref, bs_ref, o_ref) = refs
    else:
        (hm_ref, ht_ref, hb_ref, ab_ref, w_ref, bias_ref, x_ref, o_ref) = refs

    th, wv, cmid = hm_ref.shape[1], hm_ref.shape[2], hm_ref.shape[3]
    cin = x_ref.shape[3]
    cout = o_ref.shape[3]
    row0 = pl.program_id(1) * th - 1
    gp = _build_tile(hm_ref, ht_ref, hb_ref, ab_ref, row0, H, cdt)
    acc = _conv3x3(gp, w_ref, th, wv, cmid, cout) + bias_ref[...]

    x = x_ref[0].astype(jnp.float32).reshape(th * wv, cin)
    if skip_proj:  # 1x1 conv skip
        acc = acc + (jnp.dot(x.astype(cdt), ws_ref[...],
                             preferred_element_type=jnp.float32) + bs_ref[...])
    else:          # identity skip: plain add, no matmul / no extra weight DMA
        acc = acc + x
    o_ref[0] = acc.reshape(th, wv, cout).astype(o_ref.dtype)


# ---------------------------------------------------------------------------
# pallas_call wrappers
# ---------------------------------------------------------------------------
def _run_stage1(x, ab1, w1, bias1, TH, H, cdt, vmem_limit):
    N, _, W, Cin = x.shape
    Cout = w1.shape[-1]
    nH = H // TH
    top_map = lambda n, i: (n, jnp.maximum(i * TH - 1, 0), 0, 0)
    bot_map = lambda n, i: (n, jnp.minimum(i * TH + TH, H - 1), 0, 0)
    return pl.pallas_call(
        functools.partial(_stage1_kernel, H, cdt),
        out_shape=(jax.ShapeDtypeStruct((N, H, W, Cout), cdt),
                   jax.ShapeDtypeStruct((N, nH, 2, Cout), jnp.float32)),
        grid=(N, nH),
        in_specs=[
            pl.BlockSpec((1, TH, W, Cin), lambda n, i: (n, i, 0, 0)),   # main rows
            pl.BlockSpec((1, 1, W, Cin), top_map),                      # top halo row
            pl.BlockSpec((1, 1, W, Cin), bot_map),                      # bottom halo row
            pl.BlockSpec((1, 2, Cin), lambda n, i: (n, 0, 0)),          # folded GN1 affine
            pl.BlockSpec((9, Cin, Cout), lambda n, i: (0, 0, 0)),       # conv1 weights
            pl.BlockSpec((1, Cout), lambda n, i: (0, 0)),               # conv1 bias
        ],
        out_specs=(pl.BlockSpec((1, TH, W, Cout), lambda n, i: (n, i, 0, 0)),
                   pl.BlockSpec((1, 1, 2, Cout), lambda n, i: (n, i, 0, 0))),
        compiler_params=pltpu.CompilerParams(
            dimension_semantics=("parallel", "parallel"),
            vmem_limit_bytes=vmem_limit),
    )(x, x, x, ab1, w1, bias1)


def _run_stage2(h1, ab2, w2, bias2, x, wskip, bskip, TH, H, cdt, vmem_limit):
    N, _, W, Cmid = h1.shape
    Cin = x.shape[-1]
    Cout = w2.shape[-1]
    nH = H // TH
    skip_proj = wskip is not None
    top_map = lambda n, i: (n, jnp.maximum(i * TH - 1, 0), 0, 0)
    bot_map = lambda n, i: (n, jnp.minimum(i * TH + TH, H - 1), 0, 0)

    in_specs = [
        pl.BlockSpec((1, TH, W, Cmid), lambda n, i: (n, i, 0, 0)),
        pl.BlockSpec((1, 1, W, Cmid), top_map),
        pl.BlockSpec((1, 1, W, Cmid), bot_map),
        pl.BlockSpec((1, 2, Cmid), lambda n, i: (n, 0, 0)),             # GN2+FiLM affine
        pl.BlockSpec((9, Cmid, Cout), lambda n, i: (0, 0, 0)),          # conv2 weights
        pl.BlockSpec((1, Cout), lambda n, i: (0, 0)),                   # conv2 bias
        pl.BlockSpec((1, TH, W, Cin), lambda n, i: (n, i, 0, 0)),       # skip input
    ]
    args = [h1, h1, h1, ab2, w2, bias2, x]
    if skip_proj:
        in_specs += [pl.BlockSpec((Cin, Cout), lambda n, i: (0, 0)),
                     pl.BlockSpec((1, Cout), lambda n, i: (0, 0))]
        args += [wskip, bskip]

    return pl.pallas_call(
        functools.partial(_stage2_kernel, H, cdt, skip_proj),
        out_shape=jax.ShapeDtypeStruct((N, H, W, Cout), cdt),
        grid=(N, nH),
        in_specs=in_specs,
        out_specs=pl.BlockSpec((1, TH, W, Cout), lambda n, i: (n, i, 0, 0)),
        compiler_params=pltpu.CompilerParams(
            dimension_semantics=("parallel", "parallel"),
            vmem_limit_bytes=vmem_limit),
    )(*args)


# ---------------------------------------------------------------------------
# Tiny plain-JAX glue (GN stats / affine folding / emb projection)
# ---------------------------------------------------------------------------
def _gn1_affine(x_nchw, gamma, beta, G):
    """GN1 per-channel affine gn(x) = x*a + b, from two-pass stats on the NCHW input."""
    N, C, _, _ = x_nchw.shape
    Cg = C // G
    xg = x_nchw.astype(jnp.float32).reshape(N, G, -1)
    m = jnp.mean(xg, axis=-1)
    v = jnp.var(xg, axis=-1)
    rstd = lax.rsqrt(v + EPS)
    mpc = jnp.repeat(m, Cg, axis=1)
    rpc = jnp.repeat(rstd, Cg, axis=1)
    a = rpc * gamma.reshape(1, C)
    b = beta.reshape(1, C) - mpc * a
    return jnp.stack([a, b], axis=1)                 # (N, 2, C)


def _gn2_affine(part_sums, gamma, beta, G, hw):
    """GN2 per-channel affine from the per-row-tile partial sum / sumsq outputs."""
    s = part_sums.sum(axis=1)                        # (N, 2, C)
    N, _, C = s.shape
    Cg = C // G
    cnt = float(hw * Cg)
    m = s[:, 0].reshape(N, G, Cg).sum(-1) / cnt
    m2 = s[:, 1].reshape(N, G, Cg).sum(-1) / cnt
    # TODO(synk): E[x^2]-m^2 can cancel for |mean| >> std; a shifted/Welford accumulation
    # in stage1 would be more robust on extreme activations.
    var = jnp.maximum(m2 - m * m, 0.0)
    rstd = lax.rsqrt(var + EPS)
    mpc = jnp.repeat(m, Cg, axis=1)
    rpc = jnp.repeat(rstd, Cg, axis=1)
    a = rpc * gamma.reshape(1, C)
    b = beta.reshape(1, C) - mpc * a
    return a, b                                      # (N, C) each


@functools.partial(jax.jit, static_argnames=("num_groups", "compute_dtype"))
def resnet_encoder_block_pallas(x_nchw, emb, params, num_groups,
                                compute_dtype=jnp.bfloat16):
    N, Cin, H, W = x_nchw.shape
    Cout = params["b1"].shape[-1]

    vmem_cap = _vmem_capacity_bytes()
    vmem_limit = min(int(vmem_cap * 0.70), 100 * 1024 * 1024)
    TH = _pick_row_tile(H, W, max(Cin, Cout), compute_dtype, vmem_cap)

    # GN1 stats + folded per-channel affine in plain JAX (no dedicated stats kernel,
    # no HBM padded copies anywhere).
    ab1 = _gn1_affine(x_nchw, params["gn1_gamma"], params["gn1_beta"], num_groups)

    # NCHW -> NHWC once (channels on the lane dim for the MXU)
    x = jnp.transpose(x_nchw, (0, 2, 3, 1)).astype(jnp.float32)

    # conv weights -> (9, Cin, Cout) with tap index ky*3+kx, in the MXU compute dtype
    w1 = jnp.transpose(params["w1"], (2, 3, 1, 0)).reshape(9, Cin, Cout).astype(compute_dtype)
    w2 = jnp.transpose(params["w2"], (2, 3, 1, 0)).reshape(9, Cout, Cout).astype(compute_dtype)

    # stage 1: GN1-apply + SiLU + Conv1, fused GN2 per-row-tile partial sums
    h1, sums2 = _run_stage1(x, ab1, w1, params["b1"], TH, H, compute_dtype, vmem_limit)

    # FiLM: M=1 embedding projection in plain JAX, folded into the GN2 per-channel affine
    proj = _silu(emb) @ params["we"].T + params["be"]
    scale, shift = proj[:, :Cout], proj[:, Cout:]
    a2, b2 = _gn2_affine(sums2, params["gn2_gamma"], params["gn2_beta"], num_groups, H * W)
    A2 = a2 * (1.0 + scale)
    B2 = b2 * (1.0 + scale) + shift
    ab2 = jnp.stack([A2, B2], axis=1)                # (N, 2, Cout)

    if Cin != Cout:
        wskip = params["ws"][:, :, 0, 0].T.astype(compute_dtype)   # (Cin, Cout)
        bskip = params["bs"].astype(jnp.float32)
    else:
        wskip = bskip = None                          # identity skip

    out = _run_stage2(h1, ab2, w2, params["b2"], x, wskip, bskip, TH, H,
                      compute_dtype, vmem_limit)
    # Output stays in compute dtype; the NHWC->NCHW layout pass moves half the bytes vs f32.
    return jnp.transpose(out, (0, 3, 1, 2))


# ---------------------------------------------------------------------------
# Deterministic parameter init (shapes follow the PyTorch module __init__)
# ---------------------------------------------------------------------------
def init_params(key, in_ch, out_ch, emb_ch):
    ks = jax.random.split(key, 12)
    n = lambda k, s, scale=0.1: scale * jax.random.normal(k, s, jnp.float32)
    return {
        "gn1_gamma": 1.0 + n(ks[0], (1, in_ch)),
        "gn1_beta": n(ks[1], (1, in_ch)),
        "w1": n(ks[2], (out_ch, in_ch, 3, 3)),
        "b1": n(ks[3], (1, out_ch)),
        "we": n(ks[4], (2 * out_ch, emb_ch)),         # torch Linear weight (out, in)
        "be": n(ks[5], (1, 2 * out_ch)),
        "gn2_gamma": 1.0 + n(ks[6], (1, out_ch)),
        "gn2_beta": n(ks[7], (1, out_ch)),
        "w2": n(ks[8], (out_ch, out_ch, 3, 3)),
        "b2": n(ks[9], (1, out_ch)),
        "ws": n(ks[10], (out_ch, in_ch, 1, 1)),
        "bs": n(ks[11], (1, out_ch)),
    }


# ---------------------------------------------------------------------------
# Pure-JAX NCHW reference (mirrors the PyTorch forward, eval mode)
# ---------------------------------------------------------------------------
def reference_forward(x, emb, params, num_groups, in_ch, out_ch):
    def gn(h, gamma, beta):
        N, C, H, W = h.shape
        hg = h.reshape(N, num_groups, C // num_groups, H, W)
        m = hg.mean(axis=(2, 3, 4), keepdims=True)
        v = ((hg - m) ** 2).mean(axis=(2, 3, 4), keepdims=True)
        hn = ((hg - m) / jnp.sqrt(v + EPS)).reshape(N, C, H, W)
        return hn * gamma.reshape(1, C, 1, 1) + beta.reshape(1, C, 1, 1)

    def conv(h, w, b, pad):
        y = lax.conv_general_dilated(h, w, (1, 1), [(pad, pad), (pad, pad)],
                                     dimension_numbers=("NCHW", "OIHW", "NCHW"))
        return y + b.reshape(1, -1, 1, 1)

    silu = lambda t: t * jax.nn.sigmoid(t)
    h = conv(silu(gn(x, params["gn1_gamma"], params["gn1_beta"])),
             params["w1"], params["b1"], 1)
    proj = silu(emb) @ params["we"].T + params["be"][0]
    scale = proj[:, :out_ch].reshape(-1, out_ch, 1, 1)
    shift = proj[:, out_ch:].reshape(-1, out_ch, 1, 1)
    h = gn(h, params["gn2_gamma"], params["gn2_beta"]) * (1.0 + scale) + shift
    h = conv(silu(h), params["w2"], params["b2"], 1)
    skip = conv(x, params["ws"], params["bs"], 0) if in_ch != out_ch else x
    return h + skip


# ---------------------------------------------------------------------------
if __name__ == "__main__":
    base_key = jax.random.PRNGKey(0)

    def run_case(idx, N, Cin, Cout, H, W, E, NC, compute_dtype, tol):
        kx, ke, kp = jax.random.split(jax.random.fold_in(base_key, idx), 3)
        x = jax.random.normal(kx, (N, Cin, H, W), jnp.float32)
        emb = jax.random.normal(ke, (N, E), jnp.float32)
        params = init_params(kp, Cin, Cout, E)
        out = resnet_encoder_block_pallas(x, emb, params, num_groups=NC,
                                          compute_dtype=compute_dtype)
        out = jax.block_until_ready(out)
        assert out.shape == (N, Cout, H, W), out.shape
        ref = reference_forward(x, emb, params, NC, Cin, Cout)
        err = float(jnp.max(jnp.abs(out.astype(jnp.float32) - ref)))
        assert err < tol, f"case {idx}: max abs error {err} (tol {tol})"

    # f32 compute path (tight semantic check), bf16 default path, identity-skip variant
    run_case(0, 2, 4, 8, 16, 16, 32, 2, jnp.float32, 5e-3)
    run_case(1, 2, 4, 8, 16, 16, 32, 2, jnp.bfloat16, 1e-1)
    run_case(2, 2, 8, 8, 16, 16, 32, 4, jnp.bfloat16, 1e-1)

    print("KERNEL_OK")
</pallas_src>

<mosaic_0001>
module attributes {stable_mosaic.version = 11 : i64} {
  func.func @_stage1_kernel(%arg0: i32, %arg1: i32, %arg2: memref<1x8x16x4xf32, #tpu.memory_space<vmem>>, %arg3: memref<1x1x16x4xf32, #tpu.memory_space<vmem>>, %arg4: memref<1x1x16x4xf32, #tpu.memory_space<vmem>>, %arg5: memref<1x2x4xf32, #tpu.memory_space<vmem>>, %arg6: memref<9x4x8xf32, #tpu.memory_space<vmem>>, %arg7: memref<1x8xf32, #tpu.memory_space<vmem>>, %arg8: memref<1x8x16x8xf32, #tpu.memory_space<vmem>>, %arg9: memref<1x1x2x8xf32, #tpu.memory_space<vmem>>) attributes {dimension_semantics = [#tpu.dimension_semantics<parallel>, #tpu.dimension_semantics<parallel>], iteration_bounds = array<i64: 2, 2>, scalar_prefetch = 0 : i64, scratch_operands = 0 : i64, tpu.core_type = #tpu.core_type<tc>, window_params = [{transform_indices = @transform_0, window_bounds = array<i64: 1, 8, 16, 4>}, {transform_indices = @transform_1, window_bounds = array<i64: 1, 1, 16, 4>}, {transform_indices = @transform_2, window_bounds = array<i64: 1, 1, 16, 4>}, {transform_indices = @transform_3, window_bounds = array<i64: 1, 2, 4>}, {pipeline_mode = #tpu.pipeline_mode<synchronous>, transform_indices = @transform_4, window_bounds = array<i64: 9, 4, 8>}, {pipeline_mode = #tpu.pipeline_mode<synchronous>, transform_indices = @transform_5, window_bounds = array<i64: 1, 8>}, {transform_indices = @transform_6, window_bounds = array<i64: 1, 8, 16, 8>}, {transform_indices = @transform_7, window_bounds = array<i64: 1, 1, 2, 8>}]} {
    %c8_i32 = arith.constant 8 : i32
    %0 = arith.muli %arg1, %c8_i32 : i32
    %c1_i32 = arith.constant 1 : i32
    %1 = arith.subi %0, %c1_i32 : i32
    %c0 = arith.constant 0 : index
    %c0_0 = arith.constant 0 : index
    %c0_1 = arith.constant 0 : index
    %c0_2 = arith.constant 0 : index
    %2 = vector.load %arg3[%c0, %c0_0, %c0_1, %c0_2] : memref<1x1x16x4xf32, #tpu.memory_space<vmem>>, vector<1x1x16x4xf32>
    %3 = vector.shape_cast %2 : vector<1x1x16x4xf32> to vector<1x16x4xf32>
    %c0_3 = arith.constant 0 : index
    %c0_4 = arith.constant 0 : index
    %c0_5 = arith.constant 0 : index
    %c0_6 = arith.constant 0 : index
    %4 = vector.load %arg2[%c0_3, %c0_4, %c0_5, %c0_6] : memref<1x8x16x4xf32, #tpu.memory_space<vmem>>, vector<1x8x16x4xf32>
    %5 = vector.shape_cast %4 : vector<1x8x16x4xf32> to vector<8x16x4xf32>
    %c0_7 = arith.constant 0 : index
    %c0_8 = arith.constant 0 : index
    %c0_9 = arith.constant 0 : index
    %c0_10 = arith.constant 0 : index
    %6 = vector.load %arg4[%c0_7, %c0_8, %c0_9, %c0_10] : memref<1x1x16x4xf32, #tpu.memory_space<vmem>>, vector<1x1x16x4xf32>
    %7 = vector.shape_cast %6 : vector<1x1x16x4xf32> to vector<1x16x4xf32>
    %8 = tpu.concatenate %3, %5, %7 in 0 : vector<1x16x4xf32>, vector<8x16x4xf32>, vector<1x16x4xf32> -> vector<10x16x4xf32>
    %c0_11 = arith.constant 0 : index
    %c0_12 = arith.constant 0 : index
    %c0_13 = arith.constant 0 : index
    %9 = vector.load %arg5[%c0_11, %c0_12, %c0_13] : memref<1x2x4xf32, #tpu.memory_space<vmem>>, vector<1x2x4xf32>
    %10 = vector.shape_cast %9 : vector<1x2x4xf32> to vector<2x4xf32>
    %11 = vector.extract_strided_slice %10 {offsets = [0, 0], sizes = [1, 4], strides = [1, 1]} : vector<2x4xf32> to vector<1x4xf32>
    %12 = vector.shape_cast %11 : vector<1x4xf32> to vector<1x1x4xf32>
    %13 = vector.extract_strided_slice %10 {offsets = [1, 0], sizes = [1, 4], strides = [1, 1]} : vector<2x4xf32> to vector<1x4xf32>
    %14 = vector.shape_cast %13 : vector<1x4xf32> to vector<1x1x4xf32>
    %15 = vector.broadcast %12 : vector<1x1x4xf32> to vector<10x16x4xf32>
    %16 = arith.mulf %8, %15 : vector<10x16x4xf32>
    %17 = vector.broadcast %14 : vector<1x1x4xf32> to vector<10x16x4xf32>
    %18 = arith.addf %16, %17 : vector<10x16x4xf32>
    %19 = arith.negf %18 : vector<10x16x4xf32>
    %20 = math.exp %19 : vector<10x16x4xf32>
    %cst = arith.constant 1.000000e+00 : f32
    %21 = vector.broadcast %cst : f32 to vector<10x16x4xf32>
    %22 = arith.addf %21, %20 : vector<10x16x4xf32>
    %23 = arith.divf %21, %22 : vector<10x16x4xf32>
    %24 = arith.mulf %18, %23 : vector<10x16x4xf32>
    %25 = tpu.iota {dimensions = array<i32: 0>} : vector<10x1x1xi32>
    %26 = vector.broadcast %1 : i32 to vector<10x1x1xi32>
    %27 = arith.addi %25, %26 : vector<10x1x1xi32>
    %c0_i32 = arith.constant 0 : i32
    %28 = vector.broadcast %c0_i32 : i32 to vector<10x1x1xi32>
    %29 = arith.cmpi sge, %27, %28 : vector<10x1x1xi32>
    %c16_i32 = arith.constant 16 : i32
    %30 = vector.broadcast %c16_i32 : i32 to vector<10x1x1xi32>
    %31 = arith.cmpi slt, %27, %30 : vector<10x1x1xi32>
    %32 = arith.andi %29, %31 : vector<10x1x1xi1>
    %cst_14 = arith.constant 0.000000e+00 : f32
    %33 = vector.shape_cast %32 : vector<10x1x1xi1> to vector<10x1x1xi1>
    %34 = vector.broadcast %33 : vector<10x1x1xi1> to vector<10x16x4xi1>
    %35 = vector.broadcast %cst_14 : f32 to vector<10x16x4xf32>
    %36 = arith.select %34, %24, %35 : vector<10x16x4xi1>, vector<10x16x4xf32>
    %cst_15 = arith.constant 0.000000e+00 : f32
    %37 = vector.broadcast %cst_15 : f32 to vector<10x1x4xf32>
    %38 = tpu.concatenate %37, %36, %37 in 1 : vector<10x1x4xf32>, vector<10x16x4xf32>, vector<10x1x4xf32> -> vector<10x18x4xf32>
    %cst_16 = arith.constant 0.000000e+00 : f32
    %39 = vector.broadcast %cst_16 : f32 to vector<128x8xf32>
    %40 = vector.extract_strided_slice %38 {offsets = [0, 0, 0], sizes = [8, 16, 4], strides = [1, 1, 1]} : vector<10x18x4xf32> to vector<8x16x4xf32>
    %41 = vector.shape_cast %40 : vector<8x16x4xf32> to vector<128x4xf32>
    %c0_17 = arith.constant 0 : index
    %c0_18 = arith.constant 0 : index
    %c0_19 = arith.constant 0 : index
    %42 = vector.load %arg6[%c0_17, %c0_18, %c0_19] : memref<9x4x8xf32, #tpu.memory_space<vmem>>, vector<1x4x8xf32>
    %43 = vector.shape_cast %42 : vector<1x4x8xf32> to vector<4x8xf32>
    %cst_20 = arith.constant dense<0.000000e+00> : vector<128x8xf32>
    %44 = tpu.matmul %41, %43, %cst_20 {dimension_numbers = #tpu.dot_dimension_numbers<[1], [0], [0], [1], [0, 0, 1, 1], [], []>} : vector<128x4xf32>, vector<4x8xf32>, vector<128x8xf32> -> vector<128x8xf32>
    %45 = arith.addf %39, %44 : vector<128x8xf32>
    %46 = vector.extract_strided_slice %38 {offsets = [0, 1, 0], sizes = [8, 16, 4], strides = [1, 1, 1]} : vector<10x18x4xf32> to vector<8x16x4xf32>
    %47 = vector.shape_cast %46 : vector<8x16x4xf32> to vector<128x4xf32>
    %c1 = arith.constant 1 : index
    %c0_21 = arith.constant 0 : index
    %c0_22 = arith.constant 0 : index
    %48 = vector.load %arg6[%c1, %c0_21, %c0_22] : memref<9x4x8xf32, #tpu.memory_space<vmem>>, vector<1x4x8xf32>
    %49 = vector.shape_cast %48 : vector<1x4x8xf32> to vector<4x8xf32>
    %cst_23 = arith.constant dense<0.000000e+00> : vector<128x8xf32>
    %50 = tpu.matmul %47, %49, %cst_23 {dimension_numbers = #tpu.dot_dimension_numbers<[1], [0], [0], [1], [0, 0, 1, 1], [], []>} : vector<128x4xf32>, vector<4x8xf32>, vector<128x8xf32> -> vector<128x8xf32>
    %51 = arith.addf %45, %50 : vector<128x8xf32>
    %52 = vector.extract_strided_slice %38 {offsets = [0, 2, 0], sizes = [8, 16, 4], strides = [1, 1, 1]} : vector<10x18x4xf32> to vector<8x16x4xf32>
    %53 = vector.shape_cast %52 : vector<8x16x4xf32> to vector<128x4xf32>
    %c2 = arith.constant 2 : index
    %c0_24 = arith.constant 0 : index
    %c0_25 = arith.constant 0 : index
    %54 = vector.load %arg6[%c2, %c0_24, %c0_25] : memref<9x4x8xf32, #tpu.memory_space<vmem>>, vector<1x4x8xf32>
    %55 = vector.shape_cast %54 : vector<1x4x8xf32> to vector<4x8xf32>
    %cst_26 = arith.constant dense<0.000000e+00> : vector<128x8xf32>
    %56 = tpu.matmul %53, %55, %cst_26 {dimension_numbers = #tpu.dot_dimension_numbers<[1], [0], [0], [1], [0, 0, 1, 1], [], []>} : vector<128x4xf32>, vector<4x8xf32>, vector<128x8xf32> -> vector<128x8xf32>
    %57 = arith.addf %51, %56 : vector<128x8xf32>
    %58 = vector.extract_strided_slice %38 {offsets = [1, 0, 0], sizes = [8, 16, 4], strides = [1, 1, 1]} : vector<10x18x4xf32> to vector<8x16x4xf32>
    %59 = vector.shape_cast %58 : vector<8x16x4xf32> to vector<128x4xf32>
    %c3 = arith.constant 3 : index
    %c0_27 = arith.constant 0 : index
    %c0_28 = arith.constant 0 : index
    %60 = vector.load %arg6[%c3, %c0_27, %c0_28] : memref<9x4x8xf32, #tpu.memory_space<vmem>>, vector<1x4x8xf32>
    %61 = vector.shape_cast %60 : vector<1x4x8xf32> to vector<4x8xf32>
    %cst_29 = arith.constant dense<0.000000e+00> : vector<128x8xf32>
    %62 = tpu.matmul %59, %61, %cst_29 {dimension_numbers = #tpu.dot_dimension_numbers<[1], [0], [0], [1], [0, 0, 1, 1], [], []>} : vector<128x4xf32>, vector<4x8xf32>, vector<128x8xf32> -> vector<128x8xf32>
    %63 = arith.addf %57, %62 : vector<128x8xf32>
    %64 = vector.extract_strided_slice %38 {offsets = [1, 1, 0], sizes = [8, 16, 4], strides = [1, 1, 1]} : vector<10x18x4xf32> to vector<8x16x4xf32>
    %65 = vector.shape_cast %64 : vector<8x16x4xf32> to vector<128x4xf32>
    %c4 = arith.constant 4 : index
    %c0_30 = arith.constant 0 : index
    %c0_31 = arith.constant 0 : index
    %66 = vector.load %arg6[%c4, %c0_30, %c0_31] : memref<9x4x8xf32, #tpu.memory_space<vmem>>, vector<1x4x8xf32>
    %67 = vector.shape_cast %66 : vector<1x4x8xf32> to vector<4x8xf32>
    %cst_32 = arith.constant dense<0.000000e+00> : vector<128x8xf32>
    %68 = tpu.matmul %65, %67, %cst_32 {dimension_numbers = #tpu.dot_dimension_numbers<[1], [0], [0], [1], [0, 0, 1, 1], [], []>} : vector<128x4xf32>, vector<4x8xf32>, vector<128x8xf32> -> vector<128x8xf32>
    %69 = arith.addf %63, %68 : vector<128x8xf32>
    %70 = vector.extract_strided_slice %38 {offsets = [1, 2, 0], sizes = [8, 16, 4], strides = [1, 1, 1]} : vector<10x18x4xf32> to vector<8x16x4xf32>
    %71 = vector.shape_cast %70 : vector<8x16x4xf32> to vector<128x4xf32>
    %c5 = arith.constant 5 : index
    %c0_33 = arith.constant 0 : index
    %c0_34 = arith.constant 0 : index
    %72 = vector.load %arg6[%c5, %c0_33, %c0_34] : memref<9x4x8xf32, #tpu.memory_space<vmem>>, vector<1x4x8xf32>
    %73 = vector.shape_cast %72 : vector<1x4x8xf32> to vector<4x8xf32>
    %cst_35 = arith.constant dense<0.000000e+00> : vector<128x8xf32>
    %74 = tpu.matmul %71, %73, %cst_35 {dimension_numbers = #tpu.dot_dimension_numbers<[1], [0], [0], [1], [0, 0, 1, 1], [], []>} : vector<128x4xf32>, vector<4x8xf32>, vector<128x8xf32> -> vector<128x8xf32>
    %75 = arith.addf %69, %74 : vector<128x8xf32>
    %76 = vector.extract_strided_slice %38 {offsets = [2, 0, 0], sizes = [8, 16, 4], strides = [1, 1, 1]} : vector<10x18x4xf32> to vector<8x16x4xf32>
    %77 = vector.shape_cast %76 : vector<8x16x4xf32> to vector<128x4xf32>
    %c6 = arith.constant 6 : index
    %c0_36 = arith.constant 0 : index
    %c0_37 = arith.constant 0 : index
    %78 = vector.load %arg6[%c6, %c0_36, %c0_37] : memref<9x4x8xf32, #tpu.memory_space<vmem>>, vector<1x4x8xf32>
    %79 = vector.shape_cast %78 : vector<1x4x8xf32> to vector<4x8xf32>
    %cst_38 = arith.constant dense<0.000000e+00> : vector<128x8xf32>
    %80 = tpu.matmul %77, %79, %cst_38 {dimension_numbers = #tpu.dot_dimension_numbers<[1], [0], [0], [1], [0, 0, 1, 1], [], []>} : vector<128x4xf32>, vector<4x8xf32>, vector<128x8xf32> -> vector<128x8xf32>
    %81 = arith.addf %75, %80 : vector<128x8xf32>
    %82 = vector.extract_strided_slice %38 {offsets = [2, 1, 0], sizes = [8, 16, 4], strides = [1, 1, 1]} : vector<10x18x4xf32> to vector<8x16x4xf32>
    %83 = vector.shape_cast %82 : vector<8x16x4xf32> to vector<128x4xf32>
    %c7 = arith.constant 7 : index
    %c0_39 = arith.constant 0 : index
    %c0_40 = arith.constant 0 : index
    %84 = vector.load %arg6[%c7, %c0_39, %c0_40] : memref<9x4x8xf32, #tpu.memory_space<vmem>>, vector<1x4x8xf32>
    %85 = vector.shape_cast %84 : vector<1x4x8xf32> to vector<4x8xf32>
    %cst_41 = arith.constant dense<0.000000e+00> : vector<128x8xf32>
    %86 = tpu.matmul %83, %85, %cst_41 {dimension_numbers = #tpu.dot_dimension_numbers<[1], [0], [0], [1], [0, 0, 1, 1], [], []>} : vector<128x4xf32>, vector<4x8xf32>, vector<128x8xf32> -> vector<128x8xf32>
    %87 = arith.addf %81, %86 : vector<128x8xf32>
    %88 = vector.extract_strided_slice %38 {offsets = [2, 2, 0], sizes = [8, 16, 4], strides = [1, 1, 1]} : vector<10x18x4xf32> to vector<8x16x4xf32>
    %89 = vector.shape_cast %88 : vector<8x16x4xf32> to vector<128x4xf32>
    %c8 = arith.constant 8 : index
    %c0_42 = arith.constant 0 : index
    %c0_43 = arith.constant 0 : index
    %90 = vector.load %arg6[%c8, %c0_42, %c0_43] : memref<9x4x8xf32, #tpu.memory_space<vmem>>, vector<1x4x8xf32>
    %91 = vector.shape_cast %90 : vector<1x4x8xf32> to vector<4x8xf32>
    %cst_44 = arith.constant dense<0.000000e+00> : vector<128x8xf32>
    %92 = tpu.matmul %89, %91, %cst_44 {dimension_numbers = #tpu.dot_dimension_numbers<[1], [0], [0], [1], [0, 0, 1, 1], [], []>} : vector<128x4xf32>, vector<4x8xf32>, vector<128x8xf32> -> vector<128x8xf32>
    %93 = arith.addf %87, %92 : vector<128x8xf32>
    %c0_45 = arith.constant 0 : index
    %c0_46 = arith.constant 0 : index
    %94 = vector.load %arg7[%c0_45, %c0_46] : memref<1x8xf32, #tpu.memory_space<vmem>>, vector<1x8xf32>
    %95 = vector.broadcast %94 : vector<1x8xf32> to vector<128x8xf32>
    %96 = arith.addf %93, %95 : vector<128x8xf32>
    %97 = vector.shape_cast %96 : vector<128x8xf32> to vector<8x16x8xf32>
    %c0_47 = arith.constant 0 : index
    %c0_48 = arith.constant 0 : index
    %c0_49 = arith.constant 0 : index
    %c0_50 = arith.constant 0 : index
    %98 = vector.load %arg8[%c0_47, %c0_48, %c0_49, %c0_50] : memref<1x8x16x8xf32, #tpu.memory_space<vmem>>, vector<1x8x16x8xf32>
    %99 = vector.shape_cast %98 : vector<1x8x16x8xf32> to vector<8x16x8xf32>
    %100 = vector.shape_cast %97 : vector<8x16x8xf32> to vector<1x8x16x8xf32>
    tpu.vector_store %arg8[%c0_47, %c0_48, %c0_49, %c0_50], %100 {strides = array<i32>} : memref<1x8x16x8xf32, #tpu.memory_space<vmem>>, vector<1x8x16x8xf32>,
    %cst_51 = arith.constant dense<0.000000e+00> : vector<8xf32>
    %101 = vector.multi_reduction <add>, %96, %cst_51 [0] : vector<128x8xf32> to vector<8xf32>
    %102 = vector.shape_cast %101 : vector<8xf32> to vector<1x8xf32>
    %103 = arith.mulf %96, %96 : vector<128x8xf32>
    %cst_52 = arith.constant dense<0.000000e+00> : vector<8xf32>
    %104 = vector.multi_reduction <add>, %103, %cst_52 [0] : vector<128x8xf32> to vector<8xf32>
    %105 = vector.shape_cast %104 : vector<8xf32> to vector<1x8xf32>
    %106 = tpu.concatenate %102, %105 in 0 : vector<1x8xf32>, vector<1x8xf32> -> vector<2x8xf32>
    %c0_53 = arith.constant 0 : index
    %c0_54 = arith.constant 0 : index
    %c0_55 = arith.constant 0 : index
    %c0_56 = arith.constant 0 : index
    %107 = vector.load %arg9[%c0_53, %c0_54, %c0_55, %c0_56] : memref<1x1x2x8xf32, #tpu.memory_space<vmem>>, vector<1x1x2x8xf32>
    %108 = vector.shape_cast %107 : vector<1x1x2x8xf32> to vector<2x8xf32>
    %109 = vector.shape_cast %106 : vector<2x8xf32> to vector<1x1x2x8xf32>
    tpu.vector_store %arg9[%c0_53, %c0_54, %c0_55, %c0_56], %109 {strides = array<i32>} : memref<1x1x2x8xf32, #tpu.memory_space<vmem>>, vector<1x1x2x8xf32>,
    return
  }
  func.func @transform_0(%arg0: i32, %arg1: i32) -> (i32, i32, i32, i32) {
    %c0_i32 = arith.constant 0 : i32
    %c0_i32_0 = arith.constant 0 : i32
    %c0_i32_1 = arith.constant 0 : i32
    return %arg0, %arg1, %c0_i32, %c0_i32_0 : i32, i32, i32, i32
  }
  func.func @transform_1(%arg0: i32, %arg1: i32) -> (i32, i32, i32, i32) {
    %c8_i32 = arith.constant 8 : i32
    %0 = arith.muli %arg1, %c8_i32 : i32
    %c1_i32 = arith.constant 1 : i32
    %1 = arith.subi %0, %c1_i32 : i32
    %c0_i32 = arith.constant 0 : i32
    %2 = arith.maxsi %1, %c0_i32 : i32
    %c0_i32_0 = arith.constant 0 : i32
    %c0_i32_1 = arith.constant 0 : i32
    %c0_i32_2 = arith.constant 0 : i32
    return %arg0, %2, %c0_i32_0, %c0_i32_1 : i32, i32, i32, i32
  }
  func.func @transform_2(%arg0: i32, %arg1: i32) -> (i32, i32, i32, i32) {
    %c8_i32 = arith.constant 8 : i32
    %0 = arith.muli %arg1, %c8_i32 : i32
    %c8_i32_0 = arith.constant 8 : i32
    %1 = arith.addi %0, %c8_i32_0 : i32
    %c15_i32 = arith.constant 15 : i32
    %2 = arith.minsi %1, %c15_i32 : i32
    %c0_i32 = arith.constant 0 : i32
    %c0_i32_1 = arith.constant 0 : i32
    %c0_i32_2 = arith.constant 0 : i32
    return %arg0, %2, %c0_i32, %c0_i32_1 : i32, i32, i32, i32
  }
  func.func @transform_3(%arg0: i32, %arg1: i32) -> (i32, i32, i32) {
    %c0_i32 = arith.constant 0 : i32
    %c0_i32_0 = arith.constant 0 : i32
    %c0_i32_1 = arith.constant 0 : i32
    return %arg0, %c0_i32, %c0_i32_0 : i32, i32, i32
  }
  func.func @transform_4(%arg0: i32, %arg1: i32) -> (i32, i32, i32) {
    %c0_i32 = arith.constant 0 : i32
    %c0_i32_0 = arith.constant 0 : i32
    %c0_i32_1 = arith.constant 0 : i32
    %c0_i32_2 = arith.constant 0 : i32
    return %c0_i32, %c0_i32_0, %c0_i32_1 : i32, i32, i32
  }
  func.func @transform_5(%arg0: i32, %arg1: i32) -> (i32, i32) {
    %c0_i32 = arith.constant 0 : i32
    %c0_i32_0 = arith.constant 0 : i32
    %c0_i32_1 = arith.constant 0 : i32
    return %c0_i32, %c0_i32_0 : i32, i32
  }
  func.func @transform_6(%arg0: i32, %arg1: i32) -> (i32, i32, i32, i32) {
    %c0_i32 = arith.constant 0 : i32
    %c0_i32_0 = arith.constant 0 : i32
    %c0_i32_1 = arith.constant 0 : i32
    return %arg0, %arg1, %c0_i32, %c0_i32_0 : i32, i32, i32, i32
  }
  func.func @transform_7(%arg0: i32, %arg1: i32) -> (i32, i32, i32, i32) {
    %c0_i32 = arith.constant 0 : i32
    %c0_i32_0 = arith.constant 0 : i32
    %c0_i32_1 = arith.constant 0 : i32
    return %arg0, %arg1, %c0_i32, %c0_i32_0 : i32, i32, i32, i32
  }
}

module attributes {stable_mosaic.version = 11 : i64} {
  func.func @_stage2_kernel(%arg0: i32, %arg1: i32, %arg2: memref<1x8x16x8xf32, #tpu.memory_space<vmem>>, %arg3: memref<1x1x16x8xf32, #tpu.memory_space<vmem>>, %arg4: memref<1x1x16x8xf32, #tpu.memory_space<vmem>>, %arg5: memref<1x2x8xf32, #tpu.memory_space<vmem>>, %arg6: memref<9x8x8xf32, #tpu.memory_space<vmem>>, %arg7: memref<1x8xf32, #tpu.memory_space<vmem>>, %arg8: memref<1x8x16x4xf32, #tpu.memory_space<vmem>>, %arg9: memref<4x8xf32, #tpu.memory_space<vmem>>, %arg10: memref<1x8xf32, #tpu.memory_space<vmem>>, %arg11: memref<1x8x16x8xf32, #tpu.memory_space<vmem>>) attributes {dimension_semantics = [#tpu.dimension_semantics<parallel>, #tpu.dimension_semantics<parallel>], iteration_bounds = array<i64: 2, 2>, scalar_prefetch = 0 : i64, scratch_operands = 0 : i64, tpu.core_type = #tpu.core_type<tc>, window_params = [{transform_indices = @transform_0, window_bounds = array<i64: 1, 8, 16, 8>}, {transform_indices = @transform_1, window_bounds = array<i64: 1, 1, 16, 8>}, {transform_indices = @transform_2, window_bounds = array<i64: 1, 1, 16, 8>}, {transform_indices = @transform_3, window_bounds = array<i64: 1, 2, 8>}, {pipeline_mode = #tpu.pipeline_mode<synchronous>, transform_indices = @transform_4, window_bounds = array<i64: 9, 8, 8>}, {pipeline_mode = #tpu.pipeline_mode<synchronous>, transform_indices = @transform_5, window_bounds = array<i64: 1, 8>}, {transform_indices = @transform_6, window_bounds = array<i64: 1, 8, 16, 4>}, {pipeline_mode = #tpu.pipeline_mode<synchronous>, transform_indices = @transform_7, window_bounds = array<i64: 4, 8>}, {pipeline_mode = #tpu.pipeline_mode<synchronous>, transform_indices = @transform_8, window_bounds = array<i64: 1, 8>}, {transform_indices = @transform_9, window_bounds = array<i64: 1, 8, 16, 8>}]} {
    %c8_i32 = arith.constant 8 : i32
    %0 = arith.muli %arg1, %c8_i32 : i32
    %c1_i32 = arith.constant 1 : i32
    %1 = arith.subi %0, %c1_i32 : i32
    %c0 = arith.constant 0 : index
    %c0_0 = arith.constant 0 : index
    %c0_1 = arith.constant 0 : index
    %c0_2 = arith.constant 0 : index
    %2 = vector.load %arg3[%c0, %c0_0, %c0_1, %c0_2] : memref<1x1x16x8xf32, #tpu.memory_space<vmem>>, vector<1x1x16x8xf32>
    %3 = vector.shape_cast %2 : vector<1x1x16x8xf32> to vector<1x16x8xf32>
    %c0_3 = arith.constant 0 : index
    %c0_4 = arith.constant 0 : index
    %c0_5 = arith.constant 0 : index
    %c0_6 = arith.constant 0 : index
    %4 = vector.load %arg2[%c0_3, %c0_4, %c0_5, %c0_6] : memref<1x8x16x8xf32, #tpu.memory_space<vmem>>, vector<1x8x16x8xf32>
    %5 = vector.shape_cast %4 : vector<1x8x16x8xf32> to vector<8x16x8xf32>
    %c0_7 = arith.constant 0 : index
    %c0_8 = arith.constant 0 : index
    %c0_9 = arith.constant 0 : index
    %c0_10 = arith.constant 0 : index
    %6 = vector.load %arg4[%c0_7, %c0_8, %c0_9, %c0_10] : memref<1x1x16x8xf32, #tpu.memory_space<vmem>>, vector<1x1x16x8xf32>
    %7 = vector.shape_cast %6 : vector<1x1x16x8xf32> to vector<1x16x8xf32>
    %8 = tpu.concatenate %3, %5, %7 in 0 : vector<1x16x8xf32>, vector<8x16x8xf32>, vector<1x16x8xf32> -> vector<10x16x8xf32>
    %c0_11 = arith.constant 0 : index
    %c0_12 = arith.constant 0 : index
    %c0_13 = arith.constant 0 : index
    %9 = vector.load %arg5[%c0_11, %c0_12, %c0_13] : memref<1x2x8xf32, #tpu.memory_space<vmem>>, vector<1x2x8xf32>
    %10 = vector.shape_cast %9 : vector<1x2x8xf32> to vector<2x8xf32>
    %11 = vector.extract_strided_slice %10 {offsets = [0, 0], sizes = [1, 8], strides = [1, 1]} : vector<2x8xf32> to vector<1x8xf32>
    %12 = vector.shape_cast %11 : vector<1x8xf32> to vector<1x1x8xf32>
    %13 = vector.extract_strided_slice %10 {offsets = [1, 0], sizes = [1, 8], strides = [1, 1]} : vector<2x8xf32> to vector<1x8xf32>
    %14 = vector.shape_cast %13 : vector<1x8xf32> to vector<1x1x8xf32>
    %15 = vector.broadcast %12 : vector<1x1x8xf32> to vector<10x16x8xf32>
    %16 = arith.mulf %8, %15 : vector<10x16x8xf32>
    %17 = vector.broadcast %14 : vector<1x1x8xf32> to vector<10x16x8xf32>
    %18 = arith.addf %16, %17 : vector<10x16x8xf32>
    %19 = arith.negf %18 : vector<10x16x8xf32>
    %20 = math.exp %19 : vector<10x16x8xf32>
    %cst = arith.constant 1.000000e+00 : f32
    %21 = vector.broadcast %cst : f32 to vector<10x16x8xf32>
    %22 = arith.addf %21, %20 : vector<10x16x8xf32>
    %23 = arith.divf %21, %22 : vector<10x16x8xf32>
    %24 = arith.mulf %18, %23 : vector<10x16x8xf32>
    %25 = tpu.iota {dimensions = array<i32: 0>} : vector<10x1x1xi32>
    %26 = vector.broadcast %1 : i32 to vector<10x1x1xi32>
    %27 = arith.addi %25, %26 : vector<10x1x1xi32>
    %c0_i32 = arith.constant 0 : i32
    %28 = vector.broadcast %c0_i32 : i32 to vector<10x1x1xi32>
    %29 = arith.cmpi sge, %27, %28 : vector<10x1x1xi32>
    %c16_i32 = arith.constant 16 : i32
    %30 = vector.broadcast %c16_i32 : i32 to vector<10x1x1xi32>
    %31 = arith.cmpi slt, %27, %30 : vector<10x1x1xi32>
    %32 = arith.andi %29, %31 : vector<10x1x1xi1>
    %cst_14 = arith.constant 0.000000e+00 : f32
    %33 = vector.shape_cast %32 : vector<10x1x1xi1> to vector<10x1x1xi1>
    %34 = vector.broadcast %33 : vector<10x1x1xi1> to vector<10x16x8xi1>
    %35 = vector.broadcast %cst_14 : f32 to vector<10x16x8xf32>
    %36 = arith.select %34, %24, %35 : vector<10x16x8xi1>, vector<10x16x8xf32>
    %cst_15 = arith.constant 0.000000e+00 : f32
    %37 = vector.broadcast %cst_15 : f32 to vector<10x1x8xf32>
    %38 = tpu.concatenate %37, %36, %37 in 1 : vector<10x1x8xf32>, vector<10x16x8xf32>, vector<10x1x8xf32> -> vector<10x18x8xf32>
    %cst_16 = arith.constant 0.000000e+00 : f32
    %39 = vector.broadcast %cst_16 : f32 to vector<128x8xf32>
    %40 = vector.extract_strided_slice %38 {offsets = [0, 0, 0], sizes = [8, 16, 8], strides = [1, 1, 1]} : vector<10x18x8xf32> to vector<8x16x8xf32>
    %41 = vector.shape_cast %40 : vector<8x16x8xf32> to vector<128x8xf32>
    %c0_17 = arith.constant 0 : index
    %c0_18 = arith.constant 0 : index
    %c0_19 = arith.constant 0 : index
    %42 = vector.load %arg6[%c0_17, %c0_18, %c0_19] : memref<9x8x8xf32, #tpu.memory_space<vmem>>, vector<1x8x8xf32>
    %43 = vector.shape_cast %42 : vector<1x8x8xf32> to vector<8x8xf32>
    %cst_20 = arith.constant dense<0.000000e+00> : vector<128x8xf32>
    %44 = tpu.matmul %41, %43, %cst_20 {dimension_numbers = #tpu.dot_dimension_numbers<[1], [0], [0], [1], [0, 0, 1, 1], [], []>} : vector<128x8xf32>, vector<8x8xf32>, vector<128x8xf32> -> vector<128x8xf32>
    %45 = arith.addf %39, %44 : vector<128x8xf32>
    %46 = vector.extract_strided_slice %38 {offsets = [0, 1, 0], sizes = [8, 16, 8], strides = [1, 1, 1]} : vector<10x18x8xf32> to vector<8x16x8xf32>
    %47 = vector.shape_cast %46 : vector<8x16x8xf32> to vector<128x8xf32>
    %c1 = arith.constant 1 : index
    %c0_21 = arith.constant 0 : index
    %c0_22 = arith.constant 0 : index
    %48 = vector.load %arg6[%c1, %c0_21, %c0_22] : memref<9x8x8xf32, #tpu.memory_space<vmem>>, vector<1x8x8xf32>
    %49 = vector.shape_cast %48 : vector<1x8x8xf32> to vector<8x8xf32>
    %cst_23 = arith.constant dense<0.000000e+00> : vector<128x8xf32>
    %50 = tpu.matmul %47, %49, %cst_23 {dimension_numbers = #tpu.dot_dimension_numbers<[1], [0], [0], [1], [0, 0, 1, 1], [], []>} : vector<128x8xf32>, vector<8x8xf32>, vector<128x8xf32> -> vector<128x8xf32>
    %51 = arith.addf %45, %50 : vector<128x8xf32>
    %52 = vector.extract_strided_slice %38 {offsets = [0, 2, 0], sizes = [8, 16, 8], strides = [1, 1, 1]} : vector<10x18x8xf32> to vector<8x16x8xf32>
    %53 = vector.shape_cast %52 : vector<8x16x8xf32> to vector<128x8xf32>
    %c2 = arith.constant 2 : index
    %c0_24 = arith.constant 0 : index
    %c0_25 = arith.constant 0 : index
    %54 = vector.load %arg6[%c2, %c0_24, %c0_25] : memref<9x8x8xf32, #tpu.memory_space<vmem>>, vector<1x8x8xf32>
    %55 = vector.shape_cast %54 : vector<1x8x8xf32> to vector<8x8xf32>
    %cst_26 = arith.constant dense<0.000000e+00> : vector<128x8xf32>
    %56 = tpu.matmul %53, %55, %cst_26 {dimension_numbers = #tpu.dot_dimension_numbers<[1], [0], [0], [1], [0, 0, 1, 1], [], []>} : vector<128x8xf32>, vector<8x8xf32>, vector<128x8xf32> -> vector<128x8xf32>
    %57 = arith.addf %51, %56 : vector<128x8xf32>
    %58 = vector.extract_strided_slice %38 {offsets = [1, 0, 0], sizes = [8, 16, 8], strides = [1, 1, 1]} : vector<10x18x8xf32> to vector<8x16x8xf32>
    %59 = vector.shape_cast %58 : vector<8x16x8xf32> to vector<128x8xf32>
    %c3 = arith.constant 3 : index
    %c0_27 = arith.constant 0 : index
    %c0_28 = arith.constant 0 : index
    %60 = vector.load %arg6[%c3, %c0_27, %c0_28] : memref<9x8x8xf32, #tpu.memory_space<vmem>>, vector<1x8x8xf32>
    %61 = vector.shape_cast %60 : vector<1x8x8xf32> to vector<8x8xf32>
    %cst_29 = arith.constant dense<0.000000e+00> : vector<128x8xf32>
    %62 = tpu.matmul %59, %61, %cst_29 {dimension_numbers = #tpu.dot_dimension_numbers<[1], [0], [0], [1], [0, 0, 1, 1], [], []>} : vector<128x8xf32>, vector<8x8xf32>, vector<128x8xf32> -> vector<128x8xf32>
    %63 = arith.addf %57, %62 : vector<128x8xf32>
    %64 = vector.extract_strided_slice %38 {offsets = [1, 1, 0], sizes = [8, 16, 8], strides = [1, 1, 1]} : vector<10x18x8xf32> to vector<8x16x8xf32>
    %65 = vector.shape_cast %64 : vector<8x16x8xf32> to vector<128x8xf32>
    %c4 = arith.constant 4 : index
    %c0_30 = arith.constant 0 : index
    %c0_31 = arith.constant 0 : index
    %66 = vector.load %arg6[%c4, %c0_30, %c0_31] : memref<9x8x8xf32, #tpu.memory_space<vmem>>, vector<1x8x8xf32>
    %67 = vector.shape_cast %66 : vector<1x8x8xf32> to vector<8x8xf32>
    %cst_32 = arith.constant dense<0.000000e+00> : vector<128x8xf32>
    %68 = tpu.matmul %65, %67, %cst_32 {dimension_numbers = #tpu.dot_dimension_numbers<[1], [0], [0], [1], [0, 0, 1, 1], [], []>} : vector<128x8xf32>, vector<8x8xf32>, vector<128x8xf32> -> vector<128x8xf32>
    %69 = arith.addf %63, %68 : vector<128x8xf32>
    %70 = vector.extract_strided_slice %38 {offsets = [1, 2, 0], sizes = [8, 16, 8], strides = [1, 1, 1]} : vector<10x18x8xf32> to vector<8x16x8xf32>
    %71 = vector.shape_cast %70 : vector<8x16x8xf32> to vector<128x8xf32>
    %c5 = arith.constant 5 : index
    %c0_33 = arith.constant 0 : index
    %c0_34 = arith.constant 0 : index
    %72 = vector.load %arg6[%c5, %c0_33, %c0_34] : memref<9x8x8xf32, #tpu.memory_space<vmem>>, vector<1x8x8xf32>
    %73 = vector.shape_cast %72 : vector<1x8x8xf32> to vector<8x8xf32>
    %cst_35 = arith.constant dense<0.000000e+00> : vector<128x8xf32>
    %74 = tpu.matmul %71, %73, %cst_35 {dimension_numbers = #tpu.dot_dimension_numbers<[1], [0], [0], [1], [0, 0, 1, 1], [], []>} : vector<128x8xf32>, vector<8x8xf32>, vector<128x8xf32> -> vector<128x8xf32>
    %75 = arith.addf %69, %74 : vector<128x8xf32>
    %76 = vector.extract_strided_slice %38 {offsets = [2, 0, 0], sizes = [8, 16, 8], strides = [1, 1, 1]} : vector<10x18x8xf32> to vector<8x16x8xf32>
    %77 = vector.shape_cast %76 : vector<8x16x8xf32> to vector<128x8xf32>
    %c6 = arith.constant 6 : index
    %c0_36 = arith.constant 0 : index
    %c0_37 = arith.constant 0 : index
    %78 = vector.load %arg6[%c6, %c0_36, %c0_37] : memref<9x8x8xf32, #tpu.memory_space<vmem>>, vector<1x8x8xf32>
    %79 = vector.shape_cast %78 : vector<1x8x8xf32> to vector<8x8xf32>
    %cst_38 = arith.constant dense<0.000000e+00> : vector<128x8xf32>
    %80 = tpu.matmul %77, %79, %cst_38 {dimension_numbers = #tpu.dot_dimension_numbers<[1], [0], [0], [1], [0, 0, 1, 1], [], []>} : vector<128x8xf32>, vector<8x8xf32>, vector<128x8xf32> -> vector<128x8xf32>
    %81 = arith.addf %75, %80 : vector<128x8xf32>
    %82 = vector.extract_strided_slice %38 {offsets = [2, 1, 0], sizes = [8, 16, 8], strides = [1, 1, 1]} : vector<10x18x8xf32> to vector<8x16x8xf32>
    %83 = vector.shape_cast %82 : vector<8x16x8xf32> to vector<128x8xf32>
    %c7 = arith.constant 7 : index
    %c0_39 = arith.constant 0 : index
    %c0_40 = arith.constant 0 : index
    %84 = vector.load %arg6[%c7, %c0_39, %c0_40] : memref<9x8x8xf32, #tpu.memory_space<vmem>>, vector<1x8x8xf32>
    %85 = vector.shape_cast %84 : vector<1x8x8xf32> to vector<8x8xf32>
    %cst_41 = arith.constant dense<0.000000e+00> : vector<128x8xf32>
    %86 = tpu.matmul %83, %85, %cst_41 {dimension_numbers = #tpu.dot_dimension_numbers<[1], [0], [0], [1], [0, 0, 1, 1], [], []>} : vector<128x8xf32>, vector<8x8xf32>, vector<128x8xf32> -> vector<128x8xf32>
    %87 = arith.addf %81, %86 : vector<128x8xf32>
    %88 = vector.extract_strided_slice %38 {offsets = [2, 2, 0], sizes = [8, 16, 8], strides = [1, 1, 1]} : vector<10x18x8xf32> to vector<8x16x8xf32>
    %89 = vector.shape_cast %88 : vector<8x16x8xf32> to vector<128x8xf32>
    %c8 = arith.constant 8 : index
    %c0_42 = arith.constant 0 : index
    %c0_43 = arith.constant 0 : index
    %90 = vector.load %arg6[%c8, %c0_42, %c0_43] : memref<9x8x8xf32, #tpu.memory_space<vmem>>, vector<1x8x8xf32>
    %91 = vector.shape_cast %90 : vector<1x8x8xf32> to vector<8x8xf32>
    %cst_44 = arith.constant dense<0.000000e+00> : vector<128x8xf32>
    %92 = tpu.matmul %89, %91, %cst_44 {dimension_numbers = #tpu.dot_dimension_numbers<[1], [0], [0], [1], [0, 0, 1, 1], [], []>} : vector<128x8xf32>, vector<8x8xf32>, vector<128x8xf32> -> vector<128x8xf32>
    %93 = arith.addf %87, %92 : vector<128x8xf32>
    %c0_45 = arith.constant 0 : index
    %c0_46 = arith.constant 0 : index
    %94 = vector.load %arg7[%c0_45, %c0_46] : memref<1x8xf32, #tpu.memory_space<vmem>>, vector<1x8xf32>
    %95 = vector.broadcast %94 : vector<1x8xf32> to vector<128x8xf32>
    %96 = arith.addf %93, %95 : vector<128x8xf32>
    %c0_47 = arith.constant 0 : index
    %c0_48 = arith.constant 0 : index
    %c0_49 = arith.constant 0 : index
    %c0_50 = arith.constant 0 : index
    %97 = vector.load %arg8[%c0_47, %c0_48, %c0_49, %c0_50] : memref<1x8x16x4xf32, #tpu.memory_space<vmem>>, vector<1x8x16x4xf32>
    %98 = vector.shape_cast %97 : vector<1x8x16x4xf32> to vector<8x16x4xf32>
    %99 = vector.shape_cast %98 : vector<8x16x4xf32> to vector<128x4xf32>
    %c0_51 = arith.constant 0 : index
    %c0_52 = arith.constant 0 : index
    %100 = vector.load %arg9[%c0_51, %c0_52] : memref<4x8xf32, #tpu.memory_space<vmem>>, vector<4x8xf32>
    %cst_53 = arith.constant dense<0.000000e+00> : vector<128x8xf32>
    %101 = tpu.matmul %99, %100, %cst_53 {dimension_numbers = #tpu.dot_dimension_numbers<[1], [0], [0], [1], [0, 0, 1, 1], [], []>} : vector<128x4xf32>, vector<4x8xf32>, vector<128x8xf32> -> vector<128x8xf32>
    %c0_54 = arith.constant 0 : index
    %c0_55 = arith.constant 0 : index
    %102 = vector.load %arg10[%c0_54, %c0_55] : memref<1x8xf32, #tpu.memory_space<vmem>>, vector<1x8xf32>
    %103 = vector.broadcast %102 : vector<1x8xf32> to vector<128x8xf32>
    %104 = arith.addf %101, %103 : vector<128x8xf32>
    %105 = arith.addf %96, %104 : vector<128x8xf32>
    %106 = vector.shape_cast %105 : vector<128x8xf32> to vector<8x16x8xf32>
    %c0_56 = arith.constant 0 : index
    %c0_57 = arith.constant 0 : index
    %c0_58 = arith.constant 0 : index
    %c0_59 = arith.constant 0 : index
    %107 = vector.load %arg11[%c0_56, %c0_57, %c0_58, %c0_59] : memref<1x8x16x8xf32, #tpu.memory_space<vmem>>, vector<1x8x16x8xf32>
    %108 = vector.shape_cast %107 : vector<1x8x16x8xf32> to vector<8x16x8xf32>
    %109 = vector.shape_cast %106 : vector<8x16x8xf32> to vector<1x8x16x8xf32>
    tpu.vector_store %arg11[%c0_56, %c0_57, %c0_58, %c0_59], %109 {strides = array<i32>} : memref<1x8x16x8xf32, #tpu.memory_space<vmem>>, vector<1x8x16x8xf32>,
    return
  }
  func.func @transform_0(%arg0: i32, %arg1: i32) -> (i32, i32, i32, i32) {
    %c0_i32 = arith.constant 0 : i32
    %c0_i32_0 = arith.constant 0 : i32
    %c0_i32_1 = arith.constant 0 : i32
    return %arg0, %arg1, %c0_i32, %c0_i32_0 : i32, i32, i32, i32
  }
  func.func @transform_1(%arg0: i32, %arg1: i32) -> (i32, i32, i32, i32) {
    %c8_i32 = arith.constant 8 : i32
    %0 = arith.muli %arg1, %c8_i32 : i32
    %c1_i32 = arith.constant 1 : i32
    %1 = arith.subi %0, %c1_i32 : i32
    %c0_i32 = arith.constant 0 : i32
    %2 = arith.maxsi %1, %c0_i32 : i32
    %c0_i32_0 = arith.constant 0 : i32
    %c0_i32_1 = arith.constant 0 : i32
    %c0_i32_2 = arith.constant 0 : i32
    return %arg0, %2, %c0_i32_0, %c0_i32_1 : i32, i32, i32, i32
  }
  func.func @transform_2(%arg0: i32, %arg1: i32) -> (i32, i32, i32, i32) {
    %c8_i32 = arith.constant 8 : i32
    %0 = arith.muli %arg1, %c8_i32 : i32
    %c8_i32_0 = arith.constant 8 : i32
    %1 = arith.addi %0, %c8_i32_0 : i32
    %c15_i32 = arith.constant 15 : i32
    %2 = arith.minsi %1, %c15_i32 : i32
    %c0_i32 = arith.constant 0 : i32
    %c0_i32_1 = arith.constant 0 : i32
    %c0_i32_2 = arith.constant 0 : i32
    return %arg0, %2, %c0_i32, %c0_i32_1 : i32, i32, i32, i32
  }
  func.func @transform_3(%arg0: i32, %arg1: i32) -> (i32, i32, i32) {
    %c0_i32 = arith.constant 0 : i32
    %c0_i32_0 = arith.constant 0 : i32
    %c0_i32_1 = arith.constant 0 : i32
    return %arg0, %c0_i32, %c0_i32_0 : i32, i32, i32
  }
  func.func @transform_4(%arg0: i32, %arg1: i32) -> (i32, i32, i32) {
    %c0_i32 = arith.constant 0 : i32
    %c0_i32_0 = arith.constant 0 : i32
    %c0_i32_1 = arith.constant 0 : i32
    %c0_i32_2 = arith.constant 0 : i32
    return %c0_i32, %c0_i32_0, %c0_i32_1 : i32, i32, i32
  }
  func.func @transform_5(%arg0: i32, %arg1: i32) -> (i32, i32) {
    %c0_i32 = arith.constant 0 : i32
    %c0_i32_0 = arith.constant 0 : i32
    %c0_i32_1 = arith.constant 0 : i32
    return %c0_i32, %c0_i32_0 : i32, i32
  }
  func.func @transform_6(%arg0: i32, %arg1: i32) -> (i32, i32, i32, i32) {
    %c0_i32 = arith.constant 0 : i32
    %c0_i32_0 = arith.constant 0 : i32
    %c0_i32_1 = arith.constant 0 : i32
    return %arg0, %arg1, %c0_i32, %c0_i32_0 : i32, i32, i32, i32
  }
  func.func @transform_7(%arg0: i32, %arg1: i32) -> (i32, i32) {
    %c0_i32 = arith.constant 0 : i32
    %c0_i32_0 = arith.constant 0 : i32
    %c0_i32_1 = arith.constant 0 : i32
    return %c0_i32, %c0_i32_0 : i32, i32
  }
  func.func @transform_8(%arg0: i32, %arg1: i32) -> (i32, i32) {
    %c0_i32 = arith.constant 0 : i32
    %c0_i32_0 = arith.constant 0 : i32
    %c0_i32_1 = arith.constant 0 : i32
    return %c0_i32, %c0_i32_0 : i32, i32
  }
  func.func @transform_9(%arg0: i32, %arg1: i32) -> (i32, i32, i32, i32) {
    %c0_i32 = arith.constant 0 : i32
    %c0_i32_0 = arith.constant 0 : i32
    %c0_i32_1 = arith.constant 0 : i32
    return %arg0, %arg1, %c0_i32, %c0_i32_0 : i32, i32, i32, i32
  }
}

</mosaic_0001>

<llo_original>
// kernel: squeeze.4
$region0: #{squeeze.4}
  %s0 = inlined_call_operand.vmem [shape: f32[2,8], index: 0, kind: input, shape index: {}]
  %s1 = inlined_call_operand.vmem [shape: f32[2,2,4], index: 1, kind: output, shape index: {}]
  $region1: #{squeeze.4} parent=0
    #allocation0 [shape = 'u8[8192]{0}', space=vmem, size = 0x2000, scoped, tag = 'scoped mem for output reshape']
    #allocation1 [shape = 'u8[4096]{0}', space=vmem, size = 0x1000, scoped, tag = 'scoped mem for input reshape']
    %s3 = sshllo.u32 0, 2
    %v4 = vld [vmem:[%s0] sm:%s3]
    %5 = vst [vmem:[#allocation1] sm:%s3] %v4
    %v6 = vld [vmem:[#allocation1] sm:$0x3]
    %vm7 = vcmask 31744
    %8 = vst.msk [vmem:[#allocation0] ss:$8 sm:$0x3] %vm7, %v6
    %v9 = vld [vmem:[#allocation1] sm:$0x3]
    %10 = vrot.lane.b32.xlu0 %v9, 124
    %v11 = vpop.permute.xlu0 %10
    %vm12 = vcmask 31744
    %s13 = scalar_lea.vmem [#allocation0], 1
    %14 = vst.msk [vmem:[%s13] ss:$8 sm:$0x3] %vm12, %v11
    %s16 = sshllo.u32 0, 2
    %v18 = vld [vmem:[#allocation0] sm:%s16]
    %s19 = sshllo.u32 0, 2
    %20 = vst [vmem:[%s1] sm:%s19] %v18
    %s21 = scalar_lea.vmem [#allocation0], 8
    %v22 = vld [vmem:[%s21] sm:%s16]
    %s23 = sshllo.u32 0, 2
    %s24 = scalar_lea.vmem %s1, 2
    %25 = vst [vmem:[%s24] sm:%s23] %v22

// kernel: resnet_encoder_block_pallas.3
$region0: #{resnet_encoder_block_pallas.3}
  #allocation0 [shape = 'u32[]', space=smem, size = 0x4, offset = 0x4, fixed_abs, tag = 'smem constant byte address 0x4 - core index']
  #allocation1 [shape = 'u32[144,128]{1,0:T(1,128)}', space=vmem, size = 0x12000, scoped, tag = 'internal scratch']
  %s0 = inlined_call_operand.vmem [shape: f32[2,16,16,8], index: 0, kind: input, shape index: {}, may-alias: {0,1,2}]
  %s1 = inlined_call_operand.vmem [shape: f32[2,16,16,8], index: 1, kind: input, shape index: {}, may-alias: {0,1,2}]
  %s2 = inlined_call_operand.vmem [shape: f32[2,16,16,8], index: 2, kind: input, shape index: {}, may-alias: {0,1,2}]
  %s3 = inlined_call_operand.vmem [shape: f32[2,2,8], index: 3, kind: input, shape index: {}]
  %s4 = inlined_call_operand.vmem [shape: f32[9,8,8], index: 4, kind: input, shape index: {}]
  %s5 = inlined_call_operand.vmem [shape: f32[1,8], index: 5, kind: input, shape index: {}]
  %s6 = inlined_call_operand.vmem [shape: f32[2,16,16,4], index: 6, kind: input, shape index: {}]
  %s7 = inlined_call_operand.vmem [shape: f32[4,8], index: 7, kind: input, shape index: {}]
  %s8 = inlined_call_operand.vmem [shape: f32[1,8], index: 8, kind: input, shape index: {}]
  %s9 = inlined_call_operand.vmem [shape: f32[2,16,16,8], index: 9, kind: output, shape index: {}]
  %s10 = sld [smem:[#allocation0]]
  $region69: #{resnet_encoder_block_pallas.3} parent=0
    _
  %s12 = ssub.s32 1, %s10
  %s13 = scalar_select 0, %s12, %s10
  loop: start=0, step=1, limit=6
  $region2: #{resnet_encoder_block_pallas.3} parent=0 // loop_pre_header
    _
  $region3: #{resnet_encoder_block_pallas.3} parent=0 // loop_header
    %s15 = sphi 0, %s19
    %p16 = scmp.ge.s32.totalorder %s15, 6
    %s22 = sphi 0, %s34
    %s23 = sphi 0, %s30
    %s24 = sphi 0, %s22
    %s25 = sphi 0, %s23
    %s26 = sphi 0, %s24
    %s27 = sphi 0, %s25
    %s39 = sphi 0, %s41
    %s42 = sphi 0, %s39
    %s43 = sphi 0, %s42
    %s59 = sphi 0, %s43
    %s75 = sphi 0, %s77
    %s78 = sphi 0, %s75
    %s79 = sphi 0, %s78
    %s95 = sphi 0, %s79
    %s111 = sphi 0, %s113
    %s114 = sphi 0, %s111
    %s115 = sphi 0, %s114
    %s131 = sphi 0, %s115
    %s137 = sphi 0, %s139
    %s140 = sphi 0, %s137
    %s141 = sphi 0, %s140
    %s157 = sphi 0, %s141
    %s161 = sphi 0, %s161
    %s163 = sphi 0, %s161
    %s164 = sphi 0, %s163
    %s178 = sphi 0, %s164
    %s182 = sphi 0, %s182
    %s184 = sphi 0, %s182
    %s185 = sphi 0, %s184
    %s199 = sphi 0, %s185
    %s207 = sphi 0, %s209
    %s210 = sphi 0, %s207
    %s211 = sphi 0, %s210
    %s227 = sphi 0, %s211
    %s231 = sphi 0, %s231
    %s233 = sphi 0, %s231
    %s234 = sphi 0, %s233
    %s248 = sphi 0, %s234
    %s252 = sphi 0, %s252
    %s254 = sphi 0, %s252
    %s255 = sphi 0, %s254
    %s269 = sphi 0, %s255
    %s277 = sphi 0, %s279
    %s280 = sphi 0, %s277
    %s281 = sphi 0, %s280
    %s297 = sphi 0, %s281
  $region4: #{resnet_encoder_block_pallas.3} parent=0 // loop_header_branch
    %18 = sbr.rel (%p16) target = $region8
  $region5: #{resnet_encoder_block_pallas.3} parent=0 // loop_body
    %s20 = ssub.s32 %s15, 1
    %s21 = ssub.s32 %s15, 2
    %s28 = sadd.s32 1, %s23
    %p29 = scmp.ge.s32.totalorder %s28, 2
    %s30 = scalar_select %p29, 0, %s28
    %s31 = sadd.s32 1, %s22
    %s32 = scalar_select %p29, %s31, %s22
    %p33 = scmp.ge.s32.totalorder %s32, 2
    %s34 = scalar_select %p33, 0, %s32
    %s35 = ssub.s32 %s22, %s34
    %s36 = ssub.s32 %s23, %s30
    %s37 = sor.u32 %s35, %s36
    %p38 = scmp.eq.s32.totalorder %s37, 0
    %s40 = sadd.s32 %s39, 1
    %s41 = scalar_select %p38, %s39, %s40
    %p44 = pneg %p38
    %p45 = scmp.eq.s32.totalorder %s15, 3
    %p46 = por %p44, %p45
    %p47 = scmp.ne.s32.totalorder %s39, %s42
    %p48 = scmp.eq.s32.totalorder %s15, 0
    %p49 = por %p47, %p48
    %p50 = scmp.ne.s32.totalorder %s39, %s42
    %p51 = scmp.eq.s32.totalorder %s20, 3
    %p52 = por %p50, %p51
    %p53 = scmp.ne.s32.totalorder %s42, %s43
    %p54 = scmp.eq.s32.totalorder %s20, 0
    %p55 = por %p53, %p54
    %p56 = scmp.ne.s32.totalorder %s42, %s43
    %p57 = scmp.eq.s32.totalorder %s21, 3
    %p58 = por %p56, %p57
    %p60 = scmp.ne.s32.totalorder %s43, %s59
    %p61 = scmp.eq.s32.totalorder %s21, 0
    %p62 = por %p60, %p61
    %s63 = smul.u32 %s23, 8
    %s64 = ssub.s32 %s63, 1
    %p65 = scmp.gt.s32.totalorder %s64, 0
    %s66 = scalar_select %p65, %s64, 0
    %s67 = smul.u32 %s30, 8
    %s68 = ssub.s32 %s67, 1
    %p69 = scmp.gt.s32.totalorder %s68, 0
    %s70 = scalar_select %p69, %s68, 0
    %s71 = ssub.s32 %s22, %s34
    %s72 = ssub.s32 %s66, %s70
    %s73 = sor.u32 %s71, %s72
    %p74 = scmp.eq.s32.totalorder %s73, 0
    %s76 = sadd.s32 %s75, 1
    %s77 = scalar_select %p74, %s75, %s76
    %p80 = pneg %p74
    %p81 = scmp.eq.s32.totalorder %s15, 3
    %p82 = por %p80, %p81
    %p83 = scmp.ne.s32.totalorder %s75, %s78
    %p84 = scmp.eq.s32.totalorder %s15, 0
    %p85 = por %p83, %p84
    %p86 = scmp.ne.s32.totalorder %s75, %s78
    %p87 = scmp.eq.s32.totalorder %s20, 3
    %p88 = por %p86, %p87
    %p89 = scmp.ne.s32.totalorder %s78, %s79
    %p90 = scmp.eq.s32.totalorder %s20, 0
    %p91 = por %p89, %p90
    %p92 = scmp.ne.s32.totalorder %s78, %s79
    %p93 = scmp.eq.s32.totalorder %s21, 3
    %p94 = por %p92, %p93
    %p96 = scmp.ne.s32.totalorder %s79, %s95
    %p97 = scmp.eq.s32.totalorder %s21, 0
    %p98 = por %p96, %p97
    %s99 = smul.u32 %s23, 8
    %s100 = sadd.s32 %s99, 8
    %p101 = scmp.lt.s32.totalorder %s100, 15
    %s102 = scalar_select %p101, %s100, 15
    %s103 = smul.u32 %s30, 8
    %s104 = sadd.s32 %s103, 8
    %p105 = scmp.lt.s32.totalorder %s104, 15
    %s106 = scalar_select %p105, %s104, 15
    %s107 = ssub.s32 %s22, %s34
    %s108 = ssub.s32 %s102, %s106
    %s109 = sor.u32 %s107, %s108
    %p110 = scmp.eq.s32.totalorder %s109, 0
    %s112 = sadd.s32 %s111, 1
    %s113 = scalar_select %p110, %s111, %s112
    %p116 = pneg %p110
    %p117 = scmp.eq.s32.totalorder %s15, 3
    %p118 = por %p116, %p117
    %p119 = scmp.ne.s32.totalorder %s111, %s114
    %p120 = scmp.eq.s32.totalorder %s15, 0
    %p121 = por %p119, %p120
    %p122 = scmp.ne.s32.totalorder %s111, %s114
    %p123 = scmp.eq.s32.totalorder %s20, 3
    %p124 = por %p122, %p123
    %p125 = scmp.ne.s32.totalorder %s114, %s115
    %p126 = scmp.eq.s32.totalorder %s20, 0
    %p127 = por %p125, %p126
    %p128 = scmp.ne.s32.totalorder %s114, %s115
    %p129 = scmp.eq.s32.totalorder %s21, 3
    %p130 = por %p128, %p129
    %p132 = scmp.ne.s32.totalorder %s115, %s131
    %p133 = scmp.eq.s32.totalorder %s21, 0
    %p134 = por %p132, %p133
    %s135 = ssub.s32 %s22, %s34
    %p136 = scmp.eq.s32.totalorder %s135, 0
    %s138 = sadd.s32 %s137, 1
    %s139 = scalar_select %p136, %s137, %s138
    %p142 = pneg %p136
    %p143 = scmp.eq.s32.totalorder %s15, 3
    %p144 = por %p142, %p143
    %p145 = scmp.ne.s32.totalorder %s137, %s140
    %p146 = scmp.eq.s32.totalorder %s15, 0
    %p147 = por %p145, %p146
    %p148 = scmp.ne.s32.totalorder %s137, %s140
    %p149 = scmp.eq.s32.totalorder %s20, 3
    %p150 = por %p148, %p149
    %p151 = scmp.ne.s32.totalorder %s140, %s141
    %p152 = scmp.eq.s32.totalorder %s20, 0
    %p153 = por %p151, %p152
    %p154 = scmp.ne.s32.totalorder %s140, %s141
    %p155 = scmp.eq.s32.totalorder %s21, 3
    %p156 = por %p154, %p155
    %p158 = scmp.ne.s32.totalorder %s141, %s157
    %p159 = scmp.eq.s32.totalorder %s21, 0
    %p160 = por %p158, %p159
    %s162 = sadd.s32 %s161, 1
    %p165 = scmp.eq.s32.totalorder %s15, 3
    %p166 = scmp.ne.s32.totalorder %s161, %s163
    %p167 = scmp.eq.s32.totalorder %s15, 0
    %p168 = por %p166, %p167
    %p169 = scmp.ne.s32.totalorder %s161, %s163
    %p170 = scmp.eq.s32.totalorder %s20, 3
    %p171 = por %p169, %p170
    %p172 = scmp.ne.s32.totalorder %s163, %s164
    %p173 = scmp.eq.s32.totalorder %s20, 0
    %p174 = por %p172, %p173
    %p175 = scmp.ne.s32.totalorder %s163, %s164
    %p176 = scmp.eq.s32.totalorder %s21, 3
    %p177 = por %p175, %p176
    %p179 = scmp.ne.s32.totalorder %s164, %s178
    %p180 = scmp.eq.s32.totalorder %s21, 0
    %p181 = por %p179, %p180
    %s183 = sadd.s32 %s182, 1
    %p186 = scmp.eq.s32.totalorder %s15, 3
    %p187 = scmp.ne.s32.totalorder %s182, %s184
    %p188 = scmp.eq.s32.totalorder %s15, 0
    %p189 = por %p187, %p188
    %p190 = scmp.ne.s32.totalorder %s182, %s184
    %p191 = scmp.eq.s32.totalorder %s20, 3
    %p192 = por %p190, %p191
    %p193 = scmp.ne.s32.totalorder %s184, %s185
    %p194 = scmp.eq.s32.totalorder %s20, 0
    %p195 = por %p193, %p194
    %p196 = scmp.ne.s32.totalorder %s184, %s185
    %p197 = scmp.eq.s32.totalorder %s21, 3
    %p198 = por %p196, %p197
    %p200 = scmp.ne.s32.totalorder %s185, %s199
    %p201 = scmp.eq.s32.totalorder %s21, 0
    %p202 = por %p200, %p201
    %s203 = ssub.s32 %s22, %s34
    %s204 = ssub.s32 %s23, %s30
    %s205 = sor.u32 %s203, %s204
    %p206 = scmp.eq.s32.totalorder %s205, 0
    %s208 = sadd.s32 %s207, 1
    %s209 = scalar_select %p206, %s207, %s208
    %p212 = pneg %p206
    %p213 = scmp.eq.s32.totalorder %s15, 3
    %p214 = por %p212, %p213
    %p215 = scmp.ne.s32.totalorder %s207, %s210
    %p216 = scmp.eq.s32.totalorder %s15, 0
    %p217 = por %p215, %p216
    %p218 = scmp.ne.s32.totalorder %s207, %s210
    %p219 = scmp.eq.s32.totalorder %s20, 3
    %p220 = por %p218, %p219
    %p221 = scmp.ne.s32.totalorder %s210, %s211
    %p222 = scmp.eq.s32.totalorder %s20, 0
    %p223 = por %p221, %p222
    %p224 = scmp.ne.s32.totalorder %s210, %s211
    %p225 = scmp.eq.s32.totalorder %s21, 3
    %p226 = por %p224, %p225
    %p228 = scmp.ne.s32.totalorder %s211, %s227
    %p229 = scmp.eq.s32.totalorder %s21, 0
    %p230 = por %p228, %p229
    %s232 = sadd.s32 %s231, 1
    %p235 = scmp.eq.s32.totalorder %s15, 3
    %p236 = scmp.ne.s32.totalorder %s231, %s233
    %p237 = scmp.eq.s32.totalorder %s15, 0
    %p238 = por %p236, %p237
    %p239 = scmp.ne.s32.totalorder %s231, %s233
    %p240 = scmp.eq.s32.totalorder %s20, 3
    %p241 = por %p239, %p240
    %p242 = scmp.ne.s32.totalorder %s233, %s234
    %p243 = scmp.eq.s32.totalorder %s20, 0
    %p244 = por %p242, %p243
    %p245 = scmp.ne.s32.totalorder %s233, %s234
    %p246 = scmp.eq.s32.totalorder %s21, 3
    %p247 = por %p245, %p246
    %p249 = scmp.ne.s32.totalorder %s234, %s248
    %p250 = scmp.eq.s32.totalorder %s21, 0
    %p251 = por %p249, %p250
    %s253 = sadd.s32 %s252, 1
    %p256 = scmp.eq.s32.totalorder %s15, 3
    %p257 = scmp.ne.s32.totalorder %s252, %s254
    %p258 = scmp.eq.s32.totalorder %s15, 0
    %p259 = por %p257, %p258
    %p260 = scmp.ne.s32.totalorder %s252, %s254
    %p261 = scmp.eq.s32.totalorder %s20, 3
    %p262 = por %p260, %p261
    %p263 = scmp.ne.s32.totalorder %s254, %s255
    %p264 = scmp.eq.s32.totalorder %s20, 0
    %p265 = por %p263, %p264
    %p266 = scmp.ne.s32.totalorder %s254, %s255
    %p267 = scmp.eq.s32.totalorder %s21, 3
    %p268 = por %p266, %p267
    %p270 = scmp.ne.s32.totalorder %s255, %s269
    %p271 = scmp.eq.s32.totalorder %s21, 0
    %p272 = por %p270, %p271
    %s273 = ssub.s32 %s22, %s34
    %s274 = ssub.s32 %s23, %s30
    %s275 = sor.u32 %s273, %s274
    %p276 = scmp.eq.s32.totalorder %s275, 0
    %s278 = sadd.s32 %s277, 1
    %s279 = scalar_select %p276, %s277, %s278
    %p282 = pneg %p276
    %p283 = scmp.eq.s32.totalorder %s15, 3
    %p284 = por %p282, %p283
    %p285 = scmp.ne.s32.totalorder %s277, %s280
    %p286 = scmp.eq.s32.totalorder %s15, 0
    %p287 = por %p285, %p286
    %p288 = scmp.ne.s32.totalorder %s277, %s280
    %p289 = scmp.eq.s32.totalorder %s20, 3
    %p290 = por %p288, %p289
    %p291 = scmp.ne.s32.totalorder %s280, %s281
    %p292 = scmp.eq.s32.totalorder %s20, 0
    %p293 = por %p291, %p292
    %p294 = scmp.ne.s32.totalorder %s280, %s281
    %p295 = scmp.eq.s32.totalorder %s21, 3
    %p296 = por %p294, %p295
    %p298 = scmp.ne.s32.totalorder %s281, %s297
    %p299 = scmp.eq.s32.totalorder %s21, 0
    %p300 = por %p298, %p299
    %p301 = scmp.le.s32.totalorder 1, %s15
    %p302 = scmp.lt.s32.totalorder %s15, 5
    %p303 = pnand %p301, %p302
    %p304 = pneg %p303
    // Predicated region
    $region9: #{resnet_encoder_block_pallas.3} parent=5 // pred_check
      _
    $region10: #{resnet_encoder_block_pallas.3} parent=5 // pred_check_branch
      %306 = sbr.rel (%p303) target = $region12
    $region11: #{resnet_encoder_block_pallas.3} parent=5 // pred_region
      %s307 = ssub.s32 %s15, 1
      // Predicated region
      $region13: #{resnet_encoder_block_pallas.3} parent=11 // pred_check
        %p308 = pneg %p174
      $region14: #{resnet_encoder_block_pallas.3} parent=11 // pred_check_branch
        %310 = sbr.rel (%p308) target = $region16
      $region15: #{resnet_encoder_block_pallas.3} parent=11 // pred_region
        _
      $region16: #{resnet_encoder_block_pallas.3} parent=11 // pred_fallthru
        _
      // Predicated region
      $region17: #{resnet_encoder_block_pallas.3} parent=11 // pred_check
        %p311 = pneg %p195
      $region18: #{resnet_encoder_block_pallas.3} parent=11 // pred_check_branch
        %313 = sbr.rel (%p311) target = $region20
      $region19: #{resnet_encoder_block_pallas.3} parent=11 // pred_region
        _
      $region20: #{resnet_encoder_block_pallas.3} parent=11 // pred_fallthru
        _
      // Predicated region
      $region21: #{resnet_encoder_block_pallas.3} parent=11 // pred_check
        %p314 = pneg %p244
      $region22: #{resnet_encoder_block_pallas.3} parent=11 // pred_check_branch
        %316 = sbr.rel (%p314) target = $region24
      $region23: #{resnet_encoder_block_pallas.3} parent=11 // pred_region
        _
      $region24: #{resnet_encoder_block_pallas.3} parent=11 // pred_fallthru
        _
      // Predicated region
      $region25: #{resnet_encoder_block_pallas.3} parent=11 // pred_check
        %p317 = pneg %p265
      $region26: #{resnet_encoder_block_pallas.3} parent=11 // pred_check_branch
        %319 = sbr.rel (%p317) target = $region28
      $region27: #{resnet_encoder_block_pallas.3} parent=11 // pred_region
        _
      $region28: #{resnet_encoder_block_pallas.3} parent=11 // pred_fallthru
        _
    $region12: #{resnet_encoder_block_pallas.3} parent=5 // pred_fallthru
      _
    %p320 = scmp.lt.s32.totalorder %s15, 4
    // Predicated region
    $region29: #{resnet_encoder_block_pallas.3} parent=5 // pred_check
      %p321 = pneg %p320
    $region30: #{resnet_encoder_block_pallas.3} parent=5 // pred_check_branch
      %323 = sbr.rel (%p321) target = $region32
    $region31: #{resnet_encoder_block_pallas.3} parent=5 // pred_region
      // Predicated region
      $region33: #{resnet_encoder_block_pallas.3} parent=31 // pred_check
        %p324 = pneg %p49
      $region34: #{resnet_encoder_block_pallas.3} parent=31 // pred_check_branch
        %326 = sbr.rel (%p324) target = $region36
      $region35: #{resnet_encoder_block_pallas.3} parent=31 // pred_region
        %s327 = smul.u32 8, %s23
        %p328 = scmp.lt.s32.totalorder %s22, 1
        %s329 = scalar_select %p328, %s22, 1
        %p330 = scmp.lt.s32.totalorder %s327, 15
        %s331 = scalar_select %p330, %s327, 15
        %s332 = smul.addr %s331, 2
        %s333 = smul.addr %s329, 32
        %s334 = sadd.s32 %s332, %s333
        %s335 = smul.addr %s334, 8
        %s336 = scalar_lea.vmem %s0, %s335
        %s337 = smul.u32 8, %s23
      $region36: #{resnet_encoder_block_pallas.3} parent=31 // pred_fallthru
        _
      // Predicated region
      $region37: #{resnet_encoder_block_pallas.3} parent=31 // pred_check
        %p338 = pneg %p85
      $region38: #{resnet_encoder_block_pallas.3} parent=31 // pred_check_branch
        %340 = sbr.rel (%p338) target = $region40
      $region39: #{resnet_encoder_block_pallas.3} parent=31 // pred_region
        %s341 = smul.u32 %s23, 8
        %s342 = ssub.s32 %s341, 1
        %p343 = scmp.gt.s32.totalorder %s342, 0
        %s344 = scalar_select %p343, %s342, 0
        %p345 = scmp.lt.s32.totalorder %s22, 1
        %s346 = scalar_select %p345, %s22, 1
        %p347 = scmp.lt.s32.totalorder %s344, 15
        %s348 = scalar_select %p347, %s344, 15
        %s349 = smul.addr %s348, 2
        %s350 = smul.addr %s346, 32
        %s351 = sadd.s32 %s349, %s350
        %s352 = smul.addr %s351, 8
        %s353 = scalar_lea.vmem %s1, %s352
        %s354 = smul.u32 %s23, 8
        %s355 = ssub.s32 %s354, 1
        %p356 = scmp.gt.s32.totalorder %s355, 0
        %s357 = scalar_select %p356, %s355, 0
      $region40: #{resnet_encoder_block_pallas.3} parent=31 // pred_fallthru
        _
      // Predicated region
      $region41: #{resnet_encoder_block_pallas.3} parent=31 // pred_check
        %p358 = pneg %p121
      $region42: #{resnet_encoder_block_pallas.3} parent=31 // pred_check_branch
        %360 = sbr.rel (%p358) target = $region44
      $region43: #{resnet_encoder_block_pallas.3} parent=31 // pred_region
        %s361 = smul.u32 %s23, 8
        %s362 = sadd.s32 %s361, 8
        %p363 = scmp.lt.s32.totalorder %s362, 15
        %s364 = scalar_select %p363, %s362, 15
        %p365 = scmp.lt.s32.totalorder %s22, 1
        %s366 = scalar_select %p365, %s22, 1
        %p367 = scmp.lt.s32.totalorder %s364, 15
        %s368 = scalar_select %p367, %s364, 15
        %s369 = smul.addr %s368, 2
        %s370 = smul.addr %s366, 32
        %s371 = sadd.s32 %s369, %s370
        %s372 = smul.addr %s371, 8
        %s373 = scalar_lea.vmem %s2, %s372
        %s374 = smul.u32 %s23, 8
        %s375 = sadd.s32 %s374, 8
        %p376 = scmp.lt.s32.totalorder %s375, 15
        %s377 = scalar_select %p376, %s375, 15
      $region44: #{resnet_encoder_block_pallas.3} parent=31 // pred_fallthru
        _
      // Predicated region
      $region45: #{resnet_encoder_block_pallas.3} parent=31 // pred_check
        %p378 = pneg %p147
      $region46: #{resnet_encoder_block_pallas.3} parent=31 // pred_check_branch
        %380 = sbr.rel (%p378) target = $region48
      $region47: #{resnet_encoder_block_pallas.3} parent=31 // pred_region
        %p381 = scmp.lt.s32.totalorder %s22, 1
        %s382 = scalar_select %p381, %s22, 1
        %s383 = smul.addr %s382, 2
        %s384 = scalar_lea.vmem %s3, %s383
      $region48: #{resnet_encoder_block_pallas.3} parent=31 // pred_fallthru
        _
      // Predicated region
      $region49: #{resnet_encoder_block_pallas.3} parent=31 // pred_check
        %p385 = pneg %p217
      $region50: #{resnet_encoder_block_pallas.3} parent=31 // pred_check_branch
        %387 = sbr.rel (%p385) target = $region52
      $region51: #{resnet_encoder_block_pallas.3} parent=31 // pred_region
        %s388 = smul.u32 8, %s23
        %p389 = scmp.lt.s32.totalorder %s22, 1
        %s390 = scalar_select %p389, %s22, 1
        %p391 = scmp.lt.s32.totalorder %s388, 15
        %s392 = scalar_select %p391, %s388, 15
        %s393 = smul.addr %s392, 2
        %s394 = smul.addr %s390, 32
        %s395 = sadd.s32 %s393, %s394
        %s396 = smul.addr %s395, 8
        %s397 = scalar_lea.vmem %s6, %s396
        %s398 = smul.u32 8, %s23
      $region52: #{resnet_encoder_block_pallas.3} parent=31 // pred_fallthru
        _
    $region32: #{resnet_encoder_block_pallas.3} parent=5 // pred_fallthru
      _
    %p399 = scmp.le.s32.totalorder 1, %s15
    %p400 = scmp.lt.s32.totalorder %s15, 5
    %p401 = pnand %p399, %p400
    %p402 = pneg %p401
    // Predicated region
    $region53: #{resnet_encoder_block_pallas.3} parent=5 // pred_check
      _
    $region54: #{resnet_encoder_block_pallas.3} parent=5 // pred_check_branch
      %404 = sbr.rel (%p401) target = $region56
    $region55: #{resnet_encoder_block_pallas.3} parent=5 // pred_region
      %s405 = ssub.s32 %s15, 1
      %s406 = smul.u32 8, %s25
      %p407 = scmp.lt.s32.totalorder %s24, 1
      %s408 = scalar_select %p407, %s24, 1
      %p409 = scmp.lt.s32.totalorder %s406, 15
      %s410 = scalar_select %p409, %s406, 15
      %s411 = smul.addr %s410, 2
      %s412 = smul.addr %s408, 32
      %s413 = sadd.s32 %s411, %s412
      %s414 = smul.addr %s413, 8
      %s415 = scalar_lea.vmem %s0, %s414
      %p416 = pneg %p55
      %p417 = pneg %p52
      %s418 = smul.u32 %s25, 8
      %s419 = ssub.s32 %s418, 1
      %p420 = scmp.gt.s32.totalorder %s419, 0
      %s421 = scalar_select %p420, %s419, 0
      %p422 = scmp.lt.s32.totalorder %s24, 1
      %s423 = scalar_select %p422, %s24, 1
      %p424 = scmp.lt.s32.totalorder %s421, 15
      %s425 = scalar_select %p424, %s421, 15
      %s426 = smul.addr %s425, 2
      %s427 = smul.addr %s423, 32
      %s428 = sadd.s32 %s426, %s427
      %s429 = smul.addr %s428, 8
      %s430 = scalar_lea.vmem %s1, %s429
      %p431 = pneg %p91
      %p432 = pneg %p88
      %s433 = smul.u32 %s25, 8
      %s434 = sadd.s32 %s433, 8
      %p435 = scmp.lt.s32.totalorder %s434, 15
      %s436 = scalar_select %p435, %s434, 15
      %p437 = scmp.lt.s32.totalorder %s24, 1
      %s438 = scalar_select %p437, %s24, 1
      %p439 = scmp.lt.s32.totalorder %s436, 15
      %s440 = scalar_select %p439, %s436, 15
      %s441 = smul.addr %s440, 2
      %s442 = smul.addr %s438, 32
      %s443 = sadd.s32 %s441, %s442
      %s444 = smul.addr %s443, 8
      %s445 = scalar_lea.vmem %s2, %s444
      %p446 = pneg %p127
      %p447 = pneg %p124
      %p448 = scmp.lt.s32.totalorder %s24, 1
      %s449 = scalar_select %p448, %s24, 1
      %s450 = smul.addr %s449, 2
      %s451 = scalar_lea.vmem %s3, %s450
      %p452 = pneg %p153
      %p453 = pneg %p150
      %p454 = pneg %p174
      %p455 = pneg %p171
      %p456 = pneg %p195
      %p457 = pneg %p192
      %s458 = smul.u32 8, %s25
      %p459 = scmp.lt.s32.totalorder %s24, 1
      %s460 = scalar_select %p459, %s24, 1
      %p461 = scmp.lt.s32.totalorder %s458, 15
      %s462 = scalar_select %p461, %s458, 15
      %s463 = smul.addr %s462, 2
      %s464 = smul.addr %s460, 32
      %s465 = sadd.s32 %s463, %s464
      %s466 = smul.addr %s465, 8
      %s467 = scalar_lea.vmem %s6, %s466
      %p468 = pneg %p223
      %p469 = pneg %p220
      %p470 = pneg %p244
      %p471 = pneg %p241
      %p472 = pneg %p265
      %p473 = pneg %p262
      %p474 = pneg %p293
      %p475 = pneg %p290
      %s476 = smul.u32 8, %s25
      %p477 = scmp.lt.s32.totalorder %s24, 1
      %s478 = scalar_select %p477, %s24, 1
      %p479 = scmp.lt.s32.totalorder %s476, 15
      %s480 = scalar_select %p479, %s476, 15
      %s481 = smul.addr %s480, 2
      %s482 = smul.addr %s478, 32
      %s483 = sadd.s32 %s481, %s482
      %s484 = smul.addr %s483, 8
      %s485 = scalar_lea.vmem %s9, %s484
      %s486 = smul.u32 8, %s25
      %p487 = scmp.lt.s32.totalorder %s24, 1
      %s488 = scalar_select %p487, %s24, 1
      %p489 = scmp.lt.s32.totalorder %s486, 15
      %s490 = scalar_select %p489, %s486, 15
      %s491 = smul.addr %s490, 2
      %s492 = smul.addr %s488, 32
      %s493 = sadd.s32 %s491, %s492
      %s494 = smul.addr %s493, 8
      %s495 = scalar_lea.vmem %s0, %s494
      %s496 = smul.u32 8, %s25
      %s497 = smul.u32 %s25, 8
      %s498 = ssub.s32 %s497, 1
      %p499 = scmp.gt.s32.totalorder %s498, 0
      %s500 = scalar_select %p499, %s498, 0
      %p501 = scmp.lt.s32.totalorder %s24, 1
      %s502 = scalar_select %p501, %s24, 1
      %p503 = scmp.lt.s32.totalorder %s500, 15
      %s504 = scalar_select %p503, %s500, 15
      %s505 = smul.addr %s504, 2
      %s506 = smul.addr %s502, 32
      %s507 = sadd.s32 %s505, %s506
      %s508 = smul.addr %s507, 8
      %s509 = scalar_lea.vmem %s1, %s508
      %s510 = smul.u32 %s25, 8
      %s511 = ssub.s32 %s510, 1
      %p512 = scmp.gt.s32.totalorder %s511, 0
      %s513 = scalar_select %p512, %s511, 0
      %s514 = smul.u32 %s25, 8
      %s515 = sadd.s32 %s514, 8
      %p516 = scmp.lt.s32.totalorder %s515, 15
      %s517 = scalar_select %p516, %s515, 15
      %p518 = scmp.lt.s32.totalorder %s24, 1
      %s519 = scalar_select %p518, %s24, 1
      %p520 = scmp.lt.s32.totalorder %s517, 15
      %s521 = scalar_select %p520, %s517, 15
      %s522 = smul.addr %s521, 2
      %s523 = smul.addr %s519, 32
      %s524 = sadd.s32 %s522, %s523
      %s525 = smul.addr %s524, 8
      %s526 = scalar_lea.vmem %s2, %s525
      %s527 = smul.u32 %s25, 8
      %s528 = sadd.s32 %s527, 8
      %p529 = scmp.lt.s32.totalorder %s528, 15
      %s530 = scalar_select %p529, %s528, 15
      %p531 = scmp.lt.s32.totalorder %s24, 1
      %s532 = scalar_select %p531, %s24, 1
      %s533 = smul.addr %s532, 2
      %s534 = scalar_lea.vmem %s3, %s533
      %s535 = smul.u32 8, %s25
      %p536 = scmp.lt.s32.totalorder %s24, 1
      %s537 = scalar_select %p536, %s24, 1
      %p538 = scmp.lt.s32.totalorder %s535, 15
      %s539 = scalar_select %p538, %s535, 15
      %s540 = smul.addr %s539, 2
      %s541 = smul.addr %s537, 32
      %s542 = sadd.s32 %s540, %s541
      %s543 = smul.addr %s542, 8
      %s544 = scalar_lea.vmem %s6, %s543
      %s545 = smul.u32 8, %s25
      %s546 = smul.u32 8, %s25
      %p547 = scmp.lt.s32.totalorder %s24, 1
      %s548 = scalar_select %p547, %s24, 1
      %p549 = scmp.lt.s32.totalorder %s546, 15
      %s550 = scalar_select %p549, %s546, 15
      %s551 = smul.addr %s550, 2
      %s552 = smul.addr %s548, 32
      %s553 = sadd.s32 %s551, %s552
      %s554 = smul.addr %s553, 8
      %s555 = scalar_lea.vmem %s9, %s554
      %s556 = smul.u32 8, %s25
      %s557 = smul.u32 %s25, 8
      %s558 = ssub.s32 %s557, 1
      %v559 = vld [vmem:[%s509] sm:$0xff]
      %v560 = vld [vmem:[%s509 + $0x8] sm:$0xff]
      %v561 = vld [vmem:[%s495] sm:$0xff]
      %v562 = vld [vmem:[%s495 + $0x8] sm:$0xff]
      %v563 = vld [vmem:[%s495 + $0x10] sm:$0xff]
      %v564 = vld [vmem:[%s495 + $0x18] sm:$0xff]
      %v565 = vld [vmem:[%s495 + $0x20] sm:$0xff]
      %v566 = vld [vmem:[%s495 + $0x28] sm:$0xff]
      %v567 = vld [vmem:[%s495 + $0x30] sm:$0xff]
      %v568 = vld [vmem:[%s495 + $0x38] sm:$0xff]
      %v569 = vld [vmem:[%s495 + $0x40] sm:$0xff]
      %v570 = vld [vmem:[%s495 + $0x48] sm:$0xff]
      %v571 = vld [vmem:[%s495 + $0x50] sm:$0xff]
      %v572 = vld [vmem:[%s495 + $0x58] sm:$0xff]
      %v573 = vld [vmem:[%s495 + $0x60] sm:$0xff]
      %v574 = vld [vmem:[%s495 + $0x68] sm:$0xff]
      %v575 = vld [vmem:[%s495 + $0x70] sm:$0xff]
      %v576 = vld [vmem:[%s495 + $0x78] sm:$0xff]
      %v577 = vld [vmem:[%s526] sm:$0xff]
      %v578 = vld [vmem:[%s526 + $0x8] sm:$0xff]
      %v579 = vld [vmem:[%s534] sm:$0x3]
      %v580 = vlaneseq
      %v581 = vshrl.u32 %v580, 7
      %v582 = vsub.s32 0, %v581
      %v583 = vrot.slane %v579, %v582
      %v584 = vmul.f32 %v559, %v583
      %v585 = vmul.f32 %v560, %v583
      %v586 = vmul.f32 %v561, %v583
      %v587 = vmul.f32 %v562, %v583
      %v588 = vmul.f32 %v563, %v583
      %v589 = vmul.f32 %v564, %v583
      %v590 = vmul.f32 %v565, %v583
      %v591 = vmul.f32 %v566, %v583
      %v592 = vmul.f32 %v567, %v583
      %v593 = vmul.f32 %v568, %v583
      %v594 = vmul.f32 %v569, %v583
      %v595 = vmul.f32 %v570, %v583
      %v596 = vmul.f32 %v571, %v583
      %v597 = vmul.f32 %v572, %v583
      %v598 = vmul.f32 %v573, %v583
      %v599 = vmul.f32 %v574, %v583
      %v600 = vmul.f32 %v575, %v583
      %v601 = vmul.f32 %v576, %v583
      %v602 = vmul.f32 %v577, %v583
      %v603 = vmul.f32 %v578, %v583
      %v604 = vlaneseq
      %v605 = vshrl.u32 %v604, 7
      %v606 = vsub.s32 1, %v605
      %v607 = vrot.slane %v579, %v606
      %v608 = vadd.f32 %v584, %v607
      %v609 = vadd.f32 %v585, %v607
      %v610 = vadd.f32 %v586, %v607
      %v611 = vadd.f32 %v587, %v607
      %v612 = vadd.f32 %v588, %v607
      %v613 = vadd.f32 %v589, %v607
      %v614 = vadd.f32 %v590, %v607
      %v615 = vadd.f32 %v591, %v607
      %v616 = vadd.f32 %v592, %v607
      %v617 = vadd.f32 %v593, %v607
      %v618 = vadd.f32 %v594, %v607
      %v619 = vadd.f32 %v595, %v607
      %v620 = vadd.f32 %v596, %v607
      %v621 = vadd.f32 %v597, %v607
      %v622 = vadd.f32 %v598, %v607
      %v623 = vadd.f32 %v599, %v607
      %v624 = vadd.f32 %v600, %v607
      %v625 = vadd.f32 %v601, %v607
      %v626 = vadd.f32 %v602, %v607
      %v627 = vadd.f32 %v603, %v607
      %v628 = vxor.u32 %v608, 2147483648
      %v629 = vxor.u32 %v609, 2147483648
      %v630 = vxor.u32 %v610, 2147483648
      %v631 = vxor.u32 %v611, 2147483648
      %v632 = vxor.u32 %v612, 2147483648
      %v633 = vxor.u32 %v613, 2147483648
      %v634 = vxor.u32 %v614, 2147483648
      %v635 = vxor.u32 %v615, 2147483648
      %v636 = vxor.u32 %v616, 2147483648
      %v637 = vxor.u32 %v617, 2147483648
      %v638 = vxor.u32 %v618, 2147483648
      %v639 = vxor.u32 %v619, 2147483648
      %v640 = vxor.u32 %v620, 2147483648
      %v641 = vxor.u32 %v621, 2147483648
      %v642 = vxor.u32 %v622, 2147483648
      %v643 = vxor.u32 %v623, 2147483648
      %v644 = vxor.u32 %v624, 2147483648
      %v645 = vxor.u32 %v625, 2147483648
      %v646 = vxor.u32 %v626, 2147483648
      %v647 = vxor.u32 %v627, 2147483648
      %v648 = vmul.f32 %v628, 1.442695
      %v649 = vpow.pop %v648
      %v650 = vmul.f32 %v629, 1.442695
      %v651 = vpow.pop %v650
      %v652 = vmul.f32 %v630, 1.442695
      %v653 = vpow.pop %v652
      %v654 = vmul.f32 %v631, 1.442695
      %v655 = vpow.pop %v654
      %v656 = vmul.f32 %v632, 1.442695
      %v657 = vpow.pop %v656
      %v658 = vmul.f32 %v633, 1.442695
      %v659 = vpow.pop %v658
      %v660 = vmul.f32 %v634, 1.442695
      %v661 = vpow.pop %v660
      %v662 = vmul.f32 %v635, 1.442695
      %v663 = vpow.pop %v662
      %v664 = vmul.f32 %v636, 1.442695
      %v665 = vpow.pop %v664
      %v666 = vmul.f32 %v637, 1.442695
      %v667 = vpow.pop %v666
      %v668 = vmul.f32 %v638, 1.442695
      %v669 = vpow.pop %v668
      %v670 = vmul.f32 %v639, 1.442695
      %v671 = vpow.pop %v670
      %v672 = vmul.f32 %v640, 1.442695
      %v673 = vpow.pop %v672
      %v674 = vmul.f32 %v641, 1.442695
      %v675 = vpow.pop %v674
      %v676 = vmul.f32 %v642, 1.442695
      %v677 = vpow.pop %v676
      %v678 = vmul.f32 %v643, 1.442695
      %v679 = vpow.pop %v678
      %v680 = vmul.f32 %v644, 1.442695
      %v681 = vpow.pop %v680
      %v682 = vmul.f32 %v645, 1.442695
      %v683 = vpow.pop %v682
      %v684 = vmul.f32 %v646, 1.442695
      %v685 = vpow.pop %v684
      %v686 = vmul.f32 %v647, 1.442695
      %v687 = vpow.pop %v686
      %v688 = vadd.f32 %v649, 1.0
      %v689 = vadd.f32 %v651, 1.0
      %v690 = vadd.f32 %v653, 1.0
      %v691 = vadd.f32 %v655, 1.0
      %v692 = vadd.f32 %v657, 1.0
      %v693 = vadd.f32 %v659, 1.0
      %v694 = vadd.f32 %v661, 1.0
      %v695 = vadd.f32 %v663, 1.0
      %v696 = vadd.f32 %v665, 1.0
      %v697 = vadd.f32 %v667, 1.0
      %v698 = vadd.f32 %v669, 1.0
      %v699 = vadd.f32 %v671, 1.0
      %v700 = vadd.f32 %v673, 1.0
      %v701 = vadd.f32 %v675, 1.0
      %v702 = vadd.f32 %v677, 1.0
      %v703 = vadd.f32 %v679, 1.0
      %v704 = vadd.f32 %v681, 1.0
      %v705 = vadd.f32 %v683, 1.0
      %v706 = vadd.f32 %v685, 1.0
      %v707 = vadd.f32 %v687, 1.0
      %v708 = vrcp.pop %v688
      %v709 = vmul.f32 1.0, %v708
      %v710 = vrcp.pop %v689
      %v711 = vmul.f32 1.0, %v710
      %v712 = vrcp.pop %v690
      %v713 = vmul.f32 1.0, %v712
      %v714 = vrcp.pop %v691
      %v715 = vmul.f32 1.0, %v714
      %v716 = vrcp.pop %v692
      %v717 = vmul.f32 1.0, %v716
      %v718 = vrcp.pop %v693
      %v719 = vmul.f32 1.0, %v718
      %v720 = vrcp.pop %v694
      %v721 = vmul.f32 1.0, %v720
      %v722 = vrcp.pop %v695
      %v723 = vmul.f32 1.0, %v722
      %v724 = vrcp.pop %v696
      %v725 = vmul.f32 1.0, %v724
      %v726 = vrcp.pop %v697
      %v727 = vmul.f32 1.0, %v726
      %v728 = vrcp.pop %v698
      %v729 = vmul.f32 1.0, %v728
      %v730 = vrcp.pop %v699
      %v731 = vmul.f32 1.0, %v730
      %v732 = vrcp.pop %v700
      %v733 = vmul.f32 1.0, %v732
      %v734 = vrcp.pop %v701
      %v735 = vmul.f32 1.0, %v734
      %v736 = vrcp.pop %v702
      %v737 = vmul.f32 1.0, %v736
      %v738 = vrcp.pop %v703
      %v739 = vmul.f32 1.0, %v738
      %v740 = vrcp.pop %v704
      %v741 = vmul.f32 1.0, %v740
      %v742 = vrcp.pop %v705
      %v743 = vmul.f32 1.0, %v742
      %v744 = vrcp.pop %v706
      %v745 = vmul.f32 1.0, %v744
      %v746 = vrcp.pop %v707
      %v747 = vmul.f32 1.0, %v746
      %v748 = vmul.f32 %v608, %v709
      %v749 = vmul.f32 %v609, %v711
      %v750 = vmul.f32 %v610, %v713
      %v751 = vmul.f32 %v611, %v715
      %v752 = vmul.f32 %v612, %v717
      %v753 = vmul.f32 %v613, %v719
      %v754 = vmul.f32 %v614, %v721
      %v755 = vmul.f32 %v615, %v723
      %v756 = vmul.f32 %v616, %v725
      %v757 = vmul.f32 %v617, %v727
      %v758 = vmul.f32 %v618, %v729
      %v759 = vmul.f32 %v619, %v731
      %v760 = vmul.f32 %v620, %v733
      %v761 = vmul.f32 %v621, %v735
      %v762 = vmul.f32 %v622, %v737
      %v763 = vmul.f32 %v623, %v739
      %v764 = vmul.f32 %v624, %v741
      %v765 = vmul.f32 %v625, %v743
      %v766 = vmul.f32 %v626, %v745
      %v767 = vmul.f32 %v627, %v747
      %v768 = vstv %s558
      %v769 = vadd.s32 %v768, 1
      %v770 = vadd.s32 %v768, 2
      %v771 = vadd.s32 %v768, 3
      %v772 = vadd.s32 %v768, 4
      %v773 = vadd.s32 %v768, 5
      %v774 = vadd.s32 %v768, 6
      %v775 = vadd.s32 %v768, 7
      %v776 = vadd.s32 %v768, 8
      %v777 = vadd.s32 %v768, 9
      %vm778 = vcmp.ge.s32.totalorder %v768, 0
      %vm779 = vcmp.ge.s32.totalorder %v769, 0
      %vm780 = vcmp.ge.s32.totalorder %v770, 0
      %vm781 = vcmp.ge.s32.totalorder %v771, 0
      %vm782 = vcmp.ge.s32.totalorder %v772, 0
      %vm783 = vcmp.ge.s32.totalorder %v773, 0
      %vm784 = vcmp.ge.s32.totalorder %v774, 0
      %vm785 = vcmp.ge.s32.totalorder %v775, 0
      %vm786 = vcmp.ge.s32.totalorder %v776, 0
      %vm787 = vcmp.ge.s32.totalorder %v777, 0
      %vm788 = vcmp.lt.s32.totalorder %v768, 16
      %vm789 = vcmp.lt.s32.totalorder %v769, 16
      %vm790 = vcmp.lt.s32.totalorder %v770, 16
      %vm791 = vcmp.lt.s32.totalorder %v771, 16
      %vm792 = vcmp.lt.s32.totalorder %v772, 16
      %vm793 = vcmp.lt.s32.totalorder %v773, 16
      %vm794 = vcmp.lt.s32.totalorder %v774, 16
      %vm795 = vcmp.lt.s32.totalorder %v775, 16
      %vm796 = vcmp.lt.s32.totalorder %v776, 16
      %vm797 = vcmp.lt.s32.totalorder %v777, 16
      %vm798 = vmand %vm778, %vm788
      %vm799 = vmand %vm779, %vm789
      %vm800 = vmand %vm780, %vm790
      %vm801 = vmand %vm781, %vm791
      %vm802 = vmand %vm782, %vm792
      %vm803 = vmand %vm783, %vm793
      %vm804 = vmand %vm784, %vm794
      %vm805 = vmand %vm785, %vm795
      %vm806 = vmand %vm786, %vm796
      %vm807 = vmand %vm787, %vm797
      %v808 = vsel %vm798, 1, 0
      %v809 = vsel %vm799, 1, 0
      %v810 = vsel %vm800, 1, 0
      %v811 = vsel %vm801, 1, 0
      %v812 = vsel %vm802, 1, 0
      %v813 = vsel %vm803, 1, 0
      %v814 = vsel %vm804, 1, 0
      %v815 = vsel %vm805, 1, 0
      %v816 = vsel %vm806, 1, 0
      %v817 = vsel %vm807, 1, 0
      %vm818 = vcmp.eq.s32.totalorder %v808, 1
      %vm819 = vcmp.eq.s32.totalorder %v809, 1
      %vm820 = vcmp.eq.s32.totalorder %v810, 1
      %vm821 = vcmp.eq.s32.totalorder %v811, 1
      %vm822 = vcmp.eq.s32.totalorder %v812, 1
      %vm823 = vcmp.eq.s32.totalorder %v813, 1
      %vm824 = vcmp.eq.s32.totalorder %v814, 1
      %vm825 = vcmp.eq.s32.totalorder %v815, 1
      %vm826 = vcmp.eq.s32.totalorder %v816, 1
      %vm827 = vcmp.eq.s32.totalorder %v817, 1
      %v828 = vsel %vm818, %v748, 0.0
      %v829 = vsel %vm818, %v749, 0.0
      %v830 = vsel %vm819, %v750, 0.0
      %v831 = vsel %vm819, %v751, 0.0
      %v832 = vsel %vm820, %v752, 0.0
      %v833 = vsel %vm820, %v753, 0.0
      %v834 = vsel %vm821, %v754, 0.0
      %v835 = vsel %vm821, %v755, 0.0
      %v836 = vsel %vm822, %v756, 0.0
      %v837 = vsel %vm822, %v757, 0.0
      %v838 = vsel %vm823, %v758, 0.0
      %v839 = vsel %vm823, %v759, 0.0
      %v840 = vsel %vm824, %v760, 0.0
      %v841 = vsel %vm824, %v761, 0.0
      %v842 = vsel %vm825, %v762, 0.0
      %v843 = vsel %vm825, %v763, 0.0
      %v844 = vsel %vm826, %v764, 0.0
      %v845 = vsel %vm826, %v765, 0.0
      %v846 = vsel %vm827, %v766, 0.0
      %v847 = vsel %vm827, %v767, 0.0
      %vm868 = vcmask 1040384
      %v869 = vrot.slane %v828, 7
      %v870 = vrot.slane %v829, 7
      %v871 = vsel %vm868, %v869, %v870
      %v872 = vrot.slane %v830, 7
      %v873 = vrot.slane %v831, 7
      %v874 = vsel %vm868, %v872, %v873
      %v875 = vrot.slane %v832, 7
      %v876 = vrot.slane %v833, 7
      %v877 = vsel %vm868, %v875, %v876
      %v878 = vrot.slane %v834, 7
      %v879 = vrot.slane %v835, 7
      %v880 = vsel %vm868, %v878, %v879
      %v881 = vrot.slane %v836, 7
      %v882 = vrot.slane %v837, 7
      %v883 = vsel %vm868, %v881, %v882
      %v884 = vrot.slane %v838, 7
      %v885 = vrot.slane %v839, 7
      %v886 = vsel %vm868, %v884, %v885
      %v887 = vrot.slane %v840, 7
      %v888 = vrot.slane %v841, 7
      %v889 = vsel %vm868, %v887, %v888
      %v890 = vrot.slane %v842, 7
      %v891 = vrot.slane %v843, 7
      %v892 = vsel %vm868, %v890, %v891
      %v893 = vrot.slane %v844, 7
      %v894 = vrot.slane %v845, 7
      %v895 = vsel %vm868, %v893, %v894
      %v896 = vrot.slane %v846, 7
      %v897 = vrot.slane %v847, 7
      %v898 = vsel %vm868, %v896, %v897
      %v919 = vsel %vm868, 0.0, %v869
      %v920 = vsel %vm868, 0.0, %v872
      %v921 = vsel %vm868, 0.0, %v875
      %v922 = vsel %vm868, 0.0, %v878
      %v923 = vsel %vm868, 0.0, %v881
      %v924 = vsel %vm868, 0.0, %v884
      %v925 = vsel %vm868, 0.0, %v887
      %v926 = vsel %vm868, 0.0, %v890
      %v927 = vsel %vm868, 0.0, %v893
      %v928 = vsel %vm868, 0.0, %v896
      %v929 = vsel %vm868, %v870, 0.0
      %v930 = vsel %vm868, %v873, 0.0
      %v931 = vsel %vm868, %v876, 0.0
      %v932 = vsel %vm868, %v879, 0.0
      %v933 = vsel %vm868, %v882, 0.0
      %v934 = vsel %vm868, %v885, 0.0
      %v935 = vsel %vm868, %v888, 0.0
      %v936 = vsel %vm868, %v891, 0.0
      %v937 = vsel %vm868, %v894, 0.0
      %v938 = vsel %vm868, %v897, 0.0
      %v939 = vld [vmem:[%s4] sm:$0xff]
      %vm956 = vcmask 1046528
      %v957 = vrot.slane %v919, 1
      %v958 = vrot.slane %v871, 1
      %v959 = vsel %vm956, %v957, %v958
      %v960 = vrot.slane %v929, 1
      %v961 = vsel %vm956, %v958, %v960
      %v962 = vrot.slane %v920, 1
      %v963 = vrot.slane %v874, 1
      %v964 = vsel %vm956, %v962, %v963
      %v965 = vrot.slane %v930, 1
      %v966 = vsel %vm956, %v963, %v965
      %v967 = vrot.slane %v921, 1
      %v968 = vrot.slane %v877, 1
      %v969 = vsel %vm956, %v967, %v968
      %v970 = vrot.slane %v931, 1
      %v971 = vsel %vm956, %v968, %v970
      %v972 = vrot.slane %v922, 1
      %v973 = vrot.slane %v880, 1
      %v974 = vsel %vm956, %v972, %v973
      %v975 = vrot.slane %v932, 1
      %v976 = vsel %vm956, %v973, %v975
      %v977 = vrot.slane %v923, 1
      %v978 = vrot.slane %v883, 1
      %v979 = vsel %vm956, %v977, %v978
      %v980 = vrot.slane %v933, 1
      %v981 = vsel %vm956, %v978, %v980
      %v982 = vrot.slane %v924, 1
      %v983 = vrot.slane %v886, 1
      %v984 = vsel %vm956, %v982, %v983
      %v985 = vrot.slane %v934, 1
      %v986 = vsel %vm956, %v983, %v985
      %v987 = vrot.slane %v925, 1
      %v988 = vrot.slane %v889, 1
      %v989 = vsel %vm956, %v987, %v988
      %v990 = vrot.slane %v935, 1
      %v991 = vsel %vm956, %v988, %v990
      %v992 = vrot.slane %v926, 1
      %v993 = vrot.slane %v892, 1
      %v994 = vsel %vm956, %v992, %v993
      %v995 = vrot.slane %v936, 1
      %v996 = vsel %vm956, %v993, %v995
      %s997 = scalar_lea.vmem %s4, 8
      %v998 = vld [vmem:[%s997] sm:$0xff]
      %vm999 = vcmask 64512
      %v1000 = vsel %vm999, %v959, 0
      %v1002 = vsel %vm999, %v961, 0
      %v1004 = vsel %vm999, %v964, 0
      %v1006 = vsel %vm999, %v966, 0
      %v1008 = vsel %vm999, %v969, 0
      %v1010 = vsel %vm999, %v971, 0
      %v1012 = vsel %vm999, %v974, 0
      %v1014 = vsel %vm999, %v976, 0
      %v1016 = vsel %vm999, %v979, 0
      %v1018 = vsel %vm999, %v981, 0
      %v1020 = vsel %vm999, %v984, 0
      %v1022 = vsel %vm999, %v986, 0
      %v1024 = vsel %vm999, %v989, 0
      %v1026 = vsel %vm999, %v991, 0
      %v1028 = vsel %vm999, %v994, 0
      %v1030 = vsel %vm999, %v996, 0
      %1032 = vmatprep.subr.mxu0 0.0
      %1033 = vmatpush1.msra.mxu0 %v998
      %1034 = vmatprep.subr.mxu0 0.0
      %1035 = vmatpush1.msra.mxu0 0.0
      %1036 = vmatprep.subr.mxu0 0.0
      %1037 = vmatpush1.msra.mxu0 0.0
      %1038 = vmatprep.subr.mxu0 0.0
      %1039 = vmatpush1.msra.mxu0 0.0
      %1040 = vmatprep.subr.mxu0 0.0
      %1041 = vmatpush1.msra.mxu0 0.0
      %1042 = vmatprep.subr.mxu0 0.0
      %1043 = vmatpush1.msra.mxu0 0.0
      %1044 = vmatprep.subr.mxu0 0.0
      %1045 = vmatpush1.msra.mxu0 0.0
      %1046 = vmatprep.subr.mxu0 0.0
      %1047 = vmatpush1.msra.mxu0 0.0
      %1048 = vmatprep.subr.mxu0 0.0
      %1049 = vmatpush1.msra.mxu0 0.0
      %1050 = vmatprep.subr.mxu0 0.0
      %1051 = vmatpush1.msra.mxu0 0.0
      %1052 = vmatprep.subr.mxu0 0.0
      %1053 = vmatpush1.msra.mxu0 0.0
      %1054 = vmatprep.subr.mxu0 0.0
      %1055 = vmatpush1.msra.mxu0 0.0
      %1056 = vmatprep.subr.mxu0 0.0
      %1057 = vmatpush1.msra.mxu0 0.0
      %1058 = vmatprep.subr.mxu0 0.0
      %1059 = vmatpush1.msra.mxu0 0.0
      %1060 = vmatprep.subr.mxu0 0.0
      %1061 = vmatpush1.msra.mxu0 0.0
      %1062 = vmatprep.subr.mxu0 0.0
      %1063 = vmatpush1.msra.mxu0 0.0
      %1064 = vmatprep.subr.mxu0 0.0
      %1065 = vmatpush1.msra.mxu0 0.0
      %1066 = vmatprep.subr.mxu0 0.0
      %1067 = vmatpush1.msra.mxu0 0.0
      %1068 = vmatprep.subr.mxu0 0.0
      %1069 = vmatpush1.msra.mxu0 0.0
      %1070 = vmatprep.subr.mxu0 0.0
      %1071 = vmatpush1.msra.mxu0 0.0
      %1072 = vmatprep.subr.mxu0 0.0
      %1073 = vmatpush1.msra.mxu0 0.0
      %1074 = vmatprep.subr.mxu0 0.0
      %1075 = vmatpush1.msra.mxu0 0.0
      %1076 = vmatprep.subr.mxu0 0.0
      %1077 = vmatpush1.msra.mxu0 0.0
      %1078 = vmatprep.subr.mxu0 0.0
      %1079 = vmatpush1.msra.mxu0 0.0
      %1080 = vmatprep.subr.mxu0 0.0
      %1081 = vmatpush1.msra.mxu0 0.0
      %1082 = vmatprep.subr.mxu0 0.0
      %1083 = vmatpush1.msra.mxu0 0.0
      %1084 = vmatprep.subr.mxu0 0.0
      %1085 = vmatpush1.msra.mxu0 0.0
      %1086 = vmatprep.subr.mxu0 0.0
      %1087 = vmatpush1.msra.mxu0 0.0
      %1088 = vmatprep.subr.mxu0 0.0
      %1089 = vmatpush1.msra.mxu0 0.0
      %1090 = vmatprep.subr.mxu0 0.0
      %1091 = vmatpush1.msra.mxu0 0.0
      %1092 = vmatprep.subr.mxu0 0.0
      %1093 = vmatpush1.msra.mxu0 0.0
      %1094 = vmatprep.subr.mxu0 0.0
      %1095 = vmatpush1.msra.mxu0 0.0
      %1096 = vmatprep.mubr.f32.mxu0 0.0
      %1097 = vmatmul.mubr.f32.gmra.mrb[0].mxu0 %v1000
      %v1098 = vpop.f32.mrb[0].mxu0
      %v1099 = vadd.f32 0.0, %v1098
      %v1100 = vpop.f32.mrb[0].mxu0
      %1101 = vmatprep.mubr.f32.mxu0 0.0
      %1102 = vmatmul.mubr.f32.gmra.mrb[0].mxu0 %v1002
      %v1103 = vpop.f32.mrb[0].mxu0
      %v1104 = vadd.f32 0.0, %v1103
      %v1105 = vpop.f32.mrb[0].mxu0
      %1106 = vmatprep.mubr.f32.mxu0 0.0
      %1107 = vmatmul.mubr.f32.gmra.mrb[0].mxu0 %v1004
      %v1108 = vpop.f32.mrb[0].mxu0
      %v1109 = vadd.f32 0.0, %v1108
      %v1110 = vpop.f32.mrb[0].mxu0
      %1111 = vmatprep.mubr.f32.mxu0 0.0
      %1112 = vmatmul.mubr.f32.gmra.mrb[0].mxu0 %v1006
      %v1113 = vpop.f32.mrb[0].mxu0
      %v1114 = vadd.f32 0.0, %v1113
      %v1115 = vpop.f32.mrb[0].mxu0
      %1116 = vmatprep.mubr.f32.mxu0 0.0
      %1117 = vmatmul.mubr.f32.gmra.mrb[0].mxu0 %v1008
      %v1118 = vpop.f32.mrb[0].mxu0
      %v1119 = vadd.f32 0.0, %v1118
      %v1120 = vpop.f32.mrb[0].mxu0
      %1121 = vmatprep.mubr.f32.mxu0 0.0
      %1122 = vmatmul.mubr.f32.gmra.mrb[0].mxu0 %v1010
      %v1123 = vpop.f32.mrb[0].mxu0
      %v1124 = vadd.f32 0.0, %v1123
      %v1125 = vpop.f32.mrb[0].mxu0
      %1126 = vmatprep.mubr.f32.mxu0 0.0
      %1127 = vmatmul.mubr.f32.gmra.mrb[0].mxu0 %v1012
      %v1128 = vpop.f32.mrb[0].mxu0
      %v1129 = vadd.f32 0.0, %v1128
      %v1130 = vpop.f32.mrb[0].mxu0
      %1131 = vmatprep.mubr.f32.mxu0 0.0
      %1132 = vmatmul.mubr.f32.gmra.mrb[0].mxu0 %v1014
      %v1133 = vpop.f32.mrb[0].mxu0
      %v1134 = vadd.f32 0.0, %v1133
      %v1135 = vpop.f32.mrb[0].mxu0
      %1136 = vmatprep.mubr.f32.mxu0 0.0
      %1137 = vmatmul.mubr.f32.gmra.mrb[0].mxu0 %v1016
      %v1138 = vpop.f32.mrb[0].mxu0
      %v1139 = vadd.f32 0.0, %v1138
      %v1140 = vpop.f32.mrb[0].mxu0
      %1141 = vmatprep.mubr.f32.mxu0 0.0
      %1142 = vmatmul.mubr.f32.gmra.mrb[0].mxu0 %v1018
      %v1143 = vpop.f32.mrb[0].mxu0
      %v1144 = vadd.f32 0.0, %v1143
      %v1145 = vpop.f32.mrb[0].mxu0
      %1146 = vmatprep.mubr.f32.mxu0 0.0
      %1147 = vmatmul.mubr.f32.gmra.mrb[0].mxu0 %v1020
      %v1148 = vpop.f32.mrb[0].mxu0
      %v1149 = vadd.f32 0.0, %v1148
      %v1150 = vpop.f32.mrb[0].mxu0
      %1151 = vmatprep.mubr.f32.mxu0 0.0
      %1152 = vmatmul.mubr.f32.gmra.mrb[0].mxu0 %v1022
      %v1153 = vpop.f32.mrb[0].mxu0
      %v1154 = vadd.f32 0.0, %v1153
      %v1155 = vpop.f32.mrb[0].mxu0
      %1156 = vmatprep.mubr.f32.mxu0 0.0
      %1157 = vmatmul.mubr.f32.gmra.mrb[0].mxu0 %v1024
      %v1158 = vpop.f32.mrb[0].mxu0
      %v1159 = vadd.f32 0.0, %v1158
      %v1160 = vpop.f32.mrb[0].mxu0
      %1161 = vmatprep.mubr.f32.mxu0 0.0
      %1162 = vmatmul.mubr.f32.gmra.mrb[0].mxu0 %v1026
      %v1163 = vpop.f32.mrb[0].mxu0
      %v1164 = vadd.f32 0.0, %v1163
      %v1165 = vpop.f32.mrb[0].mxu0
      %1166 = vmatprep.mubr.f32.mxu0 0.0
      %1167 = vmatmul.mubr.f32.gmra.mrb[0].mxu0 %v1028
      %v1168 = vpop.f32.mrb[0].mxu0
      %v1169 = vadd.f32 0.0, %v1168
      %v1170 = vpop.f32.mrb[0].mxu0
      %1171 = vmatprep.mubr.f32.mxu0 0.0
      %1172 = vmatmul.mubr.f32.gmra.mrb[0].mxu0 %v1030
      %v1173 = vpop.f32.mrb[0].mxu0
      %v1174 = vadd.f32 0.0, %v1173
      %v1175 = vpop.f32.mrb[0].mxu0
      %1176 = vdwg.mxu0
      %v1177 = vsel %vm999, %v919, 0
      %v1179 = vsel %vm999, %v871, 0
      %v1181 = vsel %vm999, %v920, 0
      %v1183 = vsel %vm999, %v874, 0
      %v1185 = vsel %vm999, %v921, 0
      %v1187 = vsel %vm999, %v877, 0
      %v1189 = vsel %vm999, %v922, 0
      %v1191 = vsel %vm999, %v880, 0
      %v1193 = vsel %vm999, %v923, 0
      %v1195 = vsel %vm999, %v883, 0
      %v1197 = vsel %vm999, %v924, 0
      %v1199 = vsel %vm999, %v886, 0
      %v1201 = vsel %vm999, %v925, 0
      %v1203 = vsel %vm999, %v889, 0
      %v1205 = vsel %vm999, %v926, 0
      %v1207 = vsel %vm999, %v892, 0
      %1209 = vmatprep.subr.mxu0 0.0
      %1210 = vmatpush1.msra.mxu0 %v939
      %1211 = vmatprep.subr.mxu0 0.0
      %1212 = vmatpush1.msra.mxu0 0.0
      %1213 = vmatprep.subr.mxu0 0.0
      %1214 = vmatpush1.msra.mxu0 0.0
      %1215 = vmatprep.subr.mxu0 0.0
      %1216 = vmatpush1.msra.mxu0 0.0
      %1217 = vmatprep.subr.mxu0 0.0
      %1218 = vmatpush1.msra.mxu0 0.0
      %1219 = vmatprep.subr.mxu0 0.0
      %1220 = vmatpush1.msra.mxu0 0.0
      %1221 = vmatprep.subr.mxu0 0.0
      %1222 = vmatpush1.msra.mxu0 0.0
      %1223 = vmatprep.subr.mxu0 0.0
      %1224 = vmatpush1.msra.mxu0 0.0
      %1225 = vmatprep.subr.mxu0 0.0
      %1226 = vmatpush1.msra.mxu0 0.0
      %1227 = vmatprep.subr.mxu0 0.0
      %1228 = vmatpush1.msra.mxu0 0.0
      %1229 = vmatprep.subr.mxu0 0.0
      %1230 = vmatpush1.msra.mxu0 0.0
      %1231 = vmatprep.subr.mxu0 0.0
      %1232 = vmatpush1.msra.mxu0 0.0
      %1233 = vmatprep.subr.mxu0 0.0
      %1234 = vmatpush1.msra.mxu0 0.0
      %1235 = vmatprep.subr.mxu0 0.0
      %1236 = vmatpush1.msra.mxu0 0.0
      %1237 = vmatprep.subr.mxu0 0.0
      %1238 = vmatpush1.msra.mxu0 0.0
      %1239 = vmatprep.subr.mxu0 0.0
      %1240 = vmatpush1.msra.mxu0 0.0
      %1241 = vmatprep.subr.mxu0 0.0
      %1242 = vmatpush1.msra.mxu0 0.0
      %1243 = vmatprep.subr.mxu0 0.0
      %1244 = vmatpush1.msra.mxu0 0.0
      %1245 = vmatprep.subr.mxu0 0.0
      %1246 = vmatpush1.msra.mxu0 0.0
      %1247 = vmatprep.subr.mxu0 0.0
      %1248 = vmatpush1.msra.mxu0 0.0
      %1249 = vmatprep.subr.mxu0 0.0
      %1250 = vmatpush1.msra.mxu0 0.0
      %1251 = vmatprep.subr.mxu0 0.0
      %1252 = vmatpush1.msra.mxu0 0.0
      %1253 = vmatprep.subr.mxu0 0.0
      %1254 = vmatpush1.msra.mxu0 0.0
      %1255 = vmatprep.subr.mxu0 0.0
      %1256 = vmatpush1.msra.mxu0 0.0
      %1257 = vmatprep.subr.mxu0 0.0
      %1258 = vmatpush1.msra.mxu0 0.0
      %1259 = vmatprep.subr.mxu0 0.0
      %1260 = vmatpush1.msra.mxu0 0.0
      %1261 = vmatprep.subr.mxu0 0.0
      %1262 = vmatpush1.msra.mxu0 0.0
      %1263 = vmatprep.subr.mxu0 0.0
      %1264 = vmatpush1.msra.mxu0 0.0
      %1265 = vmatprep.subr.mxu0 0.0
      %1266 = vmatpush1.msra.mxu0 0.0
      %1267 = vmatprep.subr.mxu0 0.0
      %1268 = vmatpush1.msra.mxu0 0.0
      %1269 = vmatprep.subr.mxu0 0.0
      %1270 = vmatpush1.msra.mxu0 0.0
      %1271 = vmatprep.subr.mxu0 0.0
      %1272 = vmatpush1.msra.mxu0 0.0
      %1273 = vmatprep.mubr.f32.mxu0 0.0
      %1274 = vmatmul.mubr.f32.gmra.mrb[0].mxu0 %v1177
      %v1275 = vpop.f32.mrb[0].mxu0
      %v1276 = vadd.f32 %v1099, %v1275
      %v1277 = vpop.f32.mrb[0].mxu0
      %1278 = vmatprep.mubr.f32.mxu0 0.0
      %1279 = vmatmul.mubr.f32.gmra.mrb[0].mxu0 %v1179
      %v1280 = vpop.f32.mrb[0].mxu0
      %v1281 = vadd.f32 %v1104, %v1280
      %v1282 = vpop.f32.mrb[0].mxu0
      %1283 = vmatprep.mubr.f32.mxu0 0.0
      %1284 = vmatmul.mubr.f32.gmra.mrb[0].mxu0 %v1181
      %v1285 = vpop.f32.mrb[0].mxu0
      %v1286 = vadd.f32 %v1109, %v1285
      %v1287 = vpop.f32.mrb[0].mxu0
      %1288 = vmatprep.mubr.f32.mxu0 0.0
      %1289 = vmatmul.mubr.f32.gmra.mrb[0].mxu0 %v1183
      %v1290 = vpop.f32.mrb[0].mxu0
      %v1291 = vadd.f32 %v1114, %v1290
      %v1292 = vpop.f32.mrb[0].mxu0
      %1293 = vmatprep.mubr.f32.mxu0 0.0
      %1294 = vmatmul.mubr.f32.gmra.mrb[0].mxu0 %v1185
      %v1295 = vpop.f32.mrb[0].mxu0
      %v1296 = vadd.f32 %v1119, %v1295
      %v1297 = vpop.f32.mrb[0].mxu0
      %1298 = vmatprep.mubr.f32.mxu0 0.0
      %1299 = vmatmul.mubr.f32.gmra.mrb[0].mxu0 %v1187
      %v1300 = vpop.f32.mrb[0].mxu0
      %v1301 = vadd.f32 %v1124, %v1300
      %v1302 = vpop.f32.mrb[0].mxu0
      %1303 = vmatprep.mubr.f32.mxu0 0.0
      %1304 = vmatmul.mubr.f32.gmra.mrb[0].mxu0 %v1189
      %v1305 = vpop.f32.mrb[0].mxu0
      %v1306 = vadd.f32 %v1129, %v1305
      %v1307 = vpop.f32.mrb[0].mxu0
      %1308 = vmatprep.mubr.f32.mxu0 0.0
      %1309 = vmatmul.mubr.f32.gmra.mrb[0].mxu0 %v1191
      %v1310 = vpop.f32.mrb[0].mxu0
      %v1311 = vadd.f32 %v1134, %v1310
      %v1312 = vpop.f32.mrb[0].mxu0
      %1313 = vmatprep.mubr.f32.mxu0 0.0
      %1314 = vmatmul.mubr.f32.gmra.mrb[0].mxu0 %v1193
      %v1315 = vpop.f32.mrb[0].mxu0
      %v1316 = vadd.f32 %v1139, %v1315
      %v1317 = vpop.f32.mrb[0].mxu0
      %1318 = vmatprep.mubr.f32.mxu0 0.0
      %1319 = vmatmul.mubr.f32.gmra.mrb[0].mxu0 %v1195
      %v1320 = vpop.f32.mrb[0].mxu0
      %v1321 = vadd.f32 %v1144, %v1320
      %v1322 = vpop.f32.mrb[0].mxu0
      %1323 = vmatprep.mubr.f32.mxu0 0.0
      %1324 = vmatmul.mubr.f32.gmra.mrb[0].mxu0 %v1197
      %v1325 = vpop.f32.mrb[0].mxu0
      %v1326 = vadd.f32 %v1149, %v1325
      %v1327 = vpop.f32.mrb[0].mxu0
      %1328 = vmatprep.mubr.f32.mxu0 0.0
      %1329 = vmatmul.mubr.f32.gmra.mrb[0].mxu0 %v1199
      %v1330 = vpop.f32.mrb[0].mxu0
      %v1331 = vadd.f32 %v1154, %v1330
      %v1332 = vpop.f32.mrb[0].mxu0
      %1333 = vmatprep.mubr.f32.mxu0 0.0
      %1334 = vmatmul.mubr.f32.gmra.mrb[0].mxu0 %v1201
      %v1335 = vpop.f32.mrb[0].mxu0
      %v1336 = vadd.f32 %v1159, %v1335
      %v1337 = vpop.f32.mrb[0].mxu0
      %1338 = vmatprep.mubr.f32.mxu0 0.0
      %1339 = vmatmul.mubr.f32.gmra.mrb[0].mxu0 %v1203
      %v1340 = vpop.f32.mrb[0].mxu0
      %v1341 = vadd.f32 %v1164, %v1340
      %v1342 = vpop.f32.mrb[0].mxu0
      %1343 = vmatprep.mubr.f32.mxu0 0.0
      %1344 = vmatmul.mubr.f32.gmra.mrb[0].mxu0 %v1205
      %v1345 = vpop.f32.mrb[0].mxu0
      %v1346 = vadd.f32 %v1169, %v1345
      %v1347 = vpop.f32.mrb[0].mxu0
      %1348 = vmatprep.mubr.f32.mxu0 0.0
      %1349 = vmatmul.mubr.f32.gmra.mrb[0].mxu0 %v1207
      %v1350 = vpop.f32.mrb[0].mxu0
      %v1351 = vadd.f32 %v1174, %v1350
      %v1352 = vpop.f32.mrb[0].mxu0
      %1353 = vdwg.mxu0
      %vm1354 = vcmask 1045504
      %v1355 = vrot.slane %v919, 2
      %v1356 = vrot.slane %v871, 2
      %v1357 = vsel %vm1354, %v1355, %v1356
      %v1358 = vrot.slane %v929, 2
      %v1359 = vsel %vm1354, %v1356, %v1358
      %v1360 = vrot.slane %v920, 2
      %v1361 = vrot.slane %v874, 2
      %v1362 = vsel %vm1354, %v1360, %v1361
      %v1363 = vrot.slane %v930, 2
      %v1364 = vsel %vm1354, %v1361, %v1363
      %v1365 = vrot.slane %v921, 2
      %v1366 = vrot.slane %v877, 2
      %v1367 = vsel %vm1354, %v1365, %v1366
      %v1368 = vrot.slane %v931, 2
      %v1369 = vsel %vm1354, %v1366, %v1368
      %v1370 = vrot.slane %v922, 2
      %v1371 = vrot.slane %v880, 2
      %v1372 = vsel %vm1354, %v1370, %v1371
      %v1373 = vrot.slane %v932, 2
      %v1374 = vsel %vm1354, %v1371, %v1373
      %v1375 = vrot.slane %v923, 2
      %v1376 = vrot.slane %v883, 2
      %v1377 = vsel %vm1354, %v1375, %v1376
      %v1378 = vrot.slane %v933, 2
      %v1379 = vsel %vm1354, %v1376, %v1378
      %v1380 = vrot.slane %v924, 2
      %v1381 = vrot.slane %v886, 2
      %v1382 = vsel %vm1354, %v1380, %v1381
      %v1383 = vrot.slane %v934, 2
      %v1384 = vsel %vm1354, %v1381, %v1383
      %v1385 = vrot.slane %v925, 2
      %v1386 = vrot.slane %v889, 2
      %v1387 = vsel %vm1354, %v1385, %v1386
      %v1388 = vrot.slane %v935, 2
      %v1389 = vsel %vm1354, %v1386, %v1388
      %v1390 = vrot.slane %v926, 2
      %v1391 = vrot.slane %v892, 2
      %v1392 = vsel %vm1354, %v1390, %v1391
      %v1393 = vrot.slane %v936, 2
      %v1394 = vsel %vm1354, %v1391, %v1393
      %s1395 = scalar_lea.vmem %s4, 16
      %v1396 = vld [vmem:[%s1395] sm:$0xff]
      %v1397 = vsel %vm999, %v1357, 0
      %v1399 = vsel %vm999, %v1359, 0
      %v1401 = vsel %vm999, %v1362, 0
      %v1403 = vsel %vm999, %v1364, 0
      %v1405 = vsel %vm999, %v1367, 0
      %v1407 = vsel %vm999, %v1369, 0
      %v1409 = vsel %vm999, %v1372, 0
      %v1411 = vsel %vm999, %v1374, 0
      %v1413 = vsel %vm999, %v1377, 0
      %v1415 = vsel %vm999, %v1379, 0
      %v1417 = vsel %vm999, %v1382, 0
      %v1419 = vsel %vm999, %v1384, 0
      %v1421 = vsel %vm999, %v1387, 0
      %v1423 = vsel %vm999, %v1389, 0
      %v1425 = vsel %vm999, %v1392, 0
      %v1427 = vsel %vm999, %v1394, 0
      %1429 = vmatprep.subr.mxu0 0.0
      %1430 = vmatpush1.msra.mxu0 %v1396
      %1431 = vmatprep.subr.mxu0 0.0
      %1432 = vmatpush1.msra.mxu0 0.0
      %1433 = vmatprep.subr.mxu0 0.0
      %1434 = vmatpush1.msra.mxu0 0.0
      %1435 = vmatprep.subr.mxu0 0.0
      %1436 = vmatpush1.msra.mxu0 0.0
      %1437 = vmatprep.subr.mxu0 0.0
      %1438 = vmatpush1.msra.mxu0 0.0
      %1439 = vmatprep.subr.mxu0 0.0
      %1440 = vmatpush1.msra.mxu0 0.0
      %1441 = vmatprep.subr.mxu0 0.0
      %1442 = vmatpush1.msra.mxu0 0.0
      %1443 = vmatprep.subr.mxu0 0.0
      %1444 = vmatpush1.msra.mxu0 0.0
      %1445 = vmatprep.subr.mxu0 0.0
      %1446 = vmatpush1.msra.mxu0 0.0
      %1447 = vmatprep.subr.mxu0 0.0
      %1448 = vmatpush1.msra.mxu0 0.0
      %1449 = vmatprep.subr.mxu0 0.0
      %1450 = vmatpush1.msra.mxu0 0.0
      %1451 = vmatprep.subr.mxu0 0.0
      %1452 = vmatpush1.msra.mxu0 0.0
      %1453 = vmatprep.subr.mxu0 0.0
      %1454 = vmatpush1.msra.mxu0 0.0
      %1455 = vmatprep.subr.mxu0 0.0
      %1456 = vmatpush1.msra.mxu0 0.0
      %1457 = vmatprep.subr.mxu0 0.0
      %1458 = vmatpush1.msra.mxu0 0.0
      %1459 = vmatprep.subr.mxu0 0.0
      %1460 = vmatpush1.msra.mxu0 0.0
      %1461 = vmatprep.subr.mxu0 0.0
      %1462 = vmatpush1.msra.mxu0 0.0
      %1463 = vmatprep.subr.mxu0 0.0
      %1464 = vmatpush1.msra.mxu0 0.0
      %1465 = vmatprep.subr.mxu0 0.0
      %1466 = vmatpush1.msra.mxu0 0.0
      %1467 = vmatprep.subr.mxu0 0.0
      %1468 = vmatpush1.msra.mxu0 0.0
      %1469 = vmatprep.subr.mxu0 0.0
      %1470 = vmatpush1.msra.mxu0 0.0
      %1471 = vmatprep.subr.mxu0 0.0
      %1472 = vmatpush1.msra.mxu0 0.0
      %1473 = vmatprep.subr.mxu0 0.0
      %1474 = vmatpush1.msra.mxu0 0.0
      %1475 = vmatprep.subr.mxu0 0.0
      %1476 = vmatpush1.msra.mxu0 0.0
      %1477 = vmatprep.subr.mxu0 0.0
      %1478 = vmatpush1.msra.mxu0 0.0
      %1479 = vmatprep.subr.mxu0 0.0
      %1480 = vmatpush1.msra.mxu0 0.0
      %1481 = vmatprep.subr.mxu0 0.0
      %1482 = vmatpush1.msra.mxu0 0.0
      %1483 = vmatprep.subr.mxu0 0.0
      %1484 = vmatpush1.msra.mxu0 0.0
      %1485 = vmatprep.subr.mxu0 0.0
      %1486 = vmatpush1.msra.mxu0 0.0
      %1487 = vmatprep.subr.mxu0 0.0
      %1488 = vmatpush1.msra.mxu0 0.0
      %1489 = vmatprep.subr.mxu0 0.0
      %1490 = vmatpush1.msra.mxu0 0.0
      %1491 = vmatprep.subr.mxu0 0.0
      %1492 = vmatpush1.msra.mxu0 0.0
      %1493 = vmatprep.mubr.f32.mxu0 0.0
      %1494 = vmatmul.mubr.f32.gmra.mrb[0].mxu0 %v1397
      %v1495 = vpop.f32.mrb[0].mxu0
      %v1496 = vadd.f32 0.0, %v1495
      %v1497 = vpop.f32.mrb[0].mxu0
      %1498 = vmatprep.mubr.f32.mxu0 0.0
      %1499 = vmatmul.mubr.f32.gmra.mrb[0].mxu0 %v1399
      %v1500 = vpop.f32.mrb[0].mxu0
      %v1501 = vadd.f32 0.0, %v1500
      %v1502 = vpop.f32.mrb[0].mxu0
      %1503 = vmatprep.mubr.f32.mxu0 0.0
      %1504 = vmatmul.mubr.f32.gmra.mrb[0].mxu0 %v1401
      %v1505 = vpop.f32.mrb[0].mxu0
      %v1506 = vadd.f32 0.0, %v1505
      %v1507 = vpop.f32.mrb[0].mxu0
      %1508 = vmatprep.mubr.f32.mxu0 0.0
      %1509 = vmatmul.mubr.f32.gmra.mrb[0].mxu0 %v1403
      %v1510 = vpop.f32.mrb[0].mxu0
      %v1511 = vadd.f32 0.0, %v1510
      %v1512 = vpop.f32.mrb[0].mxu0
      %1513 = vmatprep.mubr.f32.mxu0 0.0
      %1514 = vmatmul.mubr.f32.gmra.mrb[0].mxu0 %v1405
      %v1515 = vpop.f32.mrb[0].mxu0
      %v1516 = vadd.f32 0.0, %v1515
      %v1517 = vpop.f32.mrb[0].mxu0
      %1518 = vmatprep.mubr.f32.mxu0 0.0
      %1519 = vmatmul.mubr.f32.gmra.mrb[0].mxu0 %v1407
      %v1520 = vpop.f32.mrb[0].mxu0
      %v1521 = vadd.f32 0.0, %v1520
      %v1522 = vpop.f32.mrb[0].mxu0
      %1523 = vmatprep.mubr.f32.mxu0 0.0
      %1524 = vmatmul.mubr.f32.gmra.mrb[0].mxu0 %v1409
      %v1525 = vpop.f32.mrb[0].mxu0
      %v1526 = vadd.f32 0.0, %v1525
      %v1527 = vpop.f32.mrb[0].mxu0
      %1528 = vmatprep.mubr.f32.mxu0 0.0
      %1529 = vmatmul.mubr.f32.gmra.mrb[0].mxu0 %v1411
      %v1530 = vpop.f32.mrb[0].mxu0
      %v1531 = vadd.f32 0.0, %v1530
      %v1532 = vpop.f32.mrb[0].mxu0
      %1533 = vmatprep.mubr.f32.mxu0 0.0
      %1534 = vmatmul.mubr.f32.gmra.mrb[0].mxu0 %v1413
      %v1535 = vpop.f32.mrb[0].mxu0
      %v1536 = vadd.f32 0.0, %v1535
      %v1537 = vpop.f32.mrb[0].mxu0
      %1538 = vmatprep.mubr.f32.mxu0 0.0
      %1539 = vmatmul.mubr.f32.gmra.mrb[0].mxu0 %v1415
      %v1540 = vpop.f32.mrb[0].mxu0
      %v1541 = vadd.f32 0.0, %v1540
      %v1542 = vpop.f32.mrb[0].mxu0
      %1543 = vmatprep.mubr.f32.mxu0 0.0
      %1544 = vmatmul.mubr.f32.gmra.mrb[0].mxu0 %v1417
      %v1545 = vpop.f32.mrb[0].mxu0
      %v1546 = vadd.f32 0.0, %v1545
      %v1547 = vpop.f32.mrb[0].mxu0
      %1548 = vmatprep.mubr.f32.mxu0 0.0
      %1549 = vmatmul.mubr.f32.gmra.mrb[0].mxu0 %v1419
      %v1550 = vpop.f32.mrb[0].mxu0
      %v1551 = vadd.f32 0.0, %v1550
      %v1552 = vpop.f32.mrb[0].mxu0
      %1553 = vmatprep.mubr.f32.mxu0 0.0
      %1554 = vmatmul.mubr.f32.gmra.mrb[0].mxu0 %v1421
      %v1555 = vpop.f32.mrb[0].mxu0
      %v1556 = vadd.f32 0.0, %v1555
      %v1557 = vpop.f32.mrb[0].mxu0
      %1558 = vmatprep.mubr.f32.mxu0 0.0
      %1559 = vmatmul.mubr.f32.gmra.mrb[0].mxu0 %v1423
      %v1560 = vpop.f32.mrb[0].mxu0
      %v1561 = vadd.f32 0.0, %v1560
      %v1562 = vpop.f32.mrb[0].mxu0
      %1563 = vmatprep.mubr.f32.mxu0 0.0
      %1564 = vmatmul.mubr.f32.gmra.mrb[0].mxu0 %v1425
      %v1565 = vpop.f32.mrb[0].mxu0
      %v1566 = vadd.f32 0.0, %v1565
      %v1567 = vpop.f32.mrb[0].mxu0
      %1568 = vmatprep.mubr.f32.mxu0 0.0
      %1569 = vmatmul.mubr.f32.gmra.mrb[0].mxu0 %v1427
      %v1570 = vpop.f32.mrb[0].mxu0
      %v1571 = vadd.f32 0.0, %v1570
      %v1572 = vpop.f32.mrb[0].mxu0
      %1573 = vdwg.mxu0
      %v1574 = vadd.f32 %v1276, %v1496
      %v1575 = vadd.f32 %v1281, %v1501
      %v1576 = vadd.f32 %v1286, %v1506
      %v1577 = vadd.f32 %v1291, %v1511
      %v1578 = vadd.f32 %v1296, %v1516
      %v1579 = vadd.f32 %v1301, %v1521
      %v1580 = vadd.f32 %v1306, %v1526
      %v1581 = vadd.f32 %v1311, %v1531
      %v1582 = vadd.f32 %v1316, %v1536
      %v1583 = vadd.f32 %v1321, %v1541
      %v1584 = vadd.f32 %v1326, %v1546
      %v1585 = vadd.f32 %v1331, %v1551
      %v1586 = vadd.f32 %v1336, %v1556
      %v1587 = vadd.f32 %v1341, %v1561
      %v1588 = vadd.f32 %v1346, %v1566
      %v1589 = vadd.f32 %v1351, %v1571
      %s1590 = scalar_lea.vmem %s4, 24
      %v1591 = vld [vmem:[%s1590] sm:$0xff]
      %v1593 = vsel %vm999, %v927, 0
      %v1595 = vsel %vm999, %v895, 0
      %1597 = vmatprep.subr.mxu0 0.0
      %1598 = vmatpush1.msra.mxu0 %v1591
      %1599 = vmatprep.subr.mxu0 0.0
      %1600 = vmatpush1.msra.mxu0 0.0
      %1601 = vmatprep.subr.mxu0 0.0
      %1602 = vmatpush1.msra.mxu0 0.0
      %1603 = vmatprep.subr.mxu0 0.0
      %1604 = vmatpush1.msra.mxu0 0.0
      %1605 = vmatprep.subr.mxu0 0.0
      %1606 = vmatpush1.msra.mxu0 0.0
      %1607 = vmatprep.subr.mxu0 0.0
      %1608 = vmatpush1.msra.mxu0 0.0
      %1609 = vmatprep.subr.mxu0 0.0
      %1610 = vmatpush1.msra.mxu0 0.0
      %1611 = vmatprep.subr.mxu0 0.0
      %1612 = vmatpush1.msra.mxu0 0.0
      %1613 = vmatprep.subr.mxu0 0.0
      %1614 = vmatpush1.msra.mxu0 0.0
      %1615 = vmatprep.subr.mxu0 0.0
      %1616 = vmatpush1.msra.mxu0 0.0
      %1617 = vmatprep.subr.mxu0 0.0
      %1618 = vmatpush1.msra.mxu0 0.0
      %1619 = vmatprep.subr.mxu0 0.0
      %1620 = vmatpush1.msra.mxu0 0.0
      %1621 = vmatprep.subr.mxu0 0.0
      %1622 = vmatpush1.msra.mxu0 0.0
      %1623 = vmatprep.subr.mxu0 0.0
      %1624 = vmatpush1.msra.mxu0 0.0
      %1625 = vmatprep.subr.mxu0 0.0
      %1626 = vmatpush1.msra.mxu0 0.0
      %1627 = vmatprep.subr.mxu0 0.0
      %1628 = vmatpush1.msra.mxu0 0.0
      %1629 = vmatprep.subr.mxu0 0.0
      %1630 = vmatpush1.msra.mxu0 0.0
      %1631 = vmatprep.subr.mxu0 0.0
      %1632 = vmatpush1.msra.mxu0 0.0
      %1633 = vmatprep.subr.mxu0 0.0
      %1634 = vmatpush1.msra.mxu0 0.0
      %1635 = vmatprep.subr.mxu0 0.0
      %1636 = vmatpush1.msra.mxu0 0.0
      %1637 = vmatprep.subr.mxu0 0.0
      %1638 = vmatpush1.msra.mxu0 0.0
      %1639 = vmatprep.subr.mxu0 0.0
      %1640 = vmatpush1.msra.mxu0 0.0
      %1641 = vmatprep.subr.mxu0 0.0
      %1642 = vmatpush1.msra.mxu0 0.0
      %1643 = vmatprep.subr.mxu0 0.0
      %1644 = vmatpush1.msra.mxu0 0.0
      %1645 = vmatprep.subr.mxu0 0.0
      %1646 = vmatpush1.msra.mxu0 0.0
      %1647 = vmatprep.subr.mxu0 0.0
      %1648 = vmatpush1.msra.mxu0 0.0
      %1649 = vmatprep.subr.mxu0 0.0
      %1650 = vmatpush1.msra.mxu0 0.0
      %1651 = vmatprep.subr.mxu0 0.0
      %1652 = vmatpush1.msra.mxu0 0.0
      %1653 = vmatprep.subr.mxu0 0.0
      %1654 = vmatpush1.msra.mxu0 0.0
      %1655 = vmatprep.subr.mxu0 0.0
      %1656 = vmatpush1.msra.mxu0 0.0
      %1657 = vmatprep.subr.mxu0 0.0
      %1658 = vmatpush1.msra.mxu0 0.0
      %1659 = vmatprep.subr.mxu0 0.0
      %1660 = vmatpush1.msra.mxu0 0.0
      %1661 = vmatprep.mubr.f32.mxu0 0.0
      %1662 = vmatmul.mubr.f32.gmra.mrb[0].mxu0 %v1181
      %v1663 = vpop.f32.mrb[0].mxu0
      %v1664 = vadd.f32 0.0, %v1663
      %v1665 = vpop.f32.mrb[0].mxu0
      %1666 = vmatprep.mubr.f32.mxu0 0.0
      %1667 = vmatmul.mubr.f32.gmra.mrb[0].mxu0 %v1183
      %v1668 = vpop.f32.mrb[0].mxu0
      %v1669 = vadd.f32 0.0, %v1668
      %v1670 = vpop.f32.mrb[0].mxu0
      %1671 = vmatprep.mubr.f32.mxu0 0.0
      %1672 = vmatmul.mubr.f32.gmra.mrb[0].mxu0 %v1185
      %v1673 = vpop.f32.mrb[0].mxu0
      %v1674 = vadd.f32 0.0, %v1673
      %v1675 = vpop.f32.mrb[0].mxu0
      %1676 = vmatprep.mubr.f32.mxu0 0.0
      %1677 = vmatmul.mubr.f32.gmra.mrb[0].mxu0 %v1187
      %v1678 = vpop.f32.mrb[0].mxu0
      %v1679 = vadd.f32 0.0, %v1678
      %v1680 = vpop.f32.mrb[0].mxu0
      %1681 = vmatprep.mubr.f32.mxu0 0.0
      %1682 = vmatmul.mubr.f32.gmra.mrb[0].mxu0 %v1189
      %v1683 = vpop.f32.mrb[0].mxu0
      %v1684 = vadd.f32 0.0, %v1683
      %v1685 = vpop.f32.mrb[0].mxu0
      %1686 = vmatprep.mubr.f32.mxu0 0.0
      %1687 = vmatmul.mubr.f32.gmra.mrb[0].mxu0 %v1191
      %v1688 = vpop.f32.mrb[0].mxu0
      %v1689 = vadd.f32 0.0, %v1688
      %v1690 = vpop.f32.mrb[0].mxu0
      %1691 = vmatprep.mubr.f32.mxu0 0.0
      %1692 = vmatmul.mubr.f32.gmra.mrb[0].mxu0 %v1193
      %v1693 = vpop.f32.mrb[0].mxu0
      %v1694 = vadd.f32 0.0, %v1693
      %v1695 = vpop.f32.mrb[0].mxu0
      %1696 = vmatprep.mubr.f32.mxu0 0.0
      %1697 = vmatmul.mubr.f32.gmra.mrb[0].mxu0 %v1195
      %v1698 = vpop.f32.mrb[0].mxu0
      %v1699 = vadd.f32 0.0, %v1698
      %v1700 = vpop.f32.mrb[0].mxu0
      %1701 = vmatprep.mubr.f32.mxu0 0.0
      %1702 = vmatmul.mubr.f32.gmra.mrb[0].mxu0 %v1197
      %v1703 = vpop.f32.mrb[0].mxu0
      %v1704 = vadd.f32 0.0, %v1703
      %v1705 = vpop.f32.mrb[0].mxu0
      %1706 = vmatprep.mubr.f32.mxu0 0.0
      %1707 = vmatmul.mubr.f32.gmra.mrb[0].mxu0 %v1199
      %v1708 = vpop.f32.mrb[0].mxu0
      %v1709 = vadd.f32 0.0, %v1708
      %v1710 = vpop.f32.mrb[0].mxu0
      %1711 = vmatprep.mubr.f32.mxu0 0.0
      %1712 = vmatmul.mubr.f32.gmra.mrb[0].mxu0 %v1201
      %v1713 = vpop.f32.mrb[0].mxu0
      %v1714 = vadd.f32 0.0, %v1713
      %v1715 = vpop.f32.mrb[0].mxu0
      %1716 = vmatprep.mubr.f32.mxu0 0.0
      %1717 = vmatmul.mubr.f32.gmra.mrb[0].mxu0 %v1203
      %v1718 = vpop.f32.mrb[0].mxu0
      %v1719 = vadd.f32 0.0, %v1718
      %v1720 = vpop.f32.mrb[0].mxu0
      %1721 = vmatprep.mubr.f32.mxu0 0.0
      %1722 = vmatmul.mubr.f32.gmra.mrb[0].mxu0 %v1205
      %v1723 = vpop.f32.mrb[0].mxu0
      %v1724 = vadd.f32 0.0, %v1723
      %v1725 = vpop.f32.mrb[0].mxu0
      %1726 = vmatprep.mubr.f32.mxu0 0.0
      %1727 = vmatmul.mubr.f32.gmra.mrb[0].mxu0 %v1207
      %v1728 = vpop.f32.mrb[0].mxu0
      %v1729 = vadd.f32 0.0, %v1728
      %v1730 = vpop.f32.mrb[0].mxu0
      %1731 = vmatprep.mubr.f32.mxu0 0.0
      %1732 = vmatmul.mubr.f32.gmra.mrb[0].mxu0 %v1593
      %v1733 = vpop.f32.mrb[0].mxu0
      %v1734 = vadd.f32 0.0, %v1733
      %v1735 = vpop.f32.mrb[0].mxu0
      %1736 = vmatprep.mubr.f32.mxu0 0.0
      %1737 = vmatmul.mubr.f32.gmra.mrb[0].mxu0 %v1595
      %v1738 = vpop.f32.mrb[0].mxu0
      %v1739 = vadd.f32 0.0, %v1738
      %v1740 = vpop.f32.mrb[0].mxu0
      %1741 = vdwg.mxu0
      %v1742 = vadd.f32 %v1574, %v1664
      %v1743 = vadd.f32 %v1575, %v1669
      %v1744 = vadd.f32 %v1576, %v1674
      %v1745 = vadd.f32 %v1577, %v1679
      %v1746 = vadd.f32 %v1578, %v1684
      %v1747 = vadd.f32 %v1579, %v1689
      %v1748 = vadd.f32 %v1580, %v1694
      %v1749 = vadd.f32 %v1581, %v1699
      %v1750 = vadd.f32 %v1582, %v1704
      %v1751 = vadd.f32 %v1583, %v1709
      %v1752 = vadd.f32 %v1584, %v1714
      %v1753 = vadd.f32 %v1585, %v1719
      %v1754 = vadd.f32 %v1586, %v1724
      %v1755 = vadd.f32 %v1587, %v1729
      %v1756 = vadd.f32 %v1588, %v1734
      %v1757 = vadd.f32 %v1589, %v1739
      %v1759 = vrot.slane %v927, 1
      %v1760 = vrot.slane %v895, 1
      %v1761 = vsel %vm956, %v1759, %v1760
      %v1762 = vrot.slane %v937, 1
      %v1763 = vsel %vm956, %v1760, %v1762
      %s1764 = scalar_lea.vmem %s4, 32
      %v1765 = vld [vmem:[%s1764] sm:$0xff]
      %v1766 = vsel %vm999, %v1761, 0
      %v1768 = vsel %vm999, %v1763, 0
      %1770 = vmatprep.subr.mxu0 0.0
      %1771 = vmatpush1.msra.mxu0 %v1765
      %1772 = vmatprep.subr.mxu0 0.0
      %1773 = vmatpush1.msra.mxu0 0.0
      %1774 = vmatprep.subr.mxu0 0.0
      %1775 = vmatpush1.msra.mxu0 0.0
      %1776 = vmatprep.subr.mxu0 0.0
      %1777 = vmatpush1.msra.mxu0 0.0
      %1778 = vmatprep.subr.mxu0 0.0
      %1779 = vmatpush1.msra.mxu0 0.0
      %1780 = vmatprep.subr.mxu0 0.0
      %1781 = vmatpush1.msra.mxu0 0.0
      %1782 = vmatprep.subr.mxu0 0.0
      %1783 = vmatpush1.msra.mxu0 0.0
      %1784 = vmatprep.subr.mxu0 0.0
      %1785 = vmatpush1.msra.mxu0 0.0
      %1786 = vmatprep.subr.mxu0 0.0
      %1787 = vmatpush1.msra.mxu0 0.0
      %1788 = vmatprep.subr.mxu0 0.0
      %1789 = vmatpush1.msra.mxu0 0.0
      %1790 = vmatprep.subr.mxu0 0.0
      %1791 = vmatpush1.msra.mxu0 0.0
      %1792 = vmatprep.subr.mxu0 0.0
      %1793 = vmatpush1.msra.mxu0 0.0
      %1794 = vmatprep.subr.mxu0 0.0
      %1795 = vmatpush1.msra.mxu0 0.0
      %1796 = vmatprep.subr.mxu0 0.0
      %1797 = vmatpush1.msra.mxu0 0.0
      %1798 = vmatprep.subr.mxu0 0.0
      %1799 = vmatpush1.msra.mxu0 0.0
      %1800 = vmatprep.subr.mxu0 0.0
      %1801 = vmatpush1.msra.mxu0 0.0
      %1802 = vmatprep.subr.mxu0 0.0
      %1803 = vmatpush1.msra.mxu0 0.0
      %1804 = vmatprep.subr.mxu0 0.0
      %1805 = vmatpush1.msra.mxu0 0.0
      %1806 = vmatprep.subr.mxu0 0.0
      %1807 = vmatpush1.msra.mxu0 0.0
      %1808 = vmatprep.subr.mxu0 0.0
      %1809 = vmatpush1.msra.mxu0 0.0
      %1810 = vmatprep.subr.mxu0 0.0
      %1811 = vmatpush1.msra.mxu0 0.0
      %1812 = vmatprep.subr.mxu0 0.0
      %1813 = vmatpush1.msra.mxu0 0.0
      %1814 = vmatprep.subr.mxu0 0.0
      %1815 = vmatpush1.msra.mxu0 0.0
      %1816 = vmatprep.subr.mxu0 0.0
      %1817 = vmatpush1.msra.mxu0 0.0
      %1818 = vmatprep.subr.mxu0 0.0
      %1819 = vmatpush1.msra.mxu0 0.0
      %1820 = vmatprep.subr.mxu0 0.0
      %1821 = vmatpush1.msra.mxu0 0.0
      %1822 = vmatprep.subr.mxu0 0.0
      %1823 = vmatpush1.msra.mxu0 0.0
      %1824 = vmatprep.subr.mxu0 0.0
      %1825 = vmatpush1.msra.mxu0 0.0
      %1826 = vmatprep.subr.mxu0 0.0
      %1827 = vmatpush1.msra.mxu0 0.0
      %1828 = vmatprep.subr.mxu0 0.0
      %1829 = vmatpush1.msra.mxu0 0.0
      %1830 = vmatprep.subr.mxu0 0.0
      %1831 = vmatpush1.msra.mxu0 0.0
      %1832 = vmatprep.subr.mxu0 0.0
      %1833 = vmatpush1.msra.mxu0 0.0
      %1834 = vmatprep.mubr.f32.mxu0 0.0
      %1835 = vmatmul.mubr.f32.gmra.mrb[0].mxu0 %v1004
      %v1836 = vpop.f32.mrb[0].mxu0
      %v1837 = vadd.f32 0.0, %v1836
      %v1838 = vpop.f32.mrb[0].mxu0
      %1839 = vmatprep.mubr.f32.mxu0 0.0
      %1840 = vmatmul.mubr.f32.gmra.mrb[0].mxu0 %v1006
      %v1841 = vpop.f32.mrb[0].mxu0
      %v1842 = vadd.f32 0.0, %v1841
      %v1843 = vpop.f32.mrb[0].mxu0
      %1844 = vmatprep.mubr.f32.mxu0 0.0
      %1845 = vmatmul.mubr.f32.gmra.mrb[0].mxu0 %v1008
      %v1846 = vpop.f32.mrb[0].mxu0
      %v1847 = vadd.f32 0.0, %v1846
      %v1848 = vpop.f32.mrb[0].mxu0
      %1849 = vmatprep.mubr.f32.mxu0 0.0
      %1850 = vmatmul.mubr.f32.gmra.mrb[0].mxu0 %v1010
      %v1851 = vpop.f32.mrb[0].mxu0
      %v1852 = vadd.f32 0.0, %v1851
      %v1853 = vpop.f32.mrb[0].mxu0
      %1854 = vmatprep.mubr.f32.mxu0 0.0
      %1855 = vmatmul.mubr.f32.gmra.mrb[0].mxu0 %v1012
      %v1856 = vpop.f32.mrb[0].mxu0
      %v1857 = vadd.f32 0.0, %v1856
      %v1858 = vpop.f32.mrb[0].mxu0
      %1859 = vmatprep.mubr.f32.mxu0 0.0
      %1860 = vmatmul.mubr.f32.gmra.mrb[0].mxu0 %v1014
      %v1861 = vpop.f32.mrb[0].mxu0
      %v1862 = vadd.f32 0.0, %v1861
      %v1863 = vpop.f32.mrb[0].mxu0
      %1864 = vmatprep.mubr.f32.mxu0 0.0
      %1865 = vmatmul.mubr.f32.gmra.mrb[0].mxu0 %v1016
      %v1866 = vpop.f32.mrb[0].mxu0
      %v1867 = vadd.f32 0.0, %v1866
      %v1868 = vpop.f32.mrb[0].mxu0
      %1869 = vmatprep.mubr.f32.mxu0 0.0
      %1870 = vmatmul.mubr.f32.gmra.mrb[0].mxu0 %v1018
      %v1871 = vpop.f32.mrb[0].mxu0
      %v1872 = vadd.f32 0.0, %v1871
      %v1873 = vpop.f32.mrb[0].mxu0
      %1874 = vmatprep.mubr.f32.mxu0 0.0
      %1875 = vmatmul.mubr.f32.gmra.mrb[0].mxu0 %v1020
      %v1876 = vpop.f32.mrb[0].mxu0
      %v1877 = vadd.f32 0.0, %v1876
      %v1878 = vpop.f32.mrb[0].mxu0
      %1879 = vmatprep.mubr.f32.mxu0 0.0
      %1880 = vmatmul.mubr.f32.gmra.mrb[0].mxu0 %v1022
      %v1881 = vpop.f32.mrb[0].mxu0
      %v1882 = vadd.f32 0.0, %v1881
      %v1883 = vpop.f32.mrb[0].mxu0
      %1884 = vmatprep.mubr.f32.mxu0 0.0
      %1885 = vmatmul.mubr.f32.gmra.mrb[0].mxu0 %v1024
      %v1886 = vpop.f32.mrb[0].mxu0
      %v1887 = vadd.f32 0.0, %v1886
      %v1888 = vpop.f32.mrb[0].mxu0
      %1889 = vmatprep.mubr.f32.mxu0 0.0
      %1890 = vmatmul.mubr.f32.gmra.mrb[0].mxu0 %v1026
      %v1891 = vpop.f32.mrb[0].mxu0
      %v1892 = vadd.f32 0.0, %v1891
      %v1893 = vpop.f32.mrb[0].mxu0
      %1894 = vmatprep.mubr.f32.mxu0 0.0
      %1895 = vmatmul.mubr.f32.gmra.mrb[0].mxu0 %v1028
      %v1896 = vpop.f32.mrb[0].mxu0
      %v1897 = vadd.f32 0.0, %v1896
      %v1898 = vpop.f32.mrb[0].mxu0
      %1899 = vmatprep.mubr.f32.mxu0 0.0
      %1900 = vmatmul.mubr.f32.gmra.mrb[0].mxu0 %v1030
      %v1901 = vpop.f32.mrb[0].mxu0
      %v1902 = vadd.f32 0.0, %v1901
      %v1903 = vpop.f32.mrb[0].mxu0
      %1904 = vmatprep.mubr.f32.mxu0 0.0
      %1905 = vmatmul.mubr.f32.gmra.mrb[0].mxu0 %v1766
      %v1906 = vpop.f32.mrb[0].mxu0
      %v1907 = vadd.f32 0.0, %v1906
      %v1908 = vpop.f32.mrb[0].mxu0
      %1909 = vmatprep.mubr.f32.mxu0 0.0
      %1910 = vmatmul.mubr.f32.gmra.mrb[0].mxu0 %v1768
      %v1911 = vpop.f32.mrb[0].mxu0
      %v1912 = vadd.f32 0.0, %v1911
      %v1913 = vpop.f32.mrb[0].mxu0
      %1914 = vdwg.mxu0
      %v1915 = vadd.f32 %v1742, %v1837
      %v1916 = vadd.f32 %v1743, %v1842
      %v1917 = vadd.f32 %v1744, %v1847
      %v1918 = vadd.f32 %v1745, %v1852
      %v1919 = vadd.f32 %v1746, %v1857
      %v1920 = vadd.f32 %v1747, %v1862
      %v1921 = vadd.f32 %v1748, %v1867
      %v1922 = vadd.f32 %v1749, %v1872
      %v1923 = vadd.f32 %v1750, %v1877
      %v1924 = vadd.f32 %v1751, %v1882
      %v1925 = vadd.f32 %v1752, %v1887
      %v1926 = vadd.f32 %v1753, %v1892
      %v1927 = vadd.f32 %v1754, %v1897
      %v1928 = vadd.f32 %v1755, %v1902
      %v1929 = vadd.f32 %v1756, %v1907
      %v1930 = vadd.f32 %v1757, %v1912
      %v1931 = vrot.slane %v927, 2
      %v1932 = vrot.slane %v895, 2
      %v1933 = vsel %vm1354, %v1931, %v1932
      %v1934 = vrot.slane %v937, 2
      %v1935 = vsel %vm1354, %v1932, %v1934
      %s1936 = scalar_lea.vmem %s4, 40
      %v1937 = vld [vmem:[%s1936] sm:$0xff]
      %v1938 = vsel %vm999, %v1933, 0
      %v1940 = vsel %vm999, %v1935, 0
      %1942 = vmatprep.subr.mxu0 0.0
      %1943 = vmatpush1.msra.mxu0 %v1937
      %1944 = vmatprep.subr.mxu0 0.0
      %1945 = vmatpush1.msra.mxu0 0.0
      %1946 = vmatprep.subr.mxu0 0.0
      %1947 = vmatpush1.msra.mxu0 0.0
      %1948 = vmatprep.subr.mxu0 0.0
      %1949 = vmatpush1.msra.mxu0 0.0
      %1950 = vmatprep.subr.mxu0 0.0
      %1951 = vmatpush1.msra.mxu0 0.0
      %1952 = vmatprep.subr.mxu0 0.0
      %1953 = vmatpush1.msra.mxu0 0.0
      %1954 = vmatprep.subr.mxu0 0.0
      %1955 = vmatpush1.msra.mxu0 0.0
      %1956 = vmatprep.subr.mxu0 0.0
      %1957 = vmatpush1.msra.mxu0 0.0
      %1958 = vmatprep.subr.mxu0 0.0
      %1959 = vmatpush1.msra.mxu0 0.0
      %1960 = vmatprep.subr.mxu0 0.0
      %1961 = vmatpush1.msra.mxu0 0.0
      %1962 = vmatprep.subr.mxu0 0.0
      %1963 = vmatpush1.msra.mxu0 0.0
      %1964 = vmatprep.subr.mxu0 0.0
      %1965 = vmatpush1.msra.mxu0 0.0
      %1966 = vmatprep.subr.mxu0 0.0
      %1967 = vmatpush1.msra.mxu0 0.0
      %1968 = vmatprep.subr.mxu0 0.0
      %1969 = vmatpush1.msra.mxu0 0.0
      %1970 = vmatprep.subr.mxu0 0.0
      %1971 = vmatpush1.msra.mxu0 0.0
      %1972 = vmatprep.subr.mxu0 0.0
      %1973 = vmatpush1.msra.mxu0 0.0
      %1974 = vmatprep.subr.mxu0 0.0
      %1975 = vmatpush1.msra.mxu0 0.0
      %1976 = vmatprep.subr.mxu0 0.0
      %1977 = vmatpush1.msra.mxu0 0.0
      %1978 = vmatprep.subr.mxu0 0.0
      %1979 = vmatpush1.msra.mxu0 0.0
      %1980 = vmatprep.subr.mxu0 0.0
      %1981 = vmatpush1.msra.mxu0 0.0
      %1982 = vmatprep.subr.mxu0 0.0
      %1983 = vmatpush1.msra.mxu0 0.0
      %1984 = vmatprep.subr.mxu0 0.0
      %1985 = vmatpush1.msra.mxu0 0.0
      %1986 = vmatprep.subr.mxu0 0.0
      %1987 = vmatpush1.msra.mxu0 0.0
      %1988 = vmatprep.subr.mxu0 0.0
      %1989 = vmatpush1.msra.mxu0 0.0
      %1990 = vmatprep.subr.mxu0 0.0
      %1991 = vmatpush1.msra.mxu0 0.0
      %1992 = vmatprep.subr.mxu0 0.0
      %1993 = vmatpush1.msra.mxu0 0.0
      %1994 = vmatprep.subr.mxu0 0.0
      %1995 = vmatpush1.msra.mxu0 0.0
      %1996 = vmatprep.subr.mxu0 0.0
      %1997 = vmatpush1.msra.mxu0 0.0
      %1998 = vmatprep.subr.mxu0 0.0
      %1999 = vmatpush1.msra.mxu0 0.0
      %2000 = vmatprep.subr.mxu0 0.0
      %2001 = vmatpush1.msra.mxu0 0.0
      %2002 = vmatprep.subr.mxu0 0.0
      %2003 = vmatpush1.msra.mxu0 0.0
      %2004 = vmatprep.subr.mxu0 0.0
      %2005 = vmatpush1.msra.mxu0 0.0
      %2006 = vmatprep.mubr.f32.mxu0 0.0
      %2007 = vmatmul.mubr.f32.gmra.mrb[0].mxu0 %v1401
      %v2008 = vpop.f32.mrb[0].mxu0
      %v2009 = vadd.f32 0.0, %v2008
      %v2010 = vpop.f32.mrb[0].mxu0
      %2011 = vmatprep.mubr.f32.mxu0 0.0
      %2012 = vmatmul.mubr.f32.gmra.mrb[0].mxu0 %v1403
      %v2013 = vpop.f32.mrb[0].mxu0
      %v2014 = vadd.f32 0.0, %v2013
      %v2015 = vpop.f32.mrb[0].mxu0
      %2016 = vmatprep.mubr.f32.mxu0 0.0
      %2017 = vmatmul.mubr.f32.gmra.mrb[0].mxu0 %v1405
      %v2018 = vpop.f32.mrb[0].mxu0
      %v2019 = vadd.f32 0.0, %v2018
      %v2020 = vpop.f32.mrb[0].mxu0
      %2021 = vmatprep.mubr.f32.mxu0 0.0
      %2022 = vmatmul.mubr.f32.gmra.mrb[0].mxu0 %v1407
      %v2023 = vpop.f32.mrb[0].mxu0
      %v2024 = vadd.f32 0.0, %v2023
      %v2025 = vpop.f32.mrb[0].mxu0
      %2026 = vmatprep.mubr.f32.mxu0 0.0
      %2027 = vmatmul.mubr.f32.gmra.mrb[0].mxu0 %v1409
      %v2028 = vpop.f32.mrb[0].mxu0
      %v2029 = vadd.f32 0.0, %v2028
      %v2030 = vpop.f32.mrb[0].mxu0
      %2031 = vmatprep.mubr.f32.mxu0 0.0
      %2032 = vmatmul.mubr.f32.gmra.mrb[0].mxu0 %v1411
      %v2033 = vpop.f32.mrb[0].mxu0
      %v2034 = vadd.f32 0.0, %v2033
      %v2035 = vpop.f32.mrb[0].mxu0
      %2036 = vmatprep.mubr.f32.mxu0 0.0
      %2037 = vmatmul.mubr.f32.gmra.mrb[0].mxu0 %v1413
      %v2038 = vpop.f32.mrb[0].mxu0
      %v2039 = vadd.f32 0.0, %v2038
      %v2040 = vpop.f32.mrb[0].mxu0
      %2041 = vmatprep.mubr.f32.mxu0 0.0
      %2042 = vmatmul.mubr.f32.gmra.mrb[0].mxu0 %v1415
      %v2043 = vpop.f32.mrb[0].mxu0
      %v2044 = vadd.f32 0.0, %v2043
      %v2045 = vpop.f32.mrb[0].mxu0
      %2046 = vmatprep.mubr.f32.mxu0 0.0
      %2047 = vmatmul.mubr.f32.gmra.mrb[0].mxu0 %v1417
      %v2048 = vpop.f32.mrb[0].mxu0
      %v2049 = vadd.f32 0.0, %v2048
      %v2050 = vpop.f32.mrb[0].mxu0
      %2051 = vmatprep.mubr.f32.mxu0 0.0
      %2052 = vmatmul.mubr.f32.gmra.mrb[0].mxu0 %v1419
      %v2053 = vpop.f32.mrb[0].mxu0
      %v2054 = vadd.f32 0.0, %v2053
      %v2055 = vpop.f32.mrb[0].mxu0
      %2056 = vmatprep.mubr.f32.mxu0 0.0
      %2057 = vmatmul.mubr.f32.gmra.mrb[0].mxu0 %v1421
      %v2058 = vpop.f32.mrb[0].mxu0
      %v2059 = vadd.f32 0.0, %v2058
      %v2060 = vpop.f32.mrb[0].mxu0
      %2061 = vmatprep.mubr.f32.mxu0 0.0
      %2062 = vmatmul.mubr.f32.gmra.mrb[0].mxu0 %v1423
      %v2063 = vpop.f32.mrb[0].mxu0
      %v2064 = vadd.f32 0.0, %v2063
      %v2065 = vpop.f32.mrb[0].mxu0
      %2066 = vmatprep.mubr.f32.mxu0 0.0
      %2067 = vmatmul.mubr.f32.gmra.mrb[0].mxu0 %v1425
      %v2068 = vpop.f32.mrb[0].mxu0
      %v2069 = vadd.f32 0.0, %v2068
      %v2070 = vpop.f32.mrb[0].mxu0
      %2071 = vmatprep.mubr.f32.mxu0 0.0
      %2072 = vmatmul.mubr.f32.gmra.mrb[0].mxu0 %v1427
      %v2073 = vpop.f32.mrb[0].mxu0
      %v2074 = vadd.f32 0.0, %v2073
      %v2075 = vpop.f32.mrb[0].mxu0
      %2076 = vmatprep.mubr.f32.mxu0 0.0
      %2077 = vmatmul.mubr.f32.gmra.mrb[0].mxu0 %v1938
      %v2078 = vpop.f32.mrb[0].mxu0
      %v2079 = vadd.f32 0.0, %v2078
      %v2080 = vpop.f32.mrb[0].mxu0
      %2081 = vmatprep.mubr.f32.mxu0 0.0
      %2082 = vmatmul.mubr.f32.gmra.mrb[0].mxu0 %v1940
      %v2083 = vpop.f32.mrb[0].mxu0
      %v2084 = vadd.f32 0.0, %v2083
      %v2085 = vpop.f32.mrb[0].mxu0
      %2086 = vdwg.mxu0
      %v2087 = vadd.f32 %v1915, %v2009
      %v2088 = vadd.f32 %v1916, %v2014
      %v2089 = vadd.f32 %v1917, %v2019
      %v2090 = vadd.f32 %v1918, %v2024
      %v2091 = vadd.f32 %v1919, %v2029
      %v2092 = vadd.f32 %v1920, %v2034
      %v2093 = vadd.f32 %v1921, %v2039
      %v2094 = vadd.f32 %v1922, %v2044
      %v2095 = vadd.f32 %v1923, %v2049
      %v2096 = vadd.f32 %v1924, %v2054
      %v2097 = vadd.f32 %v1925, %v2059
      %v2098 = vadd.f32 %v1926, %v2064
      %v2099 = vadd.f32 %v1927, %v2069
      %v2100 = vadd.f32 %v1928, %v2074
      %v2101 = vadd.f32 %v1929, %v2079
      %v2102 = vadd.f32 %v1930, %v2084
      %s2103 = scalar_lea.vmem %s4, 48
      %v2104 = vld [vmem:[%s2103] sm:$0xff]
      %v2106 = vsel %vm999, %v928, 0
      %v2108 = vsel %vm999, %v898, 0
      %2110 = vmatprep.subr.mxu0 0.0
      %2111 = vmatpush1.msra.mxu0 %v2104
      %2112 = vmatprep.subr.mxu0 0.0
      %2113 = vmatpush1.msra.mxu0 0.0
      %2114 = vmatprep.subr.mxu0 0.0
      %2115 = vmatpush1.msra.mxu0 0.0
      %2116 = vmatprep.subr.mxu0 0.0
      %2117 = vmatpush1.msra.mxu0 0.0
      %2118 = vmatprep.subr.mxu0 0.0
      %2119 = vmatpush1.msra.mxu0 0.0
      %2120 = vmatprep.subr.mxu0 0.0
      %2121 = vmatpush1.msra.mxu0 0.0
      %2122 = vmatprep.subr.mxu0 0.0
      %2123 = vmatpush1.msra.mxu0 0.0
      %2124 = vmatprep.subr.mxu0 0.0
      %2125 = vmatpush1.msra.mxu0 0.0
      %2126 = vmatprep.subr.mxu0 0.0
      %2127 = vmatpush1.msra.mxu0 0.0
      %2128 = vmatprep.subr.mxu0 0.0
      %2129 = vmatpush1.msra.mxu0 0.0
      %2130 = vmatprep.subr.mxu0 0.0
      %2131 = vmatpush1.msra.mxu0 0.0
      %2132 = vmatprep.subr.mxu0 0.0
      %2133 = vmatpush1.msra.mxu0 0.0
      %2134 = vmatprep.subr.mxu0 0.0
      %2135 = vmatpush1.msra.mxu0 0.0
      %2136 = vmatprep.subr.mxu0 0.0
      %2137 = vmatpush1.msra.mxu0 0.0
      %2138 = vmatprep.subr.mxu0 0.0
      %2139 = vmatpush1.msra.mxu0 0.0
      %2140 = vmatprep.subr.mxu0 0.0
      %2141 = vmatpush1.msra.mxu0 0.0
      %2142 = vmatprep.subr.mxu0 0.0
      %2143 = vmatpush1.msra.mxu0 0.0
      %2144 = vmatprep.subr.mxu0 0.0
      %2145 = vmatpush1.msra.mxu0 0.0
      %2146 = vmatprep.subr.mxu0 0.0
      %2147 = vmatpush1.msra.mxu0 0.0
      %2148 = vmatprep.subr.mxu0 0.0
      %2149 = vmatpush1.msra.mxu0 0.0
      %2150 = vmatprep.subr.mxu0 0.0
      %2151 = vmatpush1.msra.mxu0 0.0
      %2152 = vmatprep.subr.mxu0 0.0
      %2153 = vmatpush1.msra.mxu0 0.0
      %2154 = vmatprep.subr.mxu0 0.0
      %2155 = vmatpush1.msra.mxu0 0.0
      %2156 = vmatprep.subr.mxu0 0.0
      %2157 = vmatpush1.msra.mxu0 0.0
      %2158 = vmatprep.subr.mxu0 0.0
      %2159 = vmatpush1.msra.mxu0 0.0
      %2160 = vmatprep.subr.mxu0 0.0
      %2161 = vmatpush1.msra.mxu0 0.0
      %2162 = vmatprep.subr.mxu0 0.0
      %2163 = vmatpush1.msra.mxu0 0.0
      %2164 = vmatprep.subr.mxu0 0.0
      %2165 = vmatpush1.msra.mxu0 0.0
      %2166 = vmatprep.subr.mxu0 0.0
      %2167 = vmatpush1.msra.mxu0 0.0
      %2168 = vmatprep.subr.mxu0 0.0
      %2169 = vmatpush1.msra.mxu0 0.0
      %2170 = vmatprep.subr.mxu0 0.0
      %2171 = vmatpush1.msra.mxu0 0.0
      %2172 = vmatprep.subr.mxu0 0.0
      %2173 = vmatpush1.msra.mxu0 0.0
      %2174 = vmatprep.mubr.f32.mxu0 0.0
      %2175 = vmatmul.mubr.f32.gmra.mrb[0].mxu0 %v1185
      %v2176 = vpop.f32.mrb[0].mxu0
      %v2177 = vadd.f32 0.0, %v2176
      %v2178 = vpop.f32.mrb[0].mxu0
      %2179 = vmatprep.mubr.f32.mxu0 0.0
      %2180 = vmatmul.mubr.f32.gmra.mrb[0].mxu0 %v1187
      %v2181 = vpop.f32.mrb[0].mxu0
      %v2182 = vadd.f32 0.0, %v2181
      %v2183 = vpop.f32.mrb[0].mxu0
      %2184 = vmatprep.mubr.f32.mxu0 0.0
      %2185 = vmatmul.mubr.f32.gmra.mrb[0].mxu0 %v1189
      %v2186 = vpop.f32.mrb[0].mxu0
      %v2187 = vadd.f32 0.0, %v2186
      %v2188 = vpop.f32.mrb[0].mxu0
      %2189 = vmatprep.mubr.f32.mxu0 0.0
      %2190 = vmatmul.mubr.f32.gmra.mrb[0].mxu0 %v1191
      %v2191 = vpop.f32.mrb[0].mxu0
      %v2192 = vadd.f32 0.0, %v2191
      %v2193 = vpop.f32.mrb[0].mxu0
      %2194 = vmatprep.mubr.f32.mxu0 0.0
      %2195 = vmatmul.mubr.f32.gmra.mrb[0].mxu0 %v1193
      %v2196 = vpop.f32.mrb[0].mxu0
      %v2197 = vadd.f32 0.0, %v2196
      %v2198 = vpop.f32.mrb[0].mxu0
      %2199 = vmatprep.mubr.f32.mxu0 0.0
      %2200 = vmatmul.mubr.f32.gmra.mrb[0].mxu0 %v1195
      %v2201 = vpop.f32.mrb[0].mxu0
      %v2202 = vadd.f32 0.0, %v2201
      %v2203 = vpop.f32.mrb[0].mxu0
      %2204 = vmatprep.mubr.f32.mxu0 0.0
      %2205 = vmatmul.mubr.f32.gmra.mrb[0].mxu0 %v1197
      %v2206 = vpop.f32.mrb[0].mxu0
      %v2207 = vadd.f32 0.0, %v2206
      %v2208 = vpop.f32.mrb[0].mxu0
      %2209 = vmatprep.mubr.f32.mxu0 0.0
      %2210 = vmatmul.mubr.f32.gmra.mrb[0].mxu0 %v1199
      %v2211 = vpop.f32.mrb[0].mxu0
      %v2212 = vadd.f32 0.0, %v2211
      %v2213 = vpop.f32.mrb[0].mxu0
      %2214 = vmatprep.mubr.f32.mxu0 0.0
      %2215 = vmatmul.mubr.f32.gmra.mrb[0].mxu0 %v1201
      %v2216 = vpop.f32.mrb[0].mxu0
      %v2217 = vadd.f32 0.0, %v2216
      %v2218 = vpop.f32.mrb[0].mxu0
      %2219 = vmatprep.mubr.f32.mxu0 0.0
      %2220 = vmatmul.mubr.f32.gmra.mrb[0].mxu0 %v1203
      %v2221 = vpop.f32.mrb[0].mxu0
      %v2222 = vadd.f32 0.0, %v2221
      %v2223 = vpop.f32.mrb[0].mxu0
      %2224 = vmatprep.mubr.f32.mxu0 0.0
      %2225 = vmatmul.mubr.f32.gmra.mrb[0].mxu0 %v1205
      %v2226 = vpop.f32.mrb[0].mxu0
      %v2227 = vadd.f32 0.0, %v2226
      %v2228 = vpop.f32.mrb[0].mxu0
      %2229 = vmatprep.mubr.f32.mxu0 0.0
      %2230 = vmatmul.mubr.f32.gmra.mrb[0].mxu0 %v1207
      %v2231 = vpop.f32.mrb[0].mxu0
      %v2232 = vadd.f32 0.0, %v2231
      %v2233 = vpop.f32.mrb[0].mxu0
      %2234 = vmatprep.mubr.f32.mxu0 0.0
      %2235 = vmatmul.mubr.f32.gmra.mrb[0].mxu0 %v1593
      %v2236 = vpop.f32.mrb[0].mxu0
      %v2237 = vadd.f32 0.0, %v2236
      %v2238 = vpop.f32.mrb[0].mxu0
      %2239 = vmatprep.mubr.f32.mxu0 0.0
      %2240 = vmatmul.mubr.f32.gmra.mrb[0].mxu0 %v1595
      %v2241 = vpop.f32.mrb[0].mxu0
      %v2242 = vadd.f32 0.0, %v2241
      %v2243 = vpop.f32.mrb[0].mxu0
      %2244 = vmatprep.mubr.f32.mxu0 0.0
      %2245 = vmatmul.mubr.f32.gmra.mrb[0].mxu0 %v2106
      %v2246 = vpop.f32.mrb[0].mxu0
      %v2247 = vadd.f32 0.0, %v2246
      %v2248 = vpop.f32.mrb[0].mxu0
      %2249 = vmatprep.mubr.f32.mxu0 0.0
      %2250 = vmatmul.mubr.f32.gmra.mrb[0].mxu0 %v2108
      %v2251 = vpop.f32.mrb[0].mxu0
      %v2252 = vadd.f32 0.0, %v2251
      %v2253 = vpop.f32.mrb[0].mxu0
      %2254 = vdwg.mxu0
      %v2255 = vadd.f32 %v2087, %v2177
      %v2256 = vadd.f32 %v2088, %v2182
      %v2257 = vadd.f32 %v2089, %v2187
      %v2258 = vadd.f32 %v2090, %v2192
      %v2259 = vadd.f32 %v2091, %v2197
      %v2260 = vadd.f32 %v2092, %v2202
      %v2261 = vadd.f32 %v2093, %v2207
      %v2262 = vadd.f32 %v2094, %v2212
      %v2263 = vadd.f32 %v2095, %v2217
      %v2264 = vadd.f32 %v2096, %v2222
      %v2265 = vadd.f32 %v2097, %v2227
      %v2266 = vadd.f32 %v2098, %v2232
      %v2267 = vadd.f32 %v2099, %v2237
      %v2268 = vadd.f32 %v2100, %v2242
      %v2269 = vadd.f32 %v2101, %v2247
      %v2270 = vadd.f32 %v2102, %v2252
      %v2272 = vrot.slane %v928, 1
      %v2273 = vrot.slane %v898, 1
      %v2274 = vsel %vm956, %v2272, %v2273
      %v2275 = vrot.slane %v938, 1
      %v2276 = vsel %vm956, %v2273, %v2275
      %s2277 = scalar_lea.vmem %s4, 56
      %v2278 = vld [vmem:[%s2277] sm:$0xff]
      %v2279 = vsel %vm999, %v2274, 0
      %v2281 = vsel %vm999, %v2276, 0
      %2283 = vmatprep.subr.mxu0 0.0
      %2284 = vmatpush1.msra.mxu0 %v2278
      %2285 = vmatprep.subr.mxu0 0.0
      %2286 = vmatpush1.msra.mxu0 0.0
      %2287 = vmatprep.subr.mxu0 0.0
      %2288 = vmatpush1.msra.mxu0 0.0
      %2289 = vmatprep.subr.mxu0 0.0
      %2290 = vmatpush1.msra.mxu0 0.0
      %2291 = vmatprep.subr.mxu0 0.0
      %2292 = vmatpush1.msra.mxu0 0.0
      %2293 = vmatprep.subr.mxu0 0.0
      %2294 = vmatpush1.msra.mxu0 0.0
      %2295 = vmatprep.subr.mxu0 0.0
      %2296 = vmatpush1.msra.mxu0 0.0
      %2297 = vmatprep.subr.mxu0 0.0
      %2298 = vmatpush1.msra.mxu0 0.0
      %2299 = vmatprep.subr.mxu0 0.0
      %2300 = vmatpush1.msra.mxu0 0.0
      %2301 = vmatprep.subr.mxu0 0.0
      %2302 = vmatpush1.msra.mxu0 0.0
      %2303 = vmatprep.subr.mxu0 0.0
      %2304 = vmatpush1.msra.mxu0 0.0
      %2305 = vmatprep.subr.mxu0 0.0
      %2306 = vmatpush1.msra.mxu0 0.0
      %2307 = vmatprep.subr.mxu0 0.0
      %2308 = vmatpush1.msra.mxu0 0.0
      %2309 = vmatprep.subr.mxu0 0.0
      %2310 = vmatpush1.msra.mxu0 0.0
      %2311 = vmatprep.subr.mxu0 0.0
      %2312 = vmatpush1.msra.mxu0 0.0
      %2313 = vmatprep.subr.mxu0 0.0
      %2314 = vmatpush1.msra.mxu0 0.0
      %2315 = vmatprep.subr.mxu0 0.0
      %2316 = vmatpush1.msra.mxu0 0.0
      %2317 = vmatprep.subr.mxu0 0.0
      %2318 = vmatpush1.msra.mxu0 0.0
      %2319 = vmatprep.subr.mxu0 0.0
      %2320 = vmatpush1.msra.mxu0 0.0
      %2321 = vmatprep.subr.mxu0 0.0
      %2322 = vmatpush1.msra.mxu0 0.0
      %2323 = vmatprep.subr.mxu0 0.0
      %2324 = vmatpush1.msra.mxu0 0.0
      %2325 = vmatprep.subr.mxu0 0.0
      %2326 = vmatpush1.msra.mxu0 0.0
      %2327 = vmatprep.subr.mxu0 0.0
      %2328 = vmatpush1.msra.mxu0 0.0
      %2329 = vmatprep.subr.mxu0 0.0
      %2330 = vmatpush1.msra.mxu0 0.0
      %2331 = vmatprep.subr.mxu0 0.0
      %2332 = vmatpush1.msra.mxu0 0.0
      %2333 = vmatprep.subr.mxu0 0.0
      %2334 = vmatpush1.msra.mxu0 0.0
      %2335 = vmatprep.subr.mxu0 0.0
      %2336 = vmatpush1.msra.mxu0 0.0
      %2337 = vmatprep.subr.mxu0 0.0
      %2338 = vmatpush1.msra.mxu0 0.0
      %2339 = vmatprep.subr.mxu0 0.0
      %2340 = vmatpush1.msra.mxu0 0.0
      %2341 = vmatprep.subr.mxu0 0.0
      %2342 = vmatpush1.msra.mxu0 0.0
      %2343 = vmatprep.subr.mxu0 0.0
      %2344 = vmatpush1.msra.mxu0 0.0
      %2345 = vmatprep.subr.mxu0 0.0
      %2346 = vmatpush1.msra.mxu0 0.0
      %2347 = vmatprep.mubr.f32.mxu0 0.0
      %2348 = vmatmul.mubr.f32.gmra.mrb[0].mxu0 %v1008
      %v2349 = vpop.f32.mrb[0].mxu0
      %v2350 = vadd.f32 0.0, %v2349
      %v2351 = vpop.f32.mrb[0].mxu0
      %2352 = vmatprep.mubr.f32.mxu0 0.0
      %2353 = vmatmul.mubr.f32.gmra.mrb[0].mxu0 %v1010
      %v2354 = vpop.f32.mrb[0].mxu0
      %v2355 = vadd.f32 0.0, %v2354
      %v2356 = vpop.f32.mrb[0].mxu0
      %2357 = vmatprep.mubr.f32.mxu0 0.0
      %2358 = vmatmul.mubr.f32.gmra.mrb[0].mxu0 %v1012
      %v2359 = vpop.f32.mrb[0].mxu0
      %v2360 = vadd.f32 0.0, %v2359
      %v2361 = vpop.f32.mrb[0].mxu0
      %2362 = vmatprep.mubr.f32.mxu0 0.0
      %2363 = vmatmul.mubr.f32.gmra.mrb[0].mxu0 %v1014
      %v2364 = vpop.f32.mrb[0].mxu0
      %v2365 = vadd.f32 0.0, %v2364
      %v2366 = vpop.f32.mrb[0].mxu0
      %2367 = vmatprep.mubr.f32.mxu0 0.0
      %2368 = vmatmul.mubr.f32.gmra.mrb[0].mxu0 %v1016
      %v2369 = vpop.f32.mrb[0].mxu0
      %v2370 = vadd.f32 0.0, %v2369
      %v2371 = vpop.f32.mrb[0].mxu0
      %2372 = vmatprep.mubr.f32.mxu0 0.0
      %2373 = vmatmul.mubr.f32.gmra.mrb[0].mxu0 %v1018
      %v2374 = vpop.f32.mrb[0].mxu0
      %v2375 = vadd.f32 0.0, %v2374
      %v2376 = vpop.f32.mrb[0].mxu0
      %2377 = vmatprep.mubr.f32.mxu0 0.0
      %2378 = vmatmul.mubr.f32.gmra.mrb[0].mxu0 %v1020
      %v2379 = vpop.f32.mrb[0].mxu0
      %v2380 = vadd.f32 0.0, %v2379
      %v2381 = vpop.f32.mrb[0].mxu0
      %2382 = vmatprep.mubr.f32.mxu0 0.0
      %2383 = vmatmul.mubr.f32.gmra.mrb[0].mxu0 %v1022
      %v2384 = vpop.f32.mrb[0].mxu0
      %v2385 = vadd.f32 0.0, %v2384
      %v2386 = vpop.f32.mrb[0].mxu0
      %2387 = vmatprep.mubr.f32.mxu0 0.0
      %2388 = vmatmul.mubr.f32.gmra.mrb[0].mxu0 %v1024
      %v2389 = vpop.f32.mrb[0].mxu0
      %v2390 = vadd.f32 0.0, %v2389
      %v2391 = vpop.f32.mrb[0].mxu0
      %2392 = vmatprep.mubr.f32.mxu0 0.0
      %2393 = vmatmul.mubr.f32.gmra.mrb[0].mxu0 %v1026
      %v2394 = vpop.f32.mrb[0].mxu0
      %v2395 = vadd.f32 0.0, %v2394
      %v2396 = vpop.f32.mrb[0].mxu0
      %2397 = vmatprep.mubr.f32.mxu0 0.0
      %2398 = vmatmul.mubr.f32.gmra.mrb[0].mxu0 %v1028
      %v2399 = vpop.f32.mrb[0].mxu0
      %v2400 = vadd.f32 0.0, %v2399
      %v2401 = vpop.f32.mrb[0].mxu0
      %2402 = vmatprep.mubr.f32.mxu0 0.0
      %2403 = vmatmul.mubr.f32.gmra.mrb[0].mxu0 %v1030
      %v2404 = vpop.f32.mrb[0].mxu0
      %v2405 = vadd.f32 0.0, %v2404
      %v2406 = vpop.f32.mrb[0].mxu0
      %2407 = vmatprep.mubr.f32.mxu0 0.0
      %2408 = vmatmul.mubr.f32.gmra.mrb[0].mxu0 %v1766
      %v2409 = vpop.f32.mrb[0].mxu0
      %v2410 = vadd.f32 0.0, %v2409
      %v2411 = vpop.f32.mrb[0].mxu0
      %2412 = vmatprep.mubr.f32.mxu0 0.0
      %2413 = vmatmul.mubr.f32.gmra.mrb[0].mxu0 %v1768
      %v2414 = vpop.f32.mrb[0].mxu0
      %v2415 = vadd.f32 0.0, %v2414
      %v2416 = vpop.f32.mrb[0].mxu0
      %2417 = vmatprep.mubr.f32.mxu0 0.0
      %2418 = vmatmul.mubr.f32.gmra.mrb[0].mxu0 %v2279
      %v2419 = vpop.f32.mrb[0].mxu0
      %v2420 = vadd.f32 0.0, %v2419
      %v2421 = vpop.f32.mrb[0].mxu0
      %2422 = vmatprep.mubr.f32.mxu0 0.0
      %2423 = vmatmul.mubr.f32.gmra.mrb[0].mxu0 %v2281
      %v2424 = vpop.f32.mrb[0].mxu0
      %v2425 = vadd.f32 0.0, %v2424
      %v2426 = vpop.f32.mrb[0].mxu0
      %2427 = vdwg.mxu0
      %v2428 = vadd.f32 %v2255, %v2350
      %v2429 = vadd.f32 %v2256, %v2355
      %v2430 = vadd.f32 %v2257, %v2360
      %v2431 = vadd.f32 %v2258, %v2365
      %v2432 = vadd.f32 %v2259, %v2370
      %v2433 = vadd.f32 %v2260, %v2375
      %v2434 = vadd.f32 %v2261, %v2380
      %v2435 = vadd.f32 %v2262, %v2385
      %v2436 = vadd.f32 %v2263, %v2390
      %v2437 = vadd.f32 %v2264, %v2395
      %v2438 = vadd.f32 %v2265, %v2400
      %v2439 = vadd.f32 %v2266, %v2405
      %v2440 = vadd.f32 %v2267, %v2410
      %v2441 = vadd.f32 %v2268, %v2415
      %v2442 = vadd.f32 %v2269, %v2420
      %v2443 = vadd.f32 %v2270, %v2425
      %v2444 = vrot.slane %v928, 2
      %v2445 = vrot.slane %v898, 2
      %v2446 = vsel %vm1354, %v2444, %v2445
      %v2447 = vrot.slane %v938, 2
      %v2448 = vsel %vm1354, %v2445, %v2447
      %s2449 = scalar_lea.vmem %s4, 64
      %v2450 = vld [vmem:[%s2449] sm:$0xff]
      %v2451 = vsel %vm999, %v2446, 0
      %v2453 = vsel %vm999, %v2448, 0
      %2455 = vmatprep.subr.mxu0 0.0
      %2456 = vmatpush1.msra.mxu0 %v2450
      %2457 = vmatprep.subr.mxu0 0.0
      %2458 = vmatpush1.msra.mxu0 0.0
      %2459 = vmatprep.subr.mxu0 0.0
      %2460 = vmatpush1.msra.mxu0 0.0
      %2461 = vmatprep.subr.mxu0 0.0
      %2462 = vmatpush1.msra.mxu0 0.0
      %2463 = vmatprep.subr.mxu0 0.0
      %2464 = vmatpush1.msra.mxu0 0.0
      %2465 = vmatprep.subr.mxu0 0.0
      %2466 = vmatpush1.msra.mxu0 0.0
      %2467 = vmatprep.subr.mxu0 0.0
      %2468 = vmatpush1.msra.mxu0 0.0
      %2469 = vmatprep.subr.mxu0 0.0
      %2470 = vmatpush1.msra.mxu0 0.0
      %2471 = vmatprep.subr.mxu0 0.0
      %2472 = vmatpush1.msra.mxu0 0.0
      %2473 = vmatprep.subr.mxu0 0.0
      %2474 = vmatpush1.msra.mxu0 0.0
      %2475 = vmatprep.subr.mxu0 0.0
      %2476 = vmatpush1.msra.mxu0 0.0
      %2477 = vmatprep.subr.mxu0 0.0
      %2478 = vmatpush1.msra.mxu0 0.0
      %2479 = vmatprep.subr.mxu0 0.0
      %2480 = vmatpush1.msra.mxu0 0.0
      %2481 = vmatprep.subr.mxu0 0.0
      %2482 = vmatpush1.msra.mxu0 0.0
      %2483 = vmatprep.subr.mxu0 0.0
      %2484 = vmatpush1.msra.mxu0 0.0
      %2485 = vmatprep.subr.mxu0 0.0
      %2486 = vmatpush1.msra.mxu0 0.0
      %2487 = vmatprep.subr.mxu0 0.0
      %2488 = vmatpush1.msra.mxu0 0.0
      %2489 = vmatprep.subr.mxu0 0.0
      %2490 = vmatpush1.msra.mxu0 0.0
      %2491 = vmatprep.subr.mxu0 0.0
      %2492 = vmatpush1.msra.mxu0 0.0
      %2493 = vmatprep.subr.mxu0 0.0
      %2494 = vmatpush1.msra.mxu0 0.0
      %2495 = vmatprep.subr.mxu0 0.0
      %2496 = vmatpush1.msra.mxu0 0.0
      %2497 = vmatprep.subr.mxu0 0.0
      %2498 = vmatpush1.msra.mxu0 0.0
      %2499 = vmatprep.subr.mxu0 0.0
      %2500 = vmatpush1.msra.mxu0 0.0
      %2501 = vmatprep.subr.mxu0 0.0
      %2502 = vmatpush1.msra.mxu0 0.0
      %2503 = vmatprep.subr.mxu0 0.0
      %2504 = vmatpush1.msra.mxu0 0.0
      %2505 = vmatprep.subr.mxu0 0.0
      %2506 = vmatpush1.msra.mxu0 0.0
      %2507 = vmatprep.subr.mxu0 0.0
      %2508 = vmatpush1.msra.mxu0 0.0
      %2509 = vmatprep.subr.mxu0 0.0
      %2510 = vmatpush1.msra.mxu0 0.0
      %2511 = vmatprep.subr.mxu0 0.0
      %2512 = vmatpush1.msra.mxu0 0.0
      %2513 = vmatprep.subr.mxu0 0.0
      %2514 = vmatpush1.msra.mxu0 0.0
      %2515 = vmatprep.subr.mxu0 0.0
      %2516 = vmatpush1.msra.mxu0 0.0
      %2517 = vmatprep.subr.mxu0 0.0
      %2518 = vmatpush1.msra.mxu0 0.0
      %2519 = vmatprep.mubr.f32.mxu0 0.0
      %2520 = vmatmul.mubr.f32.gmra.mrb[0].mxu0 %v1405
      %v2521 = vpop.f32.mrb[0].mxu0
      %v2522 = vadd.f32 0.0, %v2521
      %v2523 = vpop.f32.mrb[0].mxu0
      %2524 = vmatprep.mubr.f32.mxu0 0.0
      %2525 = vmatmul.mubr.f32.gmra.mrb[0].mxu0 %v1407
      %v2526 = vpop.f32.mrb[0].mxu0
      %v2527 = vadd.f32 0.0, %v2526
      %v2528 = vpop.f32.mrb[0].mxu0
      %2529 = vmatprep.mubr.f32.mxu0 0.0
      %2530 = vmatmul.mubr.f32.gmra.mrb[0].mxu0 %v1409
      %v2531 = vpop.f32.mrb[0].mxu0
      %v2532 = vadd.f32 0.0, %v2531
      %v2533 = vpop.f32.mrb[0].mxu0
      %2534 = vmatprep.mubr.f32.mxu0 0.0
      %2535 = vmatmul.mubr.f32.gmra.mrb[0].mxu0 %v1411
      %v2536 = vpop.f32.mrb[0].mxu0
      %v2537 = vadd.f32 0.0, %v2536
      %v2538 = vpop.f32.mrb[0].mxu0
      %2539 = vmatprep.mubr.f32.mxu0 0.0
      %2540 = vmatmul.mubr.f32.gmra.mrb[0].mxu0 %v1413
      %v2541 = vpop.f32.mrb[0].mxu0
      %v2542 = vadd.f32 0.0, %v2541
      %v2543 = vpop.f32.mrb[0].mxu0
      %2544 = vmatprep.mubr.f32.mxu0 0.0
      %2545 = vmatmul.mubr.f32.gmra.mrb[0].mxu0 %v1415
      %v2546 = vpop.f32.mrb[0].mxu0
      %v2547 = vadd.f32 0.0, %v2546
      %v2548 = vpop.f32.mrb[0].mxu0
      %2549 = vmatprep.mubr.f32.mxu0 0.0
      %2550 = vmatmul.mubr.f32.gmra.mrb[0].mxu0 %v1417
      %v2551 = vpop.f32.mrb[0].mxu0
      %v2552 = vadd.f32 0.0, %v2551
      %v2553 = vpop.f32.mrb[0].mxu0
      %2554 = vmatprep.mubr.f32.mxu0 0.0
      %2555 = vmatmul.mubr.f32.gmra.mrb[0].mxu0 %v1419
      %v2556 = vpop.f32.mrb[0].mxu0
      %v2557 = vadd.f32 0.0, %v2556
      %v2558 = vpop.f32.mrb[0].mxu0
      %2559 = vmatprep.mubr.f32.mxu0 0.0
      %2560 = vmatmul.mubr.f32.gmra.mrb[0].mxu0 %v1421
      %v2561 = vpop.f32.mrb[0].mxu0
      %v2562 = vadd.f32 0.0, %v2561
      %v2563 = vpop.f32.mrb[0].mxu0
      %2564 = vmatprep.mubr.f32.mxu0 0.0
      %2565 = vmatmul.mubr.f32.gmra.mrb[0].mxu0 %v1423
      %v2566 = vpop.f32.mrb[0].mxu0
      %v2567 = vadd.f32 0.0, %v2566
      %v2568 = vpop.f32.mrb[0].mxu0
      %2569 = vmatprep.mubr.f32.mxu0 0.0
      %2570 = vmatmul.mubr.f32.gmra.mrb[0].mxu0 %v1425
      %v2571 = vpop.f32.mrb[0].mxu0
      %v2572 = vadd.f32 0.0, %v2571
      %v2573 = vpop.f32.mrb[0].mxu0
      %2574 = vmatprep.mubr.f32.mxu0 0.0
      %2575 = vmatmul.mubr.f32.gmra.mrb[0].mxu0 %v1427
      %v2576 = vpop.f32.mrb[0].mxu0
      %v2577 = vadd.f32 0.0, %v2576
      %v2578 = vpop.f32.mrb[0].mxu0
      %2579 = vmatprep.mubr.f32.mxu0 0.0
      %2580 = vmatmul.mubr.f32.gmra.mrb[0].mxu0 %v1938
      %v2581 = vpop.f32.mrb[0].mxu0
      %v2582 = vadd.f32 0.0, %v2581
      %v2583 = vpop.f32.mrb[0].mxu0
      %2584 = vmatprep.mubr.f32.mxu0 0.0
      %2585 = vmatmul.mubr.f32.gmra.mrb[0].mxu0 %v1940
      %v2586 = vpop.f32.mrb[0].mxu0
      %v2587 = vadd.f32 0.0, %v2586
      %v2588 = vpop.f32.mrb[0].mxu0
      %2589 = vmatprep.mubr.f32.mxu0 0.0
      %2590 = vmatmul.mubr.f32.gmra.mrb[0].mxu0 %v2451
      %v2591 = vpop.f32.mrb[0].mxu0
      %v2592 = vadd.f32 0.0, %v2591
      %v2593 = vpop.f32.mrb[0].mxu0
      %2594 = vmatprep.mubr.f32.mxu0 0.0
      %2595 = vmatmul.mubr.f32.gmra.mrb[0].mxu0 %v2453
      %v2596 = vpop.f32.mrb[0].mxu0
      %v2597 = vadd.f32 0.0, %v2596
      %v2598 = vpop.f32.mrb[0].mxu0
      %2599 = vdwg.mxu0
      %v2600 = vadd.f32 %v2428, %v2522
      %v2601 = vadd.f32 %v2429, %v2527
      %v2602 = vadd.f32 %v2430, %v2532
      %v2603 = vadd.f32 %v2431, %v2537
      %v2604 = vadd.f32 %v2432, %v2542
      %v2605 = vadd.f32 %v2433, %v2547
      %v2606 = vadd.f32 %v2434, %v2552
      %v2607 = vadd.f32 %v2435, %v2557
      %v2608 = vadd.f32 %v2436, %v2562
      %v2609 = vadd.f32 %v2437, %v2567
      %v2610 = vadd.f32 %v2438, %v2572
      %v2611 = vadd.f32 %v2439, %v2577
      %v2612 = vadd.f32 %v2440, %v2582
      %v2613 = vadd.f32 %v2441, %v2587
      %v2614 = vadd.f32 %v2442, %v2592
      %v2615 = vadd.f32 %v2443, %v2597
      %v2616 = vld [vmem:[%s5] sm:$0x1]
      %v2618 = vlaneseq
      %v2619 = vshrl.u32 %v2618, 7
      %v2620 = vsub.s32 0, %v2619
      %v2621 = vrot.slane %v2616, %v2620
      %v2623 = vadd.f32 %v2600, %v2621
      %v2624 = vadd.f32 %v2601, %v2621
      %v2625 = vadd.f32 %v2602, %v2621
      %v2626 = vadd.f32 %v2603, %v2621
      %v2627 = vadd.f32 %v2604, %v2621
      %v2628 = vadd.f32 %v2605, %v2621
      %v2629 = vadd.f32 %v2606, %v2621
      %v2630 = vadd.f32 %v2607, %v2621
      %v2631 = vadd.f32 %v2608, %v2621
      %v2632 = vadd.f32 %v2609, %v2621
      %v2633 = vadd.f32 %v2610, %v2621
      %v2634 = vadd.f32 %v2611, %v2621
      %v2635 = vadd.f32 %v2612, %v2621
      %v2636 = vadd.f32 %v2613, %v2621
      %v2637 = vadd.f32 %v2614, %v2621
      %v2638 = vadd.f32 %v2615, %v2621
      %v2639 = vld [vmem:[%s544] sm:$0xff]
      %v2640 = vld [vmem:[%s544 + $0x8] sm:$0xff]
      %v2641 = vld [vmem:[%s544 + $0x10] sm:$0xff]
      %v2642 = vld [vmem:[%s544 + $0x18] sm:$0xff]
      %v2643 = vld [vmem:[%s544 + $0x20] sm:$0xff]
      %v2644 = vld [vmem:[%s544 + $0x28] sm:$0xff]
      %v2645 = vld [vmem:[%s544 + $0x30] sm:$0xff]
      %v2646 = vld [vmem:[%s544 + $0x38] sm:$0xff]
      %v2647 = vld [vmem:[%s544 + $0x40] sm:$0xff]
      %v2648 = vld [vmem:[%s544 + $0x48] sm:$0xff]
      %v2649 = vld [vmem:[%s544 + $0x50] sm:$0xff]
      %v2650 = vld [vmem:[%s544 + $0x58] sm:$0xff]
      %v2651 = vld [vmem:[%s544 + $0x60] sm:$0xff]
      %v2652 = vld [vmem:[%s544 + $0x68] sm:$0xff]
      %v2653 = vld [vmem:[%s544 + $0x70] sm:$0xff]
      %v2654 = vld [vmem:[%s544 + $0x78] sm:$0xff]
      %v2655 = vld [vmem:[%s7] sm:$0xf]
      %v2656 = vld [vmem:[%s8] sm:$0x1]
      %v2658 = vlaneseq
      %v2659 = vshrl.u32 %v2658, 7
      %v2660 = vsub.s32 0, %v2659
      %v2661 = vrot.slane %v2656, %v2660
      %vm2663 = vcmask 31744
      %v2665 = vsel %vm2663, %v2639, 0
      %v2668 = vsel %vm2663, %v2640, 0
      %v2671 = vsel %vm2663, %v2641, 0
      %v2674 = vsel %vm2663, %v2642, 0
      %v2677 = vsel %vm2663, %v2643, 0
      %v2680 = vsel %vm2663, %v2644, 0
      %v2683 = vsel %vm2663, %v2645, 0
      %v2686 = vsel %vm2663, %v2646, 0
      %v2689 = vsel %vm2663, %v2647, 0
      %v2692 = vsel %vm2663, %v2648, 0
      %v2695 = vsel %vm2663, %v2649, 0
      %v2698 = vsel %vm2663, %v2650, 0
      %v2701 = vsel %vm2663, %v2651, 0
      %v2704 = vsel %vm2663, %v2652, 0
      %v2707 = vsel %vm2663, %v2653, 0
      %v2710 = vsel %vm2663, %v2654, 0
      %vm2712 = vcmask 1043456
      %v2714 = vsel %vm2712, %v2655, 0
      %2716 = vmatprep.subr.mxu0 0.0
      %2717 = vmatpush1.msra.mxu0 %v2714
      %2718 = vmatprep.subr.mxu0 0.0
      %2719 = vmatpush1.msra.mxu0 0.0
      %2720 = vmatprep.subr.mxu0 0.0
      %2721 = vmatpush1.msra.mxu0 0.0
      %2722 = vmatprep.subr.mxu0 0.0
      %2723 = vmatpush1.msra.mxu0 0.0
      %2724 = vmatprep.subr.mxu0 0.0
      %2725 = vmatpush1.msra.mxu0 0.0
      %2726 = vmatprep.subr.mxu0 0.0
      %2727 = vmatpush1.msra.mxu0 0.0
      %2728 = vmatprep.subr.mxu0 0.0
      %2729 = vmatpush1.msra.mxu0 0.0
      %2730 = vmatprep.subr.mxu0 0.0
      %2731 = vmatpush1.msra.mxu0 0.0
      %2732 = vmatprep.subr.mxu0 0.0
      %2733 = vmatpush1.msra.mxu0 0.0
      %2734 = vmatprep.subr.mxu0 0.0
      %2735 = vmatpush1.msra.mxu0 0.0
      %2736 = vmatprep.subr.mxu0 0.0
      %2737 = vmatpush1.msra.mxu0 0.0
      %2738 = vmatprep.subr.mxu0 0.0
      %2739 = vmatpush1.msra.mxu0 0.0
      %2740 = vmatprep.subr.mxu0 0.0
      %2741 = vmatpush1.msra.mxu0 0.0
      %2742 = vmatprep.subr.mxu0 0.0
      %2743 = vmatpush1.msra.mxu0 0.0
      %2744 = vmatprep.subr.mxu0 0.0
      %2745 = vmatpush1.msra.mxu0 0.0
      %2746 = vmatprep.subr.mxu0 0.0
      %2747 = vmatpush1.msra.mxu0 0.0
      %2748 = vmatprep.subr.mxu0 0.0
      %2749 = vmatpush1.msra.mxu0 0.0
      %2750 = vmatprep.subr.mxu0 0.0
      %2751 = vmatpush1.msra.mxu0 0.0
      %2752 = vmatprep.subr.mxu0 0.0
      %2753 = vmatpush1.msra.mxu0 0.0
      %2754 = vmatprep.subr.mxu0 0.0
      %2755 = vmatpush1.msra.mxu0 0.0
      %2756 = vmatprep.subr.mxu0 0.0
      %2757 = vmatpush1.msra.mxu0 0.0
      %2758 = vmatprep.subr.mxu0 0.0
      %2759 = vmatpush1.msra.mxu0 0.0
      %2760 = vmatprep.subr.mxu0 0.0
      %2761 = vmatpush1.msra.mxu0 0.0
      %2762 = vmatprep.subr.mxu0 0.0
      %2763 = vmatpush1.msra.mxu0 0.0
      %2764 = vmatprep.subr.mxu0 0.0
      %2765 = vmatpush1.msra.mxu0 0.0
      %2766 = vmatprep.subr.mxu0 0.0
      %2767 = vmatpush1.msra.mxu0 0.0
      %2768 = vmatprep.subr.mxu0 0.0
      %2769 = vmatpush1.msra.mxu0 0.0
      %2770 = vmatprep.subr.mxu0 0.0
      %2771 = vmatpush1.msra.mxu0 0.0
      %2772 = vmatprep.subr.mxu0 0.0
      %2773 = vmatpush1.msra.mxu0 0.0
      %2774 = vmatprep.subr.mxu0 0.0
      %2775 = vmatpush1.msra.mxu0 0.0
      %2776 = vmatprep.subr.mxu0 0.0
      %2777 = vmatpush1.msra.mxu0 0.0
      %2778 = vmatprep.subr.mxu0 0.0
      %2779 = vmatpush1.msra.mxu0 0.0
      %2780 = vmatprep.mubr.f32.mxu0 0.0
      %2781 = vmatmul.mubr.f32.gmra.mrb[0].mxu0 %v2665
      %v2782 = vpop.f32.mrb[0].mxu0
      %v2783 = vadd.f32 %v2661, %v2782
      %v2784 = vpop.f32.mrb[0].mxu0
      %2785 = vmatprep.mubr.f32.mxu0 0.0
      %2786 = vmatmul.mubr.f32.gmra.mrb[0].mxu0 %v2668
      %v2787 = vpop.f32.mrb[0].mxu0
      %v2788 = vadd.f32 %v2661, %v2787
      %v2789 = vpop.f32.mrb[0].mxu0
      %2790 = vmatprep.mubr.f32.mxu0 0.0
      %2791 = vmatmul.mubr.f32.gmra.mrb[0].mxu0 %v2671
      %v2792 = vpop.f32.mrb[0].mxu0
      %v2793 = vadd.f32 %v2661, %v2792
      %v2794 = vpop.f32.mrb[0].mxu0
      %2795 = vmatprep.mubr.f32.mxu0 0.0
      %2796 = vmatmul.mubr.f32.gmra.mrb[0].mxu0 %v2674
      %v2797 = vpop.f32.mrb[0].mxu0
      %v2798 = vadd.f32 %v2661, %v2797
      %v2799 = vpop.f32.mrb[0].mxu0
      %2800 = vmatprep.mubr.f32.mxu0 0.0
      %2801 = vmatmul.mubr.f32.gmra.mrb[0].mxu0 %v2677
      %v2802 = vpop.f32.mrb[0].mxu0
      %v2803 = vadd.f32 %v2661, %v2802
      %v2804 = vpop.f32.mrb[0].mxu0
      %2805 = vmatprep.mubr.f32.mxu0 0.0
      %2806 = vmatmul.mubr.f32.gmra.mrb[0].mxu0 %v2680
      %v2807 = vpop.f32.mrb[0].mxu0
      %v2808 = vadd.f32 %v2661, %v2807
      %v2809 = vpop.f32.mrb[0].mxu0
      %2810 = vmatprep.mubr.f32.mxu0 0.0
      %2811 = vmatmul.mubr.f32.gmra.mrb[0].mxu0 %v2683
      %v2812 = vpop.f32.mrb[0].mxu0
      %v2813 = vadd.f32 %v2661, %v2812
      %v2814 = vpop.f32.mrb[0].mxu0
      %2815 = vmatprep.mubr.f32.mxu0 0.0
      %2816 = vmatmul.mubr.f32.gmra.mrb[0].mxu0 %v2686
      %v2817 = vpop.f32.mrb[0].mxu0
      %v2818 = vadd.f32 %v2661, %v2817
      %v2819 = vpop.f32.mrb[0].mxu0
      %2820 = vmatprep.mubr.f32.mxu0 0.0
      %2821 = vmatmul.mubr.f32.gmra.mrb[0].mxu0 %v2689
      %v2822 = vpop.f32.mrb[0].mxu0
      %v2823 = vadd.f32 %v2661, %v2822
      %v2824 = vpop.f32.mrb[0].mxu0
      %2825 = vmatprep.mubr.f32.mxu0 0.0
      %2826 = vmatmul.mubr.f32.gmra.mrb[0].mxu0 %v2692
      %v2827 = vpop.f32.mrb[0].mxu0
      %v2828 = vadd.f32 %v2661, %v2827
      %v2829 = vpop.f32.mrb[0].mxu0
      %2830 = vmatprep.mubr.f32.mxu0 0.0
      %2831 = vmatmul.mubr.f32.gmra.mrb[0].mxu0 %v2695
      %v2832 = vpop.f32.mrb[0].mxu0
      %v2833 = vadd.f32 %v2661, %v2832
      %v2834 = vpop.f32.mrb[0].mxu0
      %2835 = vmatprep.mubr.f32.mxu0 0.0
      %2836 = vmatmul.mubr.f32.gmra.mrb[0].mxu0 %v2698
      %v2837 = vpop.f32.mrb[0].mxu0
      %v2838 = vadd.f32 %v2661, %v2837
      %v2839 = vpop.f32.mrb[0].mxu0
      %2840 = vmatprep.mubr.f32.mxu0 0.0
      %2841 = vmatmul.mubr.f32.gmra.mrb[0].mxu0 %v2701
      %v2842 = vpop.f32.mrb[0].mxu0
      %v2843 = vadd.f32 %v2661, %v2842
      %v2844 = vpop.f32.mrb[0].mxu0
      %2845 = vmatprep.mubr.f32.mxu0 0.0
      %2846 = vmatmul.mubr.f32.gmra.mrb[0].mxu0 %v2704
      %v2847 = vpop.f32.mrb[0].mxu0
      %v2848 = vadd.f32 %v2661, %v2847
      %v2849 = vpop.f32.mrb[0].mxu0
      %2850 = vmatprep.mubr.f32.mxu0 0.0
      %2851 = vmatmul.mubr.f32.gmra.mrb[0].mxu0 %v2707
      %v2852 = vpop.f32.mrb[0].mxu0
      %v2853 = vadd.f32 %v2661, %v2852
      %v2854 = vpop.f32.mrb[0].mxu0
      %2855 = vmatprep.mubr.f32.mxu0 0.0
      %2856 = vmatmul.mubr.f32.gmra.mrb[0].mxu0 %v2710
      %v2857 = vpop.f32.mrb[0].mxu0
      %v2858 = vadd.f32 %v2661, %v2857
      %v2859 = vpop.f32.mrb[0].mxu0
      %2860 = vdwg.mxu0
      %v2861 = vadd.f32 %v2623, %v2783
      %v2862 = vadd.f32 %v2624, %v2788
      %v2863 = vadd.f32 %v2625, %v2793
      %v2864 = vadd.f32 %v2626, %v2798
      %v2865 = vadd.f32 %v2627, %v2803
      %v2866 = vadd.f32 %v2628, %v2808
      %v2867 = vadd.f32 %v2629, %v2813
      %v2868 = vadd.f32 %v2630, %v2818
      %v2869 = vadd.f32 %v2631, %v2823
      %v2870 = vadd.f32 %v2632, %v2828
      %v2871 = vadd.f32 %v2633, %v2833
      %v2872 = vadd.f32 %v2634, %v2838
      %v2873 = vadd.f32 %v2635, %v2843
      %v2874 = vadd.f32 %v2636, %v2848
      %v2875 = vadd.f32 %v2637, %v2853
      %v2876 = vadd.f32 %v2638, %v2858
      %2877 = vst.msk [vmem:[%s555] sm:$0xff] %vm999, %v2861
      %2878 = vst.msk [vmem:[%s555 + $0x8] sm:$0xff] %vm999, %v2862
      %2879 = vst.msk [vmem:[%s555 + $0x10] sm:$0xff] %vm999, %v2863
      %2880 = vst.msk [vmem:[%s555 + $0x18] sm:$0xff] %vm999, %v2864
      %2881 = vst.msk [vmem:[%s555 + $0x20] sm:$0xff] %vm999, %v2865
      %2882 = vst.msk [vmem:[%s555 + $0x28] sm:$0xff] %vm999, %v2866
      %2883 = vst.msk [vmem:[%s555 + $0x30] sm:$0xff] %vm999, %v2867
      %2884 = vst.msk [vmem:[%s555 + $0x38] sm:$0xff] %vm999, %v2868
      %2885 = vst.msk [vmem:[%s555 + $0x40] sm:$0xff] %vm999, %v2869
      %2886 = vst.msk [vmem:[%s555 + $0x48] sm:$0xff] %vm999, %v2870
      %2887 = vst.msk [vmem:[%s555 + $0x50] sm:$0xff] %vm999, %v2871
      %2888 = vst.msk [vmem:[%s555 + $0x58] sm:$0xff] %vm999, %v2872
      %2889 = vst.msk [vmem:[%s555 + $0x60] sm:$0xff] %vm999, %v2873
      %2890 = vst.msk [vmem:[%s555 + $0x68] sm:$0xff] %vm999, %v2874
      %2891 = vst.msk [vmem:[%s555 + $0x70] sm:$0xff] %vm999, %v2875
      %2892 = vst.msk [vmem:[%s555 + $0x78] sm:$0xff] %vm999, %v2876
      %s2893 = smul.u32 8, %s25
      %p2894 = scmp.lt.s32.totalorder %s24, 1
      %s2895 = scalar_select %p2894, %s24, 1
      %p2896 = scmp.lt.s32.totalorder %s2893, 15
      %s2897 = scalar_select %p2896, %s2893, 15
      %s2898 = smul.addr %s2897, 2
      %s2899 = smul.addr %s2895, 32
      %s2900 = sadd.s32 %s2898, %s2899
      %s2901 = smul.addr %s2900, 8
      %s2902 = scalar_lea.vmem %s9, %s2901
      // Predicated region
      $region57: #{resnet_encoder_block_pallas.3} parent=55 // pred_check
        %p2903 = pneg %p290
      $region58: #{resnet_encoder_block_pallas.3} parent=55 // pred_check_branch
        %2905 = sbr.rel (%p2903) target = $region60
      $region59: #{resnet_encoder_block_pallas.3} parent=55 // pred_region
        %s2906 = smul.u32 8, %s25
      $region60: #{resnet_encoder_block_pallas.3} parent=55 // pred_fallthru
        _
    $region56: #{resnet_encoder_block_pallas.3} parent=5 // pred_fallthru
      _
    %p2907 = scmp.le.s32.totalorder 2, %s15
    // Predicated region
    $region61: #{resnet_encoder_block_pallas.3} parent=5 // pred_check
      %p2908 = pneg %p2907
    $region62: #{resnet_encoder_block_pallas.3} parent=5 // pred_check_branch
      %2910 = sbr.rel (%p2908) target = $region64
    $region63: #{resnet_encoder_block_pallas.3} parent=5 // pred_region
      %s2911 = ssub.s32 %s15, 2
      // Predicated region
      $region65: #{resnet_encoder_block_pallas.3} parent=63 // pred_check
        %p2912 = pneg %p296
      $region66: #{resnet_encoder_block_pallas.3} parent=63 // pred_check_branch
        %2914 = sbr.rel (%p2912) target = $region68
      $region67: #{resnet_encoder_block_pallas.3} parent=63 // pred_region
        %s2915 = smul.u32 8, %s27
        %p2916 = scmp.lt.s32.totalorder %s26, 1
        %s2917 = scalar_select %p2916, %s26, 1
        %p2918 = scmp.lt.s32.totalorder %s2915, 15
        %s2919 = scalar_select %p2918, %s2915, 15
        %s2920 = smul.addr %s2919, 2
        %s2921 = smul.addr %s2917, 32
        %s2922 = sadd.s32 %s2920, %s2921
        %s2923 = smul.addr %s2922, 8
        %s2924 = scalar_lea.vmem %s9, %s2923
      $region68: #{resnet_encoder_block_pallas.3} parent=63 // pred_fallthru
        _
    $region64: #{resnet_encoder_block_pallas.3} parent=5 // pred_fallthru
      _
  $region6: #{resnet_encoder_block_pallas.3} parent=0 // loop_footer
    %s19 = sadd.s32 1, %s15
  $region7: #{resnet_encoder_block_pallas.3} parent=0 // loop_footer_branch
    %14 = sbr.rel target = $region3
  $region8: #{resnet_encoder_block_pallas.3} parent=0 // loop_exit
    _

// kernel: resnet_encoder_block_pallas.2
$region0: #{resnet_encoder_block_pallas.2}
  #allocation0 [shape = 'u32[]', space=smem, size = 0x4, offset = 0x4, fixed_abs, tag = 'smem constant byte address 0x4 - core index']
  #allocation1 [shape = 'u32[144,128]{1,0:T(1,128)}', space=vmem, size = 0x12000, scoped, tag = 'internal scratch']
  %s0 = inlined_call_operand.vmem [shape: f32[2,16,16,4], index: 0, kind: input, shape index: {}, may-alias: {0,1,2}]
  %s1 = inlined_call_operand.vmem [shape: f32[2,16,16,4], index: 1, kind: input, shape index: {}, may-alias: {0,1,2}]
  %s2 = inlined_call_operand.vmem [shape: f32[2,16,16,4], index: 2, kind: input, shape index: {}, may-alias: {0,1,2}]
  %s3 = inlined_call_operand.vmem [shape: f32[2,2,4], index: 3, kind: input, shape index: {}]
  %s4 = inlined_call_operand.vmem [shape: f32[9,4,8], index: 4, kind: input, shape index: {}]
  %s5 = inlined_call_operand.vmem [shape: f32[1,8], index: 5, kind: input, shape index: {}]
  %s6 = inlined_call_operand.vmem [shape: f32[2,16,16,8], index: 6, kind: output, shape index: {0}]
  %s7 = inlined_call_operand.vmem [shape: f32[2,2,2,8], index: 7, kind: output, shape index: {1}]
  %8 = xla_tuple %s6, %s7
  %s9 = sld [smem:[#allocation0]]
  $region65: #{resnet_encoder_block_pallas.2} parent=0
    _
  %s11 = ssub.s32 1, %s9
  %s12 = scalar_select 0, %s11, %s9
  loop: start=0, step=1, limit=6
  $region2: #{resnet_encoder_block_pallas.2} parent=0 // loop_pre_header
    _
  $region3: #{resnet_encoder_block_pallas.2} parent=0 // loop_header
    %s14 = sphi 0, %s18
    %p15 = scmp.ge.s32.totalorder %s14, 6
    %s21 = sphi 0, %s33
    %s22 = sphi 0, %s29
    %s23 = sphi 0, %s21
    %s24 = sphi 0, %s22
    %s25 = sphi 0, %s23
    %s26 = sphi 0, %s24
    %s38 = sphi 0, %s40
    %s41 = sphi 0, %s38
    %s42 = sphi 0, %s41
    %s58 = sphi 0, %s42
    %s74 = sphi 0, %s76
    %s77 = sphi 0, %s74
    %s78 = sphi 0, %s77
    %s94 = sphi 0, %s78
    %s110 = sphi 0, %s112
    %s113 = sphi 0, %s110
    %s114 = sphi 0, %s113
    %s130 = sphi 0, %s114
    %s136 = sphi 0, %s138
    %s139 = sphi 0, %s136
    %s140 = sphi 0, %s139
    %s156 = sphi 0, %s140
    %s160 = sphi 0, %s160
    %s162 = sphi 0, %s160
    %s163 = sphi 0, %s162
    %s177 = sphi 0, %s163
    %s181 = sphi 0, %s181
    %s183 = sphi 0, %s181
    %s184 = sphi 0, %s183
    %s198 = sphi 0, %s184
    %s206 = sphi 0, %s208
    %s209 = sphi 0, %s206
    %s210 = sphi 0, %s209
    %s226 = sphi 0, %s210
    %s234 = sphi 0, %s236
    %s237 = sphi 0, %s234
    %s238 = sphi 0, %s237
    %s254 = sphi 0, %s238
  $region4: #{resnet_encoder_block_pallas.2} parent=0 // loop_header_branch
    %17 = sbr.rel (%p15) target = $region8
  $region5: #{resnet_encoder_block_pallas.2} parent=0 // loop_body
    %s19 = ssub.s32 %s14, 1
    %s20 = ssub.s32 %s14, 2
    %s27 = sadd.s32 1, %s22
    %p28 = scmp.ge.s32.totalorder %s27, 2
    %s29 = scalar_select %p28, 0, %s27
    %s30 = sadd.s32 1, %s21
    %s31 = scalar_select %p28, %s30, %s21
    %p32 = scmp.ge.s32.totalorder %s31, 2
    %s33 = scalar_select %p32, 0, %s31
    %s34 = ssub.s32 %s21, %s33
    %s35 = ssub.s32 %s22, %s29
    %s36 = sor.u32 %s34, %s35
    %p37 = scmp.eq.s32.totalorder %s36, 0
    %s39 = sadd.s32 %s38, 1
    %s40 = scalar_select %p37, %s38, %s39
    %p43 = pneg %p37
    %p44 = scmp.eq.s32.totalorder %s14, 3
    %p45 = por %p43, %p44
    %p46 = scmp.ne.s32.totalorder %s38, %s41
    %p47 = scmp.eq.s32.totalorder %s14, 0
    %p48 = por %p46, %p47
    %p49 = scmp.ne.s32.totalorder %s38, %s41
    %p50 = scmp.eq.s32.totalorder %s19, 3
    %p51 = por %p49, %p50
    %p52 = scmp.ne.s32.totalorder %s41, %s42
    %p53 = scmp.eq.s32.totalorder %s19, 0
    %p54 = por %p52, %p53
    %p55 = scmp.ne.s32.totalorder %s41, %s42
    %p56 = scmp.eq.s32.totalorder %s20, 3
    %p57 = por %p55, %p56
    %p59 = scmp.ne.s32.totalorder %s42, %s58
    %p60 = scmp.eq.s32.totalorder %s20, 0
    %p61 = por %p59, %p60
    %s62 = smul.u32 %s22, 8
    %s63 = ssub.s32 %s62, 1
    %p64 = scmp.gt.s32.totalorder %s63, 0
    %s65 = scalar_select %p64, %s63, 0
    %s66 = smul.u32 %s29, 8
    %s67 = ssub.s32 %s66, 1
    %p68 = scmp.gt.s32.totalorder %s67, 0
    %s69 = scalar_select %p68, %s67, 0
    %s70 = ssub.s32 %s21, %s33
    %s71 = ssub.s32 %s65, %s69
    %s72 = sor.u32 %s70, %s71
    %p73 = scmp.eq.s32.totalorder %s72, 0
    %s75 = sadd.s32 %s74, 1
    %s76 = scalar_select %p73, %s74, %s75
    %p79 = pneg %p73
    %p80 = scmp.eq.s32.totalorder %s14, 3
    %p81 = por %p79, %p80
    %p82 = scmp.ne.s32.totalorder %s74, %s77
    %p83 = scmp.eq.s32.totalorder %s14, 0
    %p84 = por %p82, %p83
    %p85 = scmp.ne.s32.totalorder %s74, %s77
    %p86 = scmp.eq.s32.totalorder %s19, 3
    %p87 = por %p85, %p86
    %p88 = scmp.ne.s32.totalorder %s77, %s78
    %p89 = scmp.eq.s32.totalorder %s19, 0
    %p90 = por %p88, %p89
    %p91 = scmp.ne.s32.totalorder %s77, %s78
    %p92 = scmp.eq.s32.totalorder %s20, 3
    %p93 = por %p91, %p92
    %p95 = scmp.ne.s32.totalorder %s78, %s94
    %p96 = scmp.eq.s32.totalorder %s20, 0
    %p97 = por %p95, %p96
    %s98 = smul.u32 %s22, 8
    %s99 = sadd.s32 %s98, 8
    %p100 = scmp.lt.s32.totalorder %s99, 15
    %s101 = scalar_select %p100, %s99, 15
    %s102 = smul.u32 %s29, 8
    %s103 = sadd.s32 %s102, 8
    %p104 = scmp.lt.s32.totalorder %s103, 15
    %s105 = scalar_select %p104, %s103, 15
    %s106 = ssub.s32 %s21, %s33
    %s107 = ssub.s32 %s101, %s105
    %s108 = sor.u32 %s106, %s107
    %p109 = scmp.eq.s32.totalorder %s108, 0
    %s111 = sadd.s32 %s110, 1
    %s112 = scalar_select %p109, %s110, %s111
    %p115 = pneg %p109
    %p116 = scmp.eq.s32.totalorder %s14, 3
    %p117 = por %p115, %p116
    %p118 = scmp.ne.s32.totalorder %s110, %s113
    %p119 = scmp.eq.s32.totalorder %s14, 0
    %p120 = por %p118, %p119
    %p121 = scmp.ne.s32.totalorder %s110, %s113
    %p122 = scmp.eq.s32.totalorder %s19, 3
    %p123 = por %p121, %p122
    %p124 = scmp.ne.s32.totalorder %s113, %s114
    %p125 = scmp.eq.s32.totalorder %s19, 0
    %p126 = por %p124, %p125
    %p127 = scmp.ne.s32.totalorder %s113, %s114
    %p128 = scmp.eq.s32.totalorder %s20, 3
    %p129 = por %p127, %p128
    %p131 = scmp.ne.s32.totalorder %s114, %s130
    %p132 = scmp.eq.s32.totalorder %s20, 0
    %p133 = por %p131, %p132
    %s134 = ssub.s32 %s21, %s33
    %p135 = scmp.eq.s32.totalorder %s134, 0
    %s137 = sadd.s32 %s136, 1
    %s138 = scalar_select %p135, %s136, %s137
    %p141 = pneg %p135
    %p142 = scmp.eq.s32.totalorder %s14, 3
    %p143 = por %p141, %p142
    %p144 = scmp.ne.s32.totalorder %s136, %s139
    %p145 = scmp.eq.s32.totalorder %s14, 0
    %p146 = por %p144, %p145
    %p147 = scmp.ne.s32.totalorder %s136, %s139
    %p148 = scmp.eq.s32.totalorder %s19, 3
    %p149 = por %p147, %p148
    %p150 = scmp.ne.s32.totalorder %s139, %s140
    %p151 = scmp.eq.s32.totalorder %s19, 0
    %p152 = por %p150, %p151
    %p153 = scmp.ne.s32.totalorder %s139, %s140
    %p154 = scmp.eq.s32.totalorder %s20, 3
    %p155 = por %p153, %p154
    %p157 = scmp.ne.s32.totalorder %s140, %s156
    %p158 = scmp.eq.s32.totalorder %s20, 0
    %p159 = por %p157, %p158
    %s161 = sadd.s32 %s160, 1
    %p164 = scmp.eq.s32.totalorder %s14, 3
    %p165 = scmp.ne.s32.totalorder %s160, %s162
    %p166 = scmp.eq.s32.totalorder %s14, 0
    %p167 = por %p165, %p166
    %p168 = scmp.ne.s32.totalorder %s160, %s162
    %p169 = scmp.eq.s32.totalorder %s19, 3
    %p170 = por %p168, %p169
    %p171 = scmp.ne.s32.totalorder %s162, %s163
    %p172 = scmp.eq.s32.totalorder %s19, 0
    %p173 = por %p171, %p172
    %p174 = scmp.ne.s32.totalorder %s162, %s163
    %p175 = scmp.eq.s32.totalorder %s20, 3
    %p176 = por %p174, %p175
    %p178 = scmp.ne.s32.totalorder %s163, %s177
    %p179 = scmp.eq.s32.totalorder %s20, 0
    %p180 = por %p178, %p179
    %s182 = sadd.s32 %s181, 1
    %p185 = scmp.eq.s32.totalorder %s14, 3
    %p186 = scmp.ne.s32.totalorder %s181, %s183
    %p187 = scmp.eq.s32.totalorder %s14, 0
    %p188 = por %p186, %p187
    %p189 = scmp.ne.s32.totalorder %s181, %s183
    %p190 = scmp.eq.s32.totalorder %s19, 3
    %p191 = por %p189, %p190
    %p192 = scmp.ne.s32.totalorder %s183, %s184
    %p193 = scmp.eq.s32.totalorder %s19, 0
    %p194 = por %p192, %p193
    %p195 = scmp.ne.s32.totalorder %s183, %s184
    %p196 = scmp.eq.s32.totalorder %s20, 3
    %p197 = por %p195, %p196
    %p199 = scmp.ne.s32.totalorder %s184, %s198
    %p200 = scmp.eq.s32.totalorder %s20, 0
    %p201 = por %p199, %p200
    %s202 = ssub.s32 %s21, %s33
    %s203 = ssub.s32 %s22, %s29
    %s204 = sor.u32 %s202, %s203
    %p205 = scmp.eq.s32.totalorder %s204, 0
    %s207 = sadd.s32 %s206, 1
    %s208 = scalar_select %p205, %s206, %s207
    %p211 = pneg %p205
    %p212 = scmp.eq.s32.totalorder %s14, 3
    %p213 = por %p211, %p212
    %p214 = scmp.ne.s32.totalorder %s206, %s209
    %p215 = scmp.eq.s32.totalorder %s14, 0
    %p216 = por %p214, %p215
    %p217 = scmp.ne.s32.totalorder %s206, %s209
    %p218 = scmp.eq.s32.totalorder %s19, 3
    %p219 = por %p217, %p218
    %p220 = scmp.ne.s32.totalorder %s209, %s210
    %p221 = scmp.eq.s32.totalorder %s19, 0
    %p222 = por %p220, %p221
    %p223 = scmp.ne.s32.totalorder %s209, %s210
    %p224 = scmp.eq.s32.totalorder %s20, 3
    %p225 = por %p223, %p224
    %p227 = scmp.ne.s32.totalorder %s210, %s226
    %p228 = scmp.eq.s32.totalorder %s20, 0
    %p229 = por %p227, %p228
    %s230 = ssub.s32 %s21, %s33
    %s231 = ssub.s32 %s22, %s29
    %s232 = sor.u32 %s230, %s231
    %p233 = scmp.eq.s32.totalorder %s232, 0
    %s235 = sadd.s32 %s234, 1
    %s236 = scalar_select %p233, %s234, %s235
    %p239 = pneg %p233
    %p240 = scmp.eq.s32.totalorder %s14, 3
    %p241 = por %p239, %p240
    %p242 = scmp.ne.s32.totalorder %s234, %s237
    %p243 = scmp.eq.s32.totalorder %s14, 0
    %p244 = por %p242, %p243
    %p245 = scmp.ne.s32.totalorder %s234, %s237
    %p246 = scmp.eq.s32.totalorder %s19, 3
    %p247 = por %p245, %p246
    %p248 = scmp.ne.s32.totalorder %s237, %s238
    %p249 = scmp.eq.s32.totalorder %s19, 0
    %p250 = por %p248, %p249
    %p251 = scmp.ne.s32.totalorder %s237, %s238
    %p252 = scmp.eq.s32.totalorder %s20, 3
    %p253 = por %p251, %p252
    %p255 = scmp.ne.s32.totalorder %s238, %s254
    %p256 = scmp.eq.s32.totalorder %s20, 0
    %p257 = por %p255, %p256
    %p258 = scmp.le.s32.totalorder 1, %s14
    %p259 = scmp.lt.s32.totalorder %s14, 5
    %p260 = pnand %p258, %p259
    %p261 = pneg %p260
    // Predicated region
    $region9: #{resnet_encoder_block_pallas.2} parent=5 // pred_check
      _
    $region10: #{resnet_encoder_block_pallas.2} parent=5 // pred_check_branch
      %263 = sbr.rel (%p260) target = $region12
    $region11: #{resnet_encoder_block_pallas.2} parent=5 // pred_region
      %s264 = ssub.s32 %s14, 1
      // Predicated region
      $region13: #{resnet_encoder_block_pallas.2} parent=11 // pred_check
        %p265 = pneg %p173
      $region14: #{resnet_encoder_block_pallas.2} parent=11 // pred_check_branch
        %267 = sbr.rel (%p265) target = $region16
      $region15: #{resnet_encoder_block_pallas.2} parent=11 // pred_region
        _
      $region16: #{resnet_encoder_block_pallas.2} parent=11 // pred_fallthru
        _
      // Predicated region
      $region17: #{resnet_encoder_block_pallas.2} parent=11 // pred_check
        %p268 = pneg %p194
      $region18: #{resnet_encoder_block_pallas.2} parent=11 // pred_check_branch
        %270 = sbr.rel (%p268) target = $region20
      $region19: #{resnet_encoder_block_pallas.2} parent=11 // pred_region
        _
      $region20: #{resnet_encoder_block_pallas.2} parent=11 // pred_fallthru
        _
    $region12: #{resnet_encoder_block_pallas.2} parent=5 // pred_fallthru
      _
    %p271 = scmp.lt.s32.totalorder %s14, 4
    // Predicated region
    $region21: #{resnet_encoder_block_pallas.2} parent=5 // pred_check
      %p272 = pneg %p271
    $region22: #{resnet_encoder_block_pallas.2} parent=5 // pred_check_branch
      %274 = sbr.rel (%p272) target = $region24
    $region23: #{resnet_encoder_block_pallas.2} parent=5 // pred_region
      // Predicated region
      $region25: #{resnet_encoder_block_pallas.2} parent=23 // pred_check
        %p275 = pneg %p48
      $region26: #{resnet_encoder_block_pallas.2} parent=23 // pred_check_branch
        %277 = sbr.rel (%p275) target = $region28
      $region27: #{resnet_encoder_block_pallas.2} parent=23 // pred_region
        %s278 = smul.u32 8, %s22
        %p279 = scmp.lt.s32.totalorder %s21, 1
        %s280 = scalar_select %p279, %s21, 1
        %p281 = scmp.lt.s32.totalorder %s278, 15
        %s282 = scalar_select %p281, %s278, 15
        %s283 = smul.addr %s282, 2
        %s284 = smul.addr %s280, 32
        %s285 = sadd.s32 %s283, %s284
        %s286 = smul.addr %s285, 8
        %s287 = scalar_lea.vmem %s0, %s286
        %s288 = smul.u32 8, %s22
      $region28: #{resnet_encoder_block_pallas.2} parent=23 // pred_fallthru
        _
      // Predicated region
      $region29: #{resnet_encoder_block_pallas.2} parent=23 // pred_check
        %p289 = pneg %p84
      $region30: #{resnet_encoder_block_pallas.2} parent=23 // pred_check_branch
        %291 = sbr.rel (%p289) target = $region32
      $region31: #{resnet_encoder_block_pallas.2} parent=23 // pred_region
        %s292 = smul.u32 %s22, 8
        %s293 = ssub.s32 %s292, 1
        %p294 = scmp.gt.s32.totalorder %s293, 0
        %s295 = scalar_select %p294, %s293, 0
        %p296 = scmp.lt.s32.totalorder %s21, 1
        %s297 = scalar_select %p296, %s21, 1
        %p298 = scmp.lt.s32.totalorder %s295, 15
        %s299 = scalar_select %p298, %s295, 15
        %s300 = smul.addr %s299, 2
        %s301 = smul.addr %s297, 32
        %s302 = sadd.s32 %s300, %s301
        %s303 = smul.addr %s302, 8
        %s304 = scalar_lea.vmem %s1, %s303
        %s305 = smul.u32 %s22, 8
        %s306 = ssub.s32 %s305, 1
        %p307 = scmp.gt.s32.totalorder %s306, 0
        %s308 = scalar_select %p307, %s306, 0
      $region32: #{resnet_encoder_block_pallas.2} parent=23 // pred_fallthru
        _
      // Predicated region
      $region33: #{resnet_encoder_block_pallas.2} parent=23 // pred_check
        %p309 = pneg %p120
      $region34: #{resnet_encoder_block_pallas.2} parent=23 // pred_check_branch
        %311 = sbr.rel (%p309) target = $region36
      $region35: #{resnet_encoder_block_pallas.2} parent=23 // pred_region
        %s312 = smul.u32 %s22, 8
        %s313 = sadd.s32 %s312, 8
        %p314 = scmp.lt.s32.totalorder %s313, 15
        %s315 = scalar_select %p314, %s313, 15
        %p316 = scmp.lt.s32.totalorder %s21, 1
        %s317 = scalar_select %p316, %s21, 1
        %p318 = scmp.lt.s32.totalorder %s315, 15
        %s319 = scalar_select %p318, %s315, 15
        %s320 = smul.addr %s319, 2
        %s321 = smul.addr %s317, 32
        %s322 = sadd.s32 %s320, %s321
        %s323 = smul.addr %s322, 8
        %s324 = scalar_lea.vmem %s2, %s323
        %s325 = smul.u32 %s22, 8
        %s326 = sadd.s32 %s325, 8
        %p327 = scmp.lt.s32.totalorder %s326, 15
        %s328 = scalar_select %p327, %s326, 15
      $region36: #{resnet_encoder_block_pallas.2} parent=23 // pred_fallthru
        _
      // Predicated region
      $region37: #{resnet_encoder_block_pallas.2} parent=23 // pred_check
        %p329 = pneg %p146
      $region38: #{resnet_encoder_block_pallas.2} parent=23 // pred_check_branch
        %331 = sbr.rel (%p329) target = $region40
      $region39: #{resnet_encoder_block_pallas.2} parent=23 // pred_region
        %p332 = scmp.lt.s32.totalorder %s21, 1
        %s333 = scalar_select %p332, %s21, 1
        %s334 = smul.addr %s333, 2
        %s335 = scalar_lea.vmem %s3, %s334
      $region40: #{resnet_encoder_block_pallas.2} parent=23 // pred_fallthru
        _
    $region24: #{resnet_encoder_block_pallas.2} parent=5 // pred_fallthru
      _
    %p336 = scmp.le.s32.totalorder 1, %s14
    %p337 = scmp.lt.s32.totalorder %s14, 5
    %p338 = pnand %p336, %p337
    %p339 = pneg %p338
    // Predicated region
    $region41: #{resnet_encoder_block_pallas.2} parent=5 // pred_check
      _
    $region42: #{resnet_encoder_block_pallas.2} parent=5 // pred_check_branch
      %341 = sbr.rel (%p338) target = $region44
    $region43: #{resnet_encoder_block_pallas.2} parent=5 // pred_region
      %s342 = ssub.s32 %s14, 1
      %s343 = smul.u32 8, %s24
      %p344 = scmp.lt.s32.totalorder %s23, 1
      %s345 = scalar_select %p344, %s23, 1
      %p346 = scmp.lt.s32.totalorder %s343, 15
      %s347 = scalar_select %p346, %s343, 15
      %s348 = smul.addr %s347, 2
      %s349 = smul.addr %s345, 32
      %s350 = sadd.s32 %s348, %s349
      %s351 = smul.addr %s350, 8
      %s352 = scalar_lea.vmem %s0, %s351
      %p353 = pneg %p54
      %p354 = pneg %p51
      %s355 = smul.u32 %s24, 8
      %s356 = ssub.s32 %s355, 1
      %p357 = scmp.gt.s32.totalorder %s356, 0
      %s358 = scalar_select %p357, %s356, 0
      %p359 = scmp.lt.s32.totalorder %s23, 1
      %s360 = scalar_select %p359, %s23, 1
      %p361 = scmp.lt.s32.totalorder %s358, 15
      %s362 = scalar_select %p361, %s358, 15
      %s363 = smul.addr %s362, 2
      %s364 = smul.addr %s360, 32
      %s365 = sadd.s32 %s363, %s364
      %s366 = smul.addr %s365, 8
      %s367 = scalar_lea.vmem %s1, %s366
      %p368 = pneg %p90
      %p369 = pneg %p87
      %s370 = smul.u32 %s24, 8
      %s371 = sadd.s32 %s370, 8
      %p372 = scmp.lt.s32.totalorder %s371, 15
      %s373 = scalar_select %p372, %s371, 15
      %p374 = scmp.lt.s32.totalorder %s23, 1
      %s375 = scalar_select %p374, %s23, 1
      %p376 = scmp.lt.s32.totalorder %s373, 15
      %s377 = scalar_select %p376, %s373, 15
      %s378 = smul.addr %s377, 2
      %s379 = smul.addr %s375, 32
      %s380 = sadd.s32 %s378, %s379
      %s381 = smul.addr %s380, 8
      %s382 = scalar_lea.vmem %s2, %s381
      %p383 = pneg %p126
      %p384 = pneg %p123
      %p385 = scmp.lt.s32.totalorder %s23, 1
      %s386 = scalar_select %p385, %s23, 1
      %s387 = smul.addr %s386, 2
      %s388 = scalar_lea.vmem %s3, %s387
      %p389 = pneg %p152
      %p390 = pneg %p149
      %p391 = pneg %p173
      %p392 = pneg %p170
      %p393 = pneg %p194
      %p394 = pneg %p191
      %p395 = pneg %p222
      %p396 = pneg %p219
      %s397 = smul.u32 8, %s24
      %p398 = scmp.lt.s32.totalorder %s23, 1
      %s399 = scalar_select %p398, %s23, 1
      %p400 = scmp.lt.s32.totalorder %s397, 15
      %s401 = scalar_select %p400, %s397, 15
      %s402 = smul.addr %s401, 2
      %s403 = smul.addr %s399, 32
      %s404 = sadd.s32 %s402, %s403
      %s405 = smul.addr %s404, 8
      %s406 = scalar_lea.vmem %s6, %s405
      %p407 = pneg %p250
      %p408 = pneg %p247
      %p409 = scmp.lt.s32.totalorder %s23, 1
      %s410 = scalar_select %p409, %s23, 1
      %p411 = scmp.lt.s32.totalorder %s24, 1
      %s412 = scalar_select %p411, %s24, 1
      %s413 = smul.addr %s410, 2
      %s414 = sadd.s32 %s412, %s413
      %s415 = smul.addr %s414, 2
      %s416 = scalar_lea.vmem %s7, %s415
      %s417 = smul.u32 8, %s24
      %p418 = scmp.lt.s32.totalorder %s23, 1
      %s419 = scalar_select %p418, %s23, 1
      %p420 = scmp.lt.s32.totalorder %s417, 15
      %s421 = scalar_select %p420, %s417, 15
      %s422 = smul.addr %s421, 2
      %s423 = smul.addr %s419, 32
      %s424 = sadd.s32 %s422, %s423
      %s425 = smul.addr %s424, 8
      %s426 = scalar_lea.vmem %s0, %s425
      %s427 = smul.u32 8, %s24
      %s428 = smul.u32 %s24, 8
      %s429 = ssub.s32 %s428, 1
      %p430 = scmp.gt.s32.totalorder %s429, 0
      %s431 = scalar_select %p430, %s429, 0
      %p432 = scmp.lt.s32.totalorder %s23, 1
      %s433 = scalar_select %p432, %s23, 1
      %p434 = scmp.lt.s32.totalorder %s431, 15
      %s435 = scalar_select %p434, %s431, 15
      %s436 = smul.addr %s435, 2
      %s437 = smul.addr %s433, 32
      %s438 = sadd.s32 %s436, %s437
      %s439 = smul.addr %s438, 8
      %s440 = scalar_lea.vmem %s1, %s439
      %s441 = smul.u32 %s24, 8
      %s442 = ssub.s32 %s441, 1
      %p443 = scmp.gt.s32.totalorder %s442, 0
      %s444 = scalar_select %p443, %s442, 0
      %s445 = smul.u32 %s24, 8
      %s446 = sadd.s32 %s445, 8
      %p447 = scmp.lt.s32.totalorder %s446, 15
      %s448 = scalar_select %p447, %s446, 15
      %p449 = scmp.lt.s32.totalorder %s23, 1
      %s450 = scalar_select %p449, %s23, 1
      %p451 = scmp.lt.s32.totalorder %s448, 15
      %s452 = scalar_select %p451, %s448, 15
      %s453 = smul.addr %s452, 2
      %s454 = smul.addr %s450, 32
      %s455 = sadd.s32 %s453, %s454
      %s456 = smul.addr %s455, 8
      %s457 = scalar_lea.vmem %s2, %s456
      %s458 = smul.u32 %s24, 8
      %s459 = sadd.s32 %s458, 8
      %p460 = scmp.lt.s32.totalorder %s459, 15
      %s461 = scalar_select %p460, %s459, 15
      %p462 = scmp.lt.s32.totalorder %s23, 1
      %s463 = scalar_select %p462, %s23, 1
      %s464 = smul.addr %s463, 2
      %s465 = scalar_lea.vmem %s3, %s464
      %s466 = smul.u32 8, %s24
      %p467 = scmp.lt.s32.totalorder %s23, 1
      %s468 = scalar_select %p467, %s23, 1
      %p469 = scmp.lt.s32.totalorder %s466, 15
      %s470 = scalar_select %p469, %s466, 15
      %s471 = smul.addr %s470, 2
      %s472 = smul.addr %s468, 32
      %s473 = sadd.s32 %s471, %s472
      %s474 = smul.addr %s473, 8
      %s475 = scalar_lea.vmem %s6, %s474
      %s476 = smul.u32 8, %s24
      %p477 = scmp.lt.s32.totalorder %s23, 1
      %s478 = scalar_select %p477, %s23, 1
      %p479 = scmp.lt.s32.totalorder %s24, 1
      %s480 = scalar_select %p479, %s24, 1
      %s481 = smul.addr %s478, 2
      %s482 = sadd.s32 %s480, %s481
      %s483 = smul.addr %s482, 2
      %s484 = scalar_lea.vmem %s7, %s483
      %s485 = smul.u32 %s24, 8
      %s486 = ssub.s32 %s485, 1
      %v487 = vld [vmem:[%s440] sm:$0xff]
      %v488 = vld [vmem:[%s440 + $0x8] sm:$0xff]
      %v489 = vld [vmem:[%s426] sm:$0xff]
      %v490 = vld [vmem:[%s426 + $0x8] sm:$0xff]
      %v491 = vld [vmem:[%s426 + $0x10] sm:$0xff]
      %v492 = vld [vmem:[%s426 + $0x18] sm:$0xff]
      %v493 = vld [vmem:[%s426 + $0x20] sm:$0xff]
      %v494 = vld [vmem:[%s426 + $0x28] sm:$0xff]
      %v495 = vld [vmem:[%s426 + $0x30] sm:$0xff]
      %v496 = vld [vmem:[%s426 + $0x38] sm:$0xff]
      %v497 = vld [vmem:[%s426 + $0x40] sm:$0xff]
      %v498 = vld [vmem:[%s426 + $0x48] sm:$0xff]
      %v499 = vld [vmem:[%s426 + $0x50] sm:$0xff]
      %v500 = vld [vmem:[%s426 + $0x58] sm:$0xff]
      %v501 = vld [vmem:[%s426 + $0x60] sm:$0xff]
      %v502 = vld [vmem:[%s426 + $0x68] sm:$0xff]
      %v503 = vld [vmem:[%s426 + $0x70] sm:$0xff]
      %v504 = vld [vmem:[%s426 + $0x78] sm:$0xff]
      %v505 = vld [vmem:[%s457] sm:$0xff]
      %v506 = vld [vmem:[%s457 + $0x8] sm:$0xff]
      %v507 = vld [vmem:[%s465] sm:$0x3]
      %v508 = vlaneseq
      %v509 = vshrl.u32 %v508, 7
      %v510 = vsub.s32 0, %v509
      %v511 = vrot.slane %v507, %v510
      %v512 = vmul.f32 %v487, %v511
      %v513 = vmul.f32 %v488, %v511
      %v514 = vmul.f32 %v489, %v511
      %v515 = vmul.f32 %v490, %v511
      %v516 = vmul.f32 %v491, %v511
      %v517 = vmul.f32 %v492, %v511
      %v518 = vmul.f32 %v493, %v511
      %v519 = vmul.f32 %v494, %v511
      %v520 = vmul.f32 %v495, %v511
      %v521 = vmul.f32 %v496, %v511
      %v522 = vmul.f32 %v497, %v511
      %v523 = vmul.f32 %v498, %v511
      %v524 = vmul.f32 %v499, %v511
      %v525 = vmul.f32 %v500, %v511
      %v526 = vmul.f32 %v501, %v511
      %v527 = vmul.f32 %v502, %v511
      %v528 = vmul.f32 %v503, %v511
      %v529 = vmul.f32 %v504, %v511
      %v530 = vmul.f32 %v505, %v511
      %v531 = vmul.f32 %v506, %v511
      %v532 = vlaneseq
      %v533 = vshrl.u32 %v532, 7
      %v534 = vsub.s32 1, %v533
      %v535 = vrot.slane %v507, %v534
      %v536 = vadd.f32 %v512, %v535
      %v537 = vadd.f32 %v513, %v535
      %v538 = vadd.f32 %v514, %v535
      %v539 = vadd.f32 %v515, %v535
      %v540 = vadd.f32 %v516, %v535
      %v541 = vadd.f32 %v517, %v535
      %v542 = vadd.f32 %v518, %v535
      %v543 = vadd.f32 %v519, %v535
      %v544 = vadd.f32 %v520, %v535
      %v545 = vadd.f32 %v521, %v535
      %v546 = vadd.f32 %v522, %v535
      %v547 = vadd.f32 %v523, %v535
      %v548 = vadd.f32 %v524, %v535
      %v549 = vadd.f32 %v525, %v535
      %v550 = vadd.f32 %v526, %v535
      %v551 = vadd.f32 %v527, %v535
      %v552 = vadd.f32 %v528, %v535
      %v553 = vadd.f32 %v529, %v535
      %v554 = vadd.f32 %v530, %v535
      %v555 = vadd.f32 %v531, %v535
      %v556 = vxor.u32 %v536, 2147483648
      %v557 = vxor.u32 %v537, 2147483648
      %v558 = vxor.u32 %v538, 2147483648
      %v559 = vxor.u32 %v539, 2147483648
      %v560 = vxor.u32 %v540, 2147483648
      %v561 = vxor.u32 %v541, 2147483648
      %v562 = vxor.u32 %v542, 2147483648
      %v563 = vxor.u32 %v543, 2147483648
      %v564 = vxor.u32 %v544, 2147483648
      %v565 = vxor.u32 %v545, 2147483648
      %v566 = vxor.u32 %v546, 2147483648
      %v567 = vxor.u32 %v547, 2147483648
      %v568 = vxor.u32 %v548, 2147483648
      %v569 = vxor.u32 %v549, 2147483648
      %v570 = vxor.u32 %v550, 2147483648
      %v571 = vxor.u32 %v551, 2147483648
      %v572 = vxor.u32 %v552, 2147483648
      %v573 = vxor.u32 %v553, 2147483648
      %v574 = vxor.u32 %v554, 2147483648
      %v575 = vxor.u32 %v555, 2147483648
      %v576 = vmul.f32 %v556, 1.442695
      %v577 = vpow.pop %v576
      %v578 = vmul.f32 %v557, 1.442695
      %v579 = vpow.pop %v578
      %v580 = vmul.f32 %v558, 1.442695
      %v581 = vpow.pop %v580
      %v582 = vmul.f32 %v559, 1.442695
      %v583 = vpow.pop %v582
      %v584 = vmul.f32 %v560, 1.442695
      %v585 = vpow.pop %v584
      %v586 = vmul.f32 %v561, 1.442695
      %v587 = vpow.pop %v586
      %v588 = vmul.f32 %v562, 1.442695
      %v589 = vpow.pop %v588
      %v590 = vmul.f32 %v563, 1.442695
      %v591 = vpow.pop %v590
      %v592 = vmul.f32 %v564, 1.442695
      %v593 = vpow.pop %v592
      %v594 = vmul.f32 %v565, 1.442695
      %v595 = vpow.pop %v594
      %v596 = vmul.f32 %v566, 1.442695
      %v597 = vpow.pop %v596
      %v598 = vmul.f32 %v567, 1.442695
      %v599 = vpow.pop %v598
      %v600 = vmul.f32 %v568, 1.442695
      %v601 = vpow.pop %v600
      %v602 = vmul.f32 %v569, 1.442695
      %v603 = vpow.pop %v602
      %v604 = vmul.f32 %v570, 1.442695
      %v605 = vpow.pop %v604
      %v606 = vmul.f32 %v571, 1.442695
      %v607 = vpow.pop %v606
      %v608 = vmul.f32 %v572, 1.442695
      %v609 = vpow.pop %v608
      %v610 = vmul.f32 %v573, 1.442695
      %v611 = vpow.pop %v610
      %v612 = vmul.f32 %v574, 1.442695
      %v613 = vpow.pop %v612
      %v614 = vmul.f32 %v575, 1.442695
      %v615 = vpow.pop %v614
      %v616 = vadd.f32 %v577, 1.0
      %v617 = vadd.f32 %v579, 1.0
      %v618 = vadd.f32 %v581, 1.0
      %v619 = vadd.f32 %v583, 1.0
      %v620 = vadd.f32 %v585, 1.0
      %v621 = vadd.f32 %v587, 1.0
      %v622 = vadd.f32 %v589, 1.0
      %v623 = vadd.f32 %v591, 1.0
      %v624 = vadd.f32 %v593, 1.0
      %v625 = vadd.f32 %v595, 1.0
      %v626 = vadd.f32 %v597, 1.0
      %v627 = vadd.f32 %v599, 1.0
      %v628 = vadd.f32 %v601, 1.0
      %v629 = vadd.f32 %v603, 1.0
      %v630 = vadd.f32 %v605, 1.0
      %v631 = vadd.f32 %v607, 1.0
      %v632 = vadd.f32 %v609, 1.0
      %v633 = vadd.f32 %v611, 1.0
      %v634 = vadd.f32 %v613, 1.0
      %v635 = vadd.f32 %v615, 1.0
      %v636 = vrcp.pop %v616
      %v637 = vmul.f32 1.0, %v636
      %v638 = vrcp.pop %v617
      %v639 = vmul.f32 1.0, %v638
      %v640 = vrcp.pop %v618
      %v641 = vmul.f32 1.0, %v640
      %v642 = vrcp.pop %v619
      %v643 = vmul.f32 1.0, %v642
      %v644 = vrcp.pop %v620
      %v645 = vmul.f32 1.0, %v644
      %v646 = vrcp.pop %v621
      %v647 = vmul.f32 1.0, %v646
      %v648 = vrcp.pop %v622
      %v649 = vmul.f32 1.0, %v648
      %v650 = vrcp.pop %v623
      %v651 = vmul.f32 1.0, %v650
      %v652 = vrcp.pop %v624
      %v653 = vmul.f32 1.0, %v652
      %v654 = vrcp.pop %v625
      %v655 = vmul.f32 1.0, %v654
      %v656 = vrcp.pop %v626
      %v657 = vmul.f32 1.0, %v656
      %v658 = vrcp.pop %v627
      %v659 = vmul.f32 1.0, %v658
      %v660 = vrcp.pop %v628
      %v661 = vmul.f32 1.0, %v660
      %v662 = vrcp.pop %v629
      %v663 = vmul.f32 1.0, %v662
      %v664 = vrcp.pop %v630
      %v665 = vmul.f32 1.0, %v664
      %v666 = vrcp.pop %v631
      %v667 = vmul.f32 1.0, %v666
      %v668 = vrcp.pop %v632
      %v669 = vmul.f32 1.0, %v668
      %v670 = vrcp.pop %v633
      %v671 = vmul.f32 1.0, %v670
      %v672 = vrcp.pop %v634
      %v673 = vmul.f32 1.0, %v672
      %v674 = vrcp.pop %v635
      %v675 = vmul.f32 1.0, %v674
      %v676 = vmul.f32 %v536, %v637
      %v677 = vmul.f32 %v537, %v639
      %v678 = vmul.f32 %v538, %v641
      %v679 = vmul.f32 %v539, %v643
      %v680 = vmul.f32 %v540, %v645
      %v681 = vmul.f32 %v541, %v647
      %v682 = vmul.f32 %v542, %v649
      %v683 = vmul.f32 %v543, %v651
      %v684 = vmul.f32 %v544, %v653
      %v685 = vmul.f32 %v545, %v655
      %v686 = vmul.f32 %v546, %v657
      %v687 = vmul.f32 %v547, %v659
      %v688 = vmul.f32 %v548, %v661
      %v689 = vmul.f32 %v549, %v663
      %v690 = vmul.f32 %v550, %v665
      %v691 = vmul.f32 %v551, %v667
      %v692 = vmul.f32 %v552, %v669
      %v693 = vmul.f32 %v553, %v671
      %v694 = vmul.f32 %v554, %v673
      %v695 = vmul.f32 %v555, %v675
      %v696 = vstv %s486
      %v697 = vadd.s32 %v696, 1
      %v698 = vadd.s32 %v696, 2
      %v699 = vadd.s32 %v696, 3
      %v700 = vadd.s32 %v696, 4
      %v701 = vadd.s32 %v696, 5
      %v702 = vadd.s32 %v696, 6
      %v703 = vadd.s32 %v696, 7
      %v704 = vadd.s32 %v696, 8
      %v705 = vadd.s32 %v696, 9
      %vm706 = vcmp.ge.s32.totalorder %v696, 0
      %vm707 = vcmp.ge.s32.totalorder %v697, 0
      %vm708 = vcmp.ge.s32.totalorder %v698, 0
      %vm709 = vcmp.ge.s32.totalorder %v699, 0
      %vm710 = vcmp.ge.s32.totalorder %v700, 0
      %vm711 = vcmp.ge.s32.totalorder %v701, 0
      %vm712 = vcmp.ge.s32.totalorder %v702, 0
      %vm713 = vcmp.ge.s32.totalorder %v703, 0
      %vm714 = vcmp.ge.s32.totalorder %v704, 0
      %vm715 = vcmp.ge.s32.totalorder %v705, 0
      %vm716 = vcmp.lt.s32.totalorder %v696, 16
      %vm717 = vcmp.lt.s32.totalorder %v697, 16
      %vm718 = vcmp.lt.s32.totalorder %v698, 16
      %vm719 = vcmp.lt.s32.totalorder %v699, 16
      %vm720 = vcmp.lt.s32.totalorder %v700, 16
      %vm721 = vcmp.lt.s32.totalorder %v701, 16
      %vm722 = vcmp.lt.s32.totalorder %v702, 16
      %vm723 = vcmp.lt.s32.totalorder %v703, 16
      %vm724 = vcmp.lt.s32.totalorder %v704, 16
      %vm725 = vcmp.lt.s32.totalorder %v705, 16
      %vm726 = vmand %vm706, %vm716
      %vm727 = vmand %vm707, %vm717
      %vm728 = vmand %vm708, %vm718
      %vm729 = vmand %vm709, %vm719
      %vm730 = vmand %vm710, %vm720
      %vm731 = vmand %vm711, %vm721
      %vm732 = vmand %vm712, %vm722
      %vm733 = vmand %vm713, %vm723
      %vm734 = vmand %vm714, %vm724
      %vm735 = vmand %vm715, %vm725
      %v736 = vsel %vm726, 1, 0
      %v737 = vsel %vm727, 1, 0
      %v738 = vsel %vm728, 1, 0
      %v739 = vsel %vm729, 1, 0
      %v740 = vsel %vm730, 1, 0
      %v741 = vsel %vm731, 1, 0
      %v742 = vsel %vm732, 1, 0
      %v743 = vsel %vm733, 1, 0
      %v744 = vsel %vm734, 1, 0
      %v745 = vsel %vm735, 1, 0
      %vm746 = vcmp.eq.s32.totalorder %v736, 1
      %vm747 = vcmp.eq.s32.totalorder %v737, 1
      %vm748 = vcmp.eq.s32.totalorder %v738, 1
      %vm749 = vcmp.eq.s32.totalorder %v739, 1
      %vm750 = vcmp.eq.s32.totalorder %v740, 1
      %vm751 = vcmp.eq.s32.totalorder %v741, 1
      %vm752 = vcmp.eq.s32.totalorder %v742, 1
      %vm753 = vcmp.eq.s32.totalorder %v743, 1
      %vm754 = vcmp.eq.s32.totalorder %v744, 1
      %vm755 = vcmp.eq.s32.totalorder %v745, 1
      %v756 = vsel %vm746, %v676, 0.0
      %v757 = vsel %vm746, %v677, 0.0
      %v758 = vsel %vm747, %v678, 0.0
      %v759 = vsel %vm747, %v679, 0.0
      %v760 = vsel %vm748, %v680, 0.0
      %v761 = vsel %vm748, %v681, 0.0
      %v762 = vsel %vm749, %v682, 0.0
      %v763 = vsel %vm749, %v683, 0.0
      %v764 = vsel %vm750, %v684, 0.0
      %v765 = vsel %vm750, %v685, 0.0
      %v766 = vsel %vm751, %v686, 0.0
      %v767 = vsel %vm751, %v687, 0.0
      %v768 = vsel %vm752, %v688, 0.0
      %v769 = vsel %vm752, %v689, 0.0
      %v770 = vsel %vm753, %v690, 0.0
      %v771 = vsel %vm753, %v691, 0.0
      %v772 = vsel %vm754, %v692, 0.0
      %v773 = vsel %vm754, %v693, 0.0
      %v774 = vsel %vm755, %v694, 0.0
      %v775 = vsel %vm755, %v695, 0.0
      %vm796 = vcmask 1040384
      %v797 = vrot.slane %v756, 7
      %v798 = vrot.slane %v757, 7
      %v799 = vsel %vm796, %v797, %v798
      %v800 = vrot.slane %v758, 7
      %v801 = vrot.slane %v759, 7
      %v802 = vsel %vm796, %v800, %v801
      %v803 = vrot.slane %v760, 7
      %v804 = vrot.slane %v761, 7
      %v805 = vsel %vm796, %v803, %v804
      %v806 = vrot.slane %v762, 7
      %v807 = vrot.slane %v763, 7
      %v808 = vsel %vm796, %v806, %v807
      %v809 = vrot.slane %v764, 7
      %v810 = vrot.slane %v765, 7
      %v811 = vsel %vm796, %v809, %v810
      %v812 = vrot.slane %v766, 7
      %v813 = vrot.slane %v767, 7
      %v814 = vsel %vm796, %v812, %v813
      %v815 = vrot.slane %v768, 7
      %v816 = vrot.slane %v769, 7
      %v817 = vsel %vm796, %v815, %v816
      %v818 = vrot.slane %v770, 7
      %v819 = vrot.slane %v771, 7
      %v820 = vsel %vm796, %v818, %v819
      %v821 = vrot.slane %v772, 7
      %v822 = vrot.slane %v773, 7
      %v823 = vsel %vm796, %v821, %v822
      %v824 = vrot.slane %v774, 7
      %v825 = vrot.slane %v775, 7
      %v826 = vsel %vm796, %v824, %v825
      %v847 = vsel %vm796, 0.0, %v797
      %v848 = vsel %vm796, 0.0, %v800
      %v849 = vsel %vm796, 0.0, %v803
      %v850 = vsel %vm796, 0.0, %v806
      %v851 = vsel %vm796, 0.0, %v809
      %v852 = vsel %vm796, 0.0, %v812
      %v853 = vsel %vm796, 0.0, %v815
      %v854 = vsel %vm796, 0.0, %v818
      %v855 = vsel %vm796, 0.0, %v821
      %v856 = vsel %vm796, 0.0, %v824
      %v857 = vsel %vm796, %v798, 0.0
      %v858 = vsel %vm796, %v801, 0.0
      %v859 = vsel %vm796, %v804, 0.0
      %v860 = vsel %vm796, %v807, 0.0
      %v861 = vsel %vm796, %v810, 0.0
      %v862 = vsel %vm796, %v813, 0.0
      %v863 = vsel %vm796, %v816, 0.0
      %v864 = vsel %vm796, %v819, 0.0
      %v865 = vsel %vm796, %v822, 0.0
      %v866 = vsel %vm796, %v825, 0.0
      %v867 = vld [vmem:[%s4] sm:$0xf]
      %vm884 = vcmask 1046528
      %v885 = vrot.slane %v847, 1
      %v886 = vrot.slane %v799, 1
      %v887 = vsel %vm884, %v885, %v886
      %v888 = vrot.slane %v857, 1
      %v889 = vsel %vm884, %v886, %v888
      %v890 = vrot.slane %v848, 1
      %v891 = vrot.slane %v802, 1
      %v892 = vsel %vm884, %v890, %v891
      %v893 = vrot.slane %v858, 1
      %v894 = vsel %vm884, %v891, %v893
      %v895 = vrot.slane %v849, 1
      %v896 = vrot.slane %v805, 1
      %v897 = vsel %vm884, %v895, %v896
      %v898 = vrot.slane %v859, 1
      %v899 = vsel %vm884, %v896, %v898
      %v900 = vrot.slane %v850, 1
      %v901 = vrot.slane %v808, 1
      %v902 = vsel %vm884, %v900, %v901
      %v903 = vrot.slane %v860, 1
      %v904 = vsel %vm884, %v901, %v903
      %v905 = vrot.slane %v851, 1
      %v906 = vrot.slane %v811, 1
      %v907 = vsel %vm884, %v905, %v906
      %v908 = vrot.slane %v861, 1
      %v909 = vsel %vm884, %v906, %v908
      %v910 = vrot.slane %v852, 1
      %v911 = vrot.slane %v814, 1
      %v912 = vsel %vm884, %v910, %v911
      %v913 = vrot.slane %v862, 1
      %v914 = vsel %vm884, %v911, %v913
      %v915 = vrot.slane %v853, 1
      %v916 = vrot.slane %v817, 1
      %v917 = vsel %vm884, %v915, %v916
      %v918 = vrot.slane %v863, 1
      %v919 = vsel %vm884, %v916, %v918
      %v920 = vrot.slane %v854, 1
      %v921 = vrot.slane %v820, 1
      %v922 = vsel %vm884, %v920, %v921
      %v923 = vrot.slane %v864, 1
      %v924 = vsel %vm884, %v921, %v923
      %s925 = scalar_lea.vmem %s4, 4
      %v926 = vld [vmem:[%s925] sm:$0xf]
      %vm927 = vcmask 31744
      %v928 = vsel %vm927, %v887, 0
      %v930 = vsel %vm927, %v889, 0
      %v932 = vsel %vm927, %v892, 0
      %v934 = vsel %vm927, %v894, 0
      %v936 = vsel %vm927, %v897, 0
      %v938 = vsel %vm927, %v899, 0
      %v940 = vsel %vm927, %v902, 0
      %v942 = vsel %vm927, %v904, 0
      %v944 = vsel %vm927, %v907, 0
      %v946 = vsel %vm927, %v909, 0
      %v948 = vsel %vm927, %v912, 0
      %v950 = vsel %vm927, %v914, 0
      %v952 = vsel %vm927, %v917, 0
      %v954 = vsel %vm927, %v919, 0
      %v956 = vsel %vm927, %v922, 0
      %v958 = vsel %vm927, %v924, 0
      %vm960 = vcmask 1043456
      %v962 = vsel %vm960, %v926, 0
      %964 = vmatprep.subr.mxu0 0.0
      %965 = vmatpush1.msra.mxu0 %v962
      %966 = vmatprep.subr.mxu0 0.0
      %967 = vmatpush1.msra.mxu0 0.0
      %968 = vmatprep.subr.mxu0 0.0
      %969 = vmatpush1.msra.mxu0 0.0
      %970 = vmatprep.subr.mxu0 0.0
      %971 = vmatpush1.msra.mxu0 0.0
      %972 = vmatprep.subr.mxu0 0.0
      %973 = vmatpush1.msra.mxu0 0.0
      %974 = vmatprep.subr.mxu0 0.0
      %975 = vmatpush1.msra.mxu0 0.0
      %976 = vmatprep.subr.mxu0 0.0
      %977 = vmatpush1.msra.mxu0 0.0
      %978 = vmatprep.subr.mxu0 0.0
      %979 = vmatpush1.msra.mxu0 0.0
      %980 = vmatprep.subr.mxu0 0.0
      %981 = vmatpush1.msra.mxu0 0.0
      %982 = vmatprep.subr.mxu0 0.0
      %983 = vmatpush1.msra.mxu0 0.0
      %984 = vmatprep.subr.mxu0 0.0
      %985 = vmatpush1.msra.mxu0 0.0
      %986 = vmatprep.subr.mxu0 0.0
      %987 = vmatpush1.msra.mxu0 0.0
      %988 = vmatprep.subr.mxu0 0.0
      %989 = vmatpush1.msra.mxu0 0.0
      %990 = vmatprep.subr.mxu0 0.0
      %991 = vmatpush1.msra.mxu0 0.0
      %992 = vmatprep.subr.mxu0 0.0
      %993 = vmatpush1.msra.mxu0 0.0
      %994 = vmatprep.subr.mxu0 0.0
      %995 = vmatpush1.msra.mxu0 0.0
      %996 = vmatprep.subr.mxu0 0.0
      %997 = vmatpush1.msra.mxu0 0.0
      %998 = vmatprep.subr.mxu0 0.0
      %999 = vmatpush1.msra.mxu0 0.0
      %1000 = vmatprep.subr.mxu0 0.0
      %1001 = vmatpush1.msra.mxu0 0.0
      %1002 = vmatprep.subr.mxu0 0.0
      %1003 = vmatpush1.msra.mxu0 0.0
      %1004 = vmatprep.subr.mxu0 0.0
      %1005 = vmatpush1.msra.mxu0 0.0
      %1006 = vmatprep.subr.mxu0 0.0
      %1007 = vmatpush1.msra.mxu0 0.0
      %1008 = vmatprep.subr.mxu0 0.0
      %1009 = vmatpush1.msra.mxu0 0.0
      %1010 = vmatprep.subr.mxu0 0.0
      %1011 = vmatpush1.msra.mxu0 0.0
      %1012 = vmatprep.subr.mxu0 0.0
      %1013 = vmatpush1.msra.mxu0 0.0
      %1014 = vmatprep.subr.mxu0 0.0
      %1015 = vmatpush1.msra.mxu0 0.0
      %1016 = vmatprep.subr.mxu0 0.0
      %1017 = vmatpush1.msra.mxu0 0.0
      %1018 = vmatprep.subr.mxu0 0.0
      %1019 = vmatpush1.msra.mxu0 0.0
      %1020 = vmatprep.subr.mxu0 0.0
      %1021 = vmatpush1.msra.mxu0 0.0
      %1022 = vmatprep.subr.mxu0 0.0
      %1023 = vmatpush1.msra.mxu0 0.0
      %1024 = vmatprep.subr.mxu0 0.0
      %1025 = vmatpush1.msra.mxu0 0.0
      %1026 = vmatprep.subr.mxu0 0.0
      %1027 = vmatpush1.msra.mxu0 0.0
      %1028 = vmatprep.mubr.f32.mxu0 0.0
      %1029 = vmatmul.mubr.f32.gmra.mrb[0].mxu0 %v928
      %v1030 = vpop.f32.mrb[0].mxu0
      %v1031 = vadd.f32 0.0, %v1030
      %v1032 = vpop.f32.mrb[0].mxu0
      %1033 = vmatprep.mubr.f32.mxu0 0.0
      %1034 = vmatmul.mubr.f32.gmra.mrb[0].mxu0 %v930
      %v1035 = vpop.f32.mrb[0].mxu0
      %v1036 = vadd.f32 0.0, %v1035
      %v1037 = vpop.f32.mrb[0].mxu0
      %1038 = vmatprep.mubr.f32.mxu0 0.0
      %1039 = vmatmul.mubr.f32.gmra.mrb[0].mxu0 %v932
      %v1040 = vpop.f32.mrb[0].mxu0
      %v1041 = vadd.f32 0.0, %v1040
      %v1042 = vpop.f32.mrb[0].mxu0
      %1043 = vmatprep.mubr.f32.mxu0 0.0
      %1044 = vmatmul.mubr.f32.gmra.mrb[0].mxu0 %v934
      %v1045 = vpop.f32.mrb[0].mxu0
      %v1046 = vadd.f32 0.0, %v1045
      %v1047 = vpop.f32.mrb[0].mxu0
      %1048 = vmatprep.mubr.f32.mxu0 0.0
      %1049 = vmatmul.mubr.f32.gmra.mrb[0].mxu0 %v936
      %v1050 = vpop.f32.mrb[0].mxu0
      %v1051 = vadd.f32 0.0, %v1050
      %v1052 = vpop.f32.mrb[0].mxu0
      %1053 = vmatprep.mubr.f32.mxu0 0.0
      %1054 = vmatmul.mubr.f32.gmra.mrb[0].mxu0 %v938
      %v1055 = vpop.f32.mrb[0].mxu0
      %v1056 = vadd.f32 0.0, %v1055
      %v1057 = vpop.f32.mrb[0].mxu0
      %1058 = vmatprep.mubr.f32.mxu0 0.0
      %1059 = vmatmul.mubr.f32.gmra.mrb[0].mxu0 %v940
      %v1060 = vpop.f32.mrb[0].mxu0
      %v1061 = vadd.f32 0.0, %v1060
      %v1062 = vpop.f32.mrb[0].mxu0
      %1063 = vmatprep.mubr.f32.mxu0 0.0
      %1064 = vmatmul.mubr.f32.gmra.mrb[0].mxu0 %v942
      %v1065 = vpop.f32.mrb[0].mxu0
      %v1066 = vadd.f32 0.0, %v1065
      %v1067 = vpop.f32.mrb[0].mxu0
      %1068 = vmatprep.mubr.f32.mxu0 0.0
      %1069 = vmatmul.mubr.f32.gmra.mrb[0].mxu0 %v944
      %v1070 = vpop.f32.mrb[0].mxu0
      %v1071 = vadd.f32 0.0, %v1070
      %v1072 = vpop.f32.mrb[0].mxu0
      %1073 = vmatprep.mubr.f32.mxu0 0.0
      %1074 = vmatmul.mubr.f32.gmra.mrb[0].mxu0 %v946
      %v1075 = vpop.f32.mrb[0].mxu0
      %v1076 = vadd.f32 0.0, %v1075
      %v1077 = vpop.f32.mrb[0].mxu0
      %1078 = vmatprep.mubr.f32.mxu0 0.0
      %1079 = vmatmul.mubr.f32.gmra.mrb[0].mxu0 %v948
      %v1080 = vpop.f32.mrb[0].mxu0
      %v1081 = vadd.f32 0.0, %v1080
      %v1082 = vpop.f32.mrb[0].mxu0
      %1083 = vmatprep.mubr.f32.mxu0 0.0
      %1084 = vmatmul.mubr.f32.gmra.mrb[0].mxu0 %v950
      %v1085 = vpop.f32.mrb[0].mxu0
      %v1086 = vadd.f32 0.0, %v1085
      %v1087 = vpop.f32.mrb[0].mxu0
      %1088 = vmatprep.mubr.f32.mxu0 0.0
      %1089 = vmatmul.mubr.f32.gmra.mrb[0].mxu0 %v952
      %v1090 = vpop.f32.mrb[0].mxu0
      %v1091 = vadd.f32 0.0, %v1090
      %v1092 = vpop.f32.mrb[0].mxu0
      %1093 = vmatprep.mubr.f32.mxu0 0.0
      %1094 = vmatmul.mubr.f32.gmra.mrb[0].mxu0 %v954
      %v1095 = vpop.f32.mrb[0].mxu0
      %v1096 = vadd.f32 0.0, %v1095
      %v1097 = vpop.f32.mrb[0].mxu0
      %1098 = vmatprep.mubr.f32.mxu0 0.0
      %1099 = vmatmul.mubr.f32.gmra.mrb[0].mxu0 %v956
      %v1100 = vpop.f32.mrb[0].mxu0
      %v1101 = vadd.f32 0.0, %v1100
      %v1102 = vpop.f32.mrb[0].mxu0
      %1103 = vmatprep.mubr.f32.mxu0 0.0
      %1104 = vmatmul.mubr.f32.gmra.mrb[0].mxu0 %v958
      %v1105 = vpop.f32.mrb[0].mxu0
      %v1106 = vadd.f32 0.0, %v1105
      %v1107 = vpop.f32.mrb[0].mxu0
      %1108 = vdwg.mxu0
      %v1109 = vsel %vm927, %v847, 0
      %v1111 = vsel %vm927, %v799, 0
      %v1113 = vsel %vm927, %v848, 0
      %v1115 = vsel %vm927, %v802, 0
      %v1117 = vsel %vm927, %v849, 0
      %v1119 = vsel %vm927, %v805, 0
      %v1121 = vsel %vm927, %v850, 0
      %v1123 = vsel %vm927, %v808, 0
      %v1125 = vsel %vm927, %v851, 0
      %v1127 = vsel %vm927, %v811, 0
      %v1129 = vsel %vm927, %v852, 0
      %v1131 = vsel %vm927, %v814, 0
      %v1133 = vsel %vm927, %v853, 0
      %v1135 = vsel %vm927, %v817, 0
      %v1137 = vsel %vm927, %v854, 0
      %v1139 = vsel %vm927, %v820, 0
      %v1142 = vsel %vm960, %v867, 0
      %1144 = vmatprep.subr.mxu0 0.0
      %1145 = vmatpush1.msra.mxu0 %v1142
      %1146 = vmatprep.subr.mxu0 0.0
      %1147 = vmatpush1.msra.mxu0 0.0
      %1148 = vmatprep.subr.mxu0 0.0
      %1149 = vmatpush1.msra.mxu0 0.0
      %1150 = vmatprep.subr.mxu0 0.0
      %1151 = vmatpush1.msra.mxu0 0.0
      %1152 = vmatprep.subr.mxu0 0.0
      %1153 = vmatpush1.msra.mxu0 0.0
      %1154 = vmatprep.subr.mxu0 0.0
      %1155 = vmatpush1.msra.mxu0 0.0
      %1156 = vmatprep.subr.mxu0 0.0
      %1157 = vmatpush1.msra.mxu0 0.0
      %1158 = vmatprep.subr.mxu0 0.0
      %1159 = vmatpush1.msra.mxu0 0.0
      %1160 = vmatprep.subr.mxu0 0.0
      %1161 = vmatpush1.msra.mxu0 0.0
      %1162 = vmatprep.subr.mxu0 0.0
      %1163 = vmatpush1.msra.mxu0 0.0
      %1164 = vmatprep.subr.mxu0 0.0
      %1165 = vmatpush1.msra.mxu0 0.0
      %1166 = vmatprep.subr.mxu0 0.0
      %1167 = vmatpush1.msra.mxu0 0.0
      %1168 = vmatprep.subr.mxu0 0.0
      %1169 = vmatpush1.msra.mxu0 0.0
      %1170 = vmatprep.subr.mxu0 0.0
      %1171 = vmatpush1.msra.mxu0 0.0
      %1172 = vmatprep.subr.mxu0 0.0
      %1173 = vmatpush1.msra.mxu0 0.0
      %1174 = vmatprep.subr.mxu0 0.0
      %1175 = vmatpush1.msra.mxu0 0.0
      %1176 = vmatprep.subr.mxu0 0.0
      %1177 = vmatpush1.msra.mxu0 0.0
      %1178 = vmatprep.subr.mxu0 0.0
      %1179 = vmatpush1.msra.mxu0 0.0
      %1180 = vmatprep.subr.mxu0 0.0
      %1181 = vmatpush1.msra.mxu0 0.0
      %1182 = vmatprep.subr.mxu0 0.0
      %1183 = vmatpush1.msra.mxu0 0.0
      %1184 = vmatprep.subr.mxu0 0.0
      %1185 = vmatpush1.msra.mxu0 0.0
      %1186 = vmatprep.subr.mxu0 0.0
      %1187 = vmatpush1.msra.mxu0 0.0
      %1188 = vmatprep.subr.mxu0 0.0
      %1189 = vmatpush1.msra.mxu0 0.0
      %1190 = vmatprep.subr.mxu0 0.0
      %1191 = vmatpush1.msra.mxu0 0.0
      %1192 = vmatprep.subr.mxu0 0.0
      %1193 = vmatpush1.msra.mxu0 0.0
      %1194 = vmatprep.subr.mxu0 0.0
      %1195 = vmatpush1.msra.mxu0 0.0
      %1196 = vmatprep.subr.mxu0 0.0
      %1197 = vmatpush1.msra.mxu0 0.0
      %1198 = vmatprep.subr.mxu0 0.0
      %1199 = vmatpush1.msra.mxu0 0.0
      %1200 = vmatprep.subr.mxu0 0.0
      %1201 = vmatpush1.msra.mxu0 0.0
      %1202 = vmatprep.subr.mxu0 0.0
      %1203 = vmatpush1.msra.mxu0 0.0
      %1204 = vmatprep.subr.mxu0 0.0
      %1205 = vmatpush1.msra.mxu0 0.0
      %1206 = vmatprep.subr.mxu0 0.0
      %1207 = vmatpush1.msra.mxu0 0.0
      %1208 = vmatprep.mubr.f32.mxu0 0.0
      %1209 = vmatmul.mubr.f32.gmra.mrb[0].mxu0 %v1109
      %v1210 = vpop.f32.mrb[0].mxu0
      %v1211 = vadd.f32 %v1031, %v1210
      %v1212 = vpop.f32.mrb[0].mxu0
      %1213 = vmatprep.mubr.f32.mxu0 0.0
      %1214 = vmatmul.mubr.f32.gmra.mrb[0].mxu0 %v1111
      %v1215 = vpop.f32.mrb[0].mxu0
      %v1216 = vadd.f32 %v1036, %v1215
      %v1217 = vpop.f32.mrb[0].mxu0
      %1218 = vmatprep.mubr.f32.mxu0 0.0
      %1219 = vmatmul.mubr.f32.gmra.mrb[0].mxu0 %v1113
      %v1220 = vpop.f32.mrb[0].mxu0
      %v1221 = vadd.f32 %v1041, %v1220
      %v1222 = vpop.f32.mrb[0].mxu0
      %1223 = vmatprep.mubr.f32.mxu0 0.0
      %1224 = vmatmul.mubr.f32.gmra.mrb[0].mxu0 %v1115
      %v1225 = vpop.f32.mrb[0].mxu0
      %v1226 = vadd.f32 %v1046, %v1225
      %v1227 = vpop.f32.mrb[0].mxu0
      %1228 = vmatprep.mubr.f32.mxu0 0.0
      %1229 = vmatmul.mubr.f32.gmra.mrb[0].mxu0 %v1117
      %v1230 = vpop.f32.mrb[0].mxu0
      %v1231 = vadd.f32 %v1051, %v1230
      %v1232 = vpop.f32.mrb[0].mxu0
      %1233 = vmatprep.mubr.f32.mxu0 0.0
      %1234 = vmatmul.mubr.f32.gmra.mrb[0].mxu0 %v1119
      %v1235 = vpop.f32.mrb[0].mxu0
      %v1236 = vadd.f32 %v1056, %v1235
      %v1237 = vpop.f32.mrb[0].mxu0
      %1238 = vmatprep.mubr.f32.mxu0 0.0
      %1239 = vmatmul.mubr.f32.gmra.mrb[0].mxu0 %v1121
      %v1240 = vpop.f32.mrb[0].mxu0
      %v1241 = vadd.f32 %v1061, %v1240
      %v1242 = vpop.f32.mrb[0].mxu0
      %1243 = vmatprep.mubr.f32.mxu0 0.0
      %1244 = vmatmul.mubr.f32.gmra.mrb[0].mxu0 %v1123
      %v1245 = vpop.f32.mrb[0].mxu0
      %v1246 = vadd.f32 %v1066, %v1245
      %v1247 = vpop.f32.mrb[0].mxu0
      %1248 = vmatprep.mubr.f32.mxu0 0.0
      %1249 = vmatmul.mubr.f32.gmra.mrb[0].mxu0 %v1125
      %v1250 = vpop.f32.mrb[0].mxu0
      %v1251 = vadd.f32 %v1071, %v1250
      %v1252 = vpop.f32.mrb[0].mxu0
      %1253 = vmatprep.mubr.f32.mxu0 0.0
      %1254 = vmatmul.mubr.f32.gmra.mrb[0].mxu0 %v1127
      %v1255 = vpop.f32.mrb[0].mxu0
      %v1256 = vadd.f32 %v1076, %v1255
      %v1257 = vpop.f32.mrb[0].mxu0
      %1258 = vmatprep.mubr.f32.mxu0 0.0
      %1259 = vmatmul.mubr.f32.gmra.mrb[0].mxu0 %v1129
      %v1260 = vpop.f32.mrb[0].mxu0
      %v1261 = vadd.f32 %v1081, %v1260
      %v1262 = vpop.f32.mrb[0].mxu0
      %1263 = vmatprep.mubr.f32.mxu0 0.0
      %1264 = vmatmul.mubr.f32.gmra.mrb[0].mxu0 %v1131
      %v1265 = vpop.f32.mrb[0].mxu0
      %v1266 = vadd.f32 %v1086, %v1265
      %v1267 = vpop.f32.mrb[0].mxu0
      %1268 = vmatprep.mubr.f32.mxu0 0.0
      %1269 = vmatmul.mubr.f32.gmra.mrb[0].mxu0 %v1133
      %v1270 = vpop.f32.mrb[0].mxu0
      %v1271 = vadd.f32 %v1091, %v1270
      %v1272 = vpop.f32.mrb[0].mxu0
      %1273 = vmatprep.mubr.f32.mxu0 0.0
      %1274 = vmatmul.mubr.f32.gmra.mrb[0].mxu0 %v1135
      %v1275 = vpop.f32.mrb[0].mxu0
      %v1276 = vadd.f32 %v1096, %v1275
      %v1277 = vpop.f32.mrb[0].mxu0
      %1278 = vmatprep.mubr.f32.mxu0 0.0
      %1279 = vmatmul.mubr.f32.gmra.mrb[0].mxu0 %v1137
      %v1280 = vpop.f32.mrb[0].mxu0
      %v1281 = vadd.f32 %v1101, %v1280
      %v1282 = vpop.f32.mrb[0].mxu0
      %1283 = vmatprep.mubr.f32.mxu0 0.0
      %1284 = vmatmul.mubr.f32.gmra.mrb[0].mxu0 %v1139
      %v1285 = vpop.f32.mrb[0].mxu0
      %v1286 = vadd.f32 %v1106, %v1285
      %v1287 = vpop.f32.mrb[0].mxu0
      %1288 = vdwg.mxu0
      %vm1289 = vcmask 1045504
      %v1290 = vrot.slane %v847, 2
      %v1291 = vrot.slane %v799, 2
      %v1292 = vsel %vm1289, %v1290, %v1291
      %v1293 = vrot.slane %v857, 2
      %v1294 = vsel %vm1289, %v1291, %v1293
      %v1295 = vrot.slane %v848, 2
      %v1296 = vrot.slane %v802, 2
      %v1297 = vsel %vm1289, %v1295, %v1296
      %v1298 = vrot.slane %v858, 2
      %v1299 = vsel %vm1289, %v1296, %v1298
      %v1300 = vrot.slane %v849, 2
      %v1301 = vrot.slane %v805, 2
      %v1302 = vsel %vm1289, %v1300, %v1301
      %v1303 = vrot.slane %v859, 2
      %v1304 = vsel %vm1289, %v1301, %v1303
      %v1305 = vrot.slane %v850, 2
      %v1306 = vrot.slane %v808, 2
      %v1307 = vsel %vm1289, %v1305, %v1306
      %v1308 = vrot.slane %v860, 2
      %v1309 = vsel %vm1289, %v1306, %v1308
      %v1310 = vrot.slane %v851, 2
      %v1311 = vrot.slane %v811, 2
      %v1312 = vsel %vm1289, %v1310, %v1311
      %v1313 = vrot.slane %v861, 2
      %v1314 = vsel %vm1289, %v1311, %v1313
      %v1315 = vrot.slane %v852, 2
      %v1316 = vrot.slane %v814, 2
      %v1317 = vsel %vm1289, %v1315, %v1316
      %v1318 = vrot.slane %v862, 2
      %v1319 = vsel %vm1289, %v1316, %v1318
      %v1320 = vrot.slane %v853, 2
      %v1321 = vrot.slane %v817, 2
      %v1322 = vsel %vm1289, %v1320, %v1321
      %v1323 = vrot.slane %v863, 2
      %v1324 = vsel %vm1289, %v1321, %v1323
      %v1325 = vrot.slane %v854, 2
      %v1326 = vrot.slane %v820, 2
      %v1327 = vsel %vm1289, %v1325, %v1326
      %v1328 = vrot.slane %v864, 2
      %v1329 = vsel %vm1289, %v1326, %v1328
      %s1330 = scalar_lea.vmem %s4, 8
      %v1331 = vld [vmem:[%s1330] sm:$0xf]
      %v1332 = vsel %vm927, %v1292, 0
      %v1334 = vsel %vm927, %v1294, 0
      %v1336 = vsel %vm927, %v1297, 0
      %v1338 = vsel %vm927, %v1299, 0
      %v1340 = vsel %vm927, %v1302, 0
      %v1342 = vsel %vm927, %v1304, 0
      %v1344 = vsel %vm927, %v1307, 0
      %v1346 = vsel %vm927, %v1309, 0
      %v1348 = vsel %vm927, %v1312, 0
      %v1350 = vsel %vm927, %v1314, 0
      %v1352 = vsel %vm927, %v1317, 0
      %v1354 = vsel %vm927, %v1319, 0
      %v1356 = vsel %vm927, %v1322, 0
      %v1358 = vsel %vm927, %v1324, 0
      %v1360 = vsel %vm927, %v1327, 0
      %v1362 = vsel %vm927, %v1329, 0
      %v1365 = vsel %vm960, %v1331, 0
      %1367 = vmatprep.subr.mxu0 0.0
      %1368 = vmatpush1.msra.mxu0 %v1365
      %1369 = vmatprep.subr.mxu0 0.0
      %1370 = vmatpush1.msra.mxu0 0.0
      %1371 = vmatprep.subr.mxu0 0.0
      %1372 = vmatpush1.msra.mxu0 0.0
      %1373 = vmatprep.subr.mxu0 0.0
      %1374 = vmatpush1.msra.mxu0 0.0
      %1375 = vmatprep.subr.mxu0 0.0
      %1376 = vmatpush1.msra.mxu0 0.0
      %1377 = vmatprep.subr.mxu0 0.0
      %1378 = vmatpush1.msra.mxu0 0.0
      %1379 = vmatprep.subr.mxu0 0.0
      %1380 = vmatpush1.msra.mxu0 0.0
      %1381 = vmatprep.subr.mxu0 0.0
      %1382 = vmatpush1.msra.mxu0 0.0
      %1383 = vmatprep.subr.mxu0 0.0
      %1384 = vmatpush1.msra.mxu0 0.0
      %1385 = vmatprep.subr.mxu0 0.0
      %1386 = vmatpush1.msra.mxu0 0.0
      %1387 = vmatprep.subr.mxu0 0.0
      %1388 = vmatpush1.msra.mxu0 0.0
      %1389 = vmatprep.subr.mxu0 0.0
      %1390 = vmatpush1.msra.mxu0 0.0
      %1391 = vmatprep.subr.mxu0 0.0
      %1392 = vmatpush1.msra.mxu0 0.0
      %1393 = vmatprep.subr.mxu0 0.0
      %1394 = vmatpush1.msra.mxu0 0.0
      %1395 = vmatprep.subr.mxu0 0.0
      %1396 = vmatpush1.msra.mxu0 0.0
      %1397 = vmatprep.subr.mxu0 0.0
      %1398 = vmatpush1.msra.mxu0 0.0
      %1399 = vmatprep.subr.mxu0 0.0
      %1400 = vmatpush1.msra.mxu0 0.0
      %1401 = vmatprep.subr.mxu0 0.0
      %1402 = vmatpush1.msra.mxu0 0.0
      %1403 = vmatprep.subr.mxu0 0.0
      %1404 = vmatpush1.msra.mxu0 0.0
      %1405 = vmatprep.subr.mxu0 0.0
      %1406 = vmatpush1.msra.mxu0 0.0
      %1407 = vmatprep.subr.mxu0 0.0
      %1408 = vmatpush1.msra.mxu0 0.0
      %1409 = vmatprep.subr.mxu0 0.0
      %1410 = vmatpush1.msra.mxu0 0.0
      %1411 = vmatprep.subr.mxu0 0.0
      %1412 = vmatpush1.msra.mxu0 0.0
      %1413 = vmatprep.subr.mxu0 0.0
      %1414 = vmatpush1.msra.mxu0 0.0
      %1415 = vmatprep.subr.mxu0 0.0
      %1416 = vmatpush1.msra.mxu0 0.0
      %1417 = vmatprep.subr.mxu0 0.0
      %1418 = vmatpush1.msra.mxu0 0.0
      %1419 = vmatprep.subr.mxu0 0.0
      %1420 = vmatpush1.msra.mxu0 0.0
      %1421 = vmatprep.subr.mxu0 0.0
      %1422 = vmatpush1.msra.mxu0 0.0
      %1423 = vmatprep.subr.mxu0 0.0
      %1424 = vmatpush1.msra.mxu0 0.0
      %1425 = vmatprep.subr.mxu0 0.0
      %1426 = vmatpush1.msra.mxu0 0.0
      %1427 = vmatprep.subr.mxu0 0.0
      %1428 = vmatpush1.msra.mxu0 0.0
      %1429 = vmatprep.subr.mxu0 0.0
      %1430 = vmatpush1.msra.mxu0 0.0
      %1431 = vmatprep.mubr.f32.mxu0 0.0
      %1432 = vmatmul.mubr.f32.gmra.mrb[0].mxu0 %v1332
      %v1433 = vpop.f32.mrb[0].mxu0
      %v1434 = vadd.f32 0.0, %v1433
      %v1435 = vpop.f32.mrb[0].mxu0
      %1436 = vmatprep.mubr.f32.mxu0 0.0
      %1437 = vmatmul.mubr.f32.gmra.mrb[0].mxu0 %v1334
      %v1438 = vpop.f32.mrb[0].mxu0
      %v1439 = vadd.f32 0.0, %v1438
      %v1440 = vpop.f32.mrb[0].mxu0
      %1441 = vmatprep.mubr.f32.mxu0 0.0
      %1442 = vmatmul.mubr.f32.gmra.mrb[0].mxu0 %v1336
      %v1443 = vpop.f32.mrb[0].mxu0
      %v1444 = vadd.f32 0.0, %v1443
      %v1445 = vpop.f32.mrb[0].mxu0
      %1446 = vmatprep.mubr.f32.mxu0 0.0
      %1447 = vmatmul.mubr.f32.gmra.mrb[0].mxu0 %v1338
      %v1448 = vpop.f32.mrb[0].mxu0
      %v1449 = vadd.f32 0.0, %v1448
      %v1450 = vpop.f32.mrb[0].mxu0
      %1451 = vmatprep.mubr.f32.mxu0 0.0
      %1452 = vmatmul.mubr.f32.gmra.mrb[0].mxu0 %v1340
      %v1453 = vpop.f32.mrb[0].mxu0
      %v1454 = vadd.f32 0.0, %v1453
      %v1455 = vpop.f32.mrb[0].mxu0
      %1456 = vmatprep.mubr.f32.mxu0 0.0
      %1457 = vmatmul.mubr.f32.gmra.mrb[0].mxu0 %v1342
      %v1458 = vpop.f32.mrb[0].mxu0
      %v1459 = vadd.f32 0.0, %v1458
      %v1460 = vpop.f32.mrb[0].mxu0
      %1461 = vmatprep.mubr.f32.mxu0 0.0
      %1462 = vmatmul.mubr.f32.gmra.mrb[0].mxu0 %v1344
      %v1463 = vpop.f32.mrb[0].mxu0
      %v1464 = vadd.f32 0.0, %v1463
      %v1465 = vpop.f32.mrb[0].mxu0
      %1466 = vmatprep.mubr.f32.mxu0 0.0
      %1467 = vmatmul.mubr.f32.gmra.mrb[0].mxu0 %v1346
      %v1468 = vpop.f32.mrb[0].mxu0
      %v1469 = vadd.f32 0.0, %v1468
      %v1470 = vpop.f32.mrb[0].mxu0
      %1471 = vmatprep.mubr.f32.mxu0 0.0
      %1472 = vmatmul.mubr.f32.gmra.mrb[0].mxu0 %v1348
      %v1473 = vpop.f32.mrb[0].mxu0
      %v1474 = vadd.f32 0.0, %v1473
      %v1475 = vpop.f32.mrb[0].mxu0
      %1476 = vmatprep.mubr.f32.mxu0 0.0
      %1477 = vmatmul.mubr.f32.gmra.mrb[0].mxu0 %v1350
      %v1478 = vpop.f32.mrb[0].mxu0
      %v1479 = vadd.f32 0.0, %v1478
      %v1480 = vpop.f32.mrb[0].mxu0
      %1481 = vmatprep.mubr.f32.mxu0 0.0
      %1482 = vmatmul.mubr.f32.gmra.mrb[0].mxu0 %v1352
      %v1483 = vpop.f32.mrb[0].mxu0
      %v1484 = vadd.f32 0.0, %v1483
      %v1485 = vpop.f32.mrb[0].mxu0
      %1486 = vmatprep.mubr.f32.mxu0 0.0
      %1487 = vmatmul.mubr.f32.gmra.mrb[0].mxu0 %v1354
      %v1488 = vpop.f32.mrb[0].mxu0
      %v1489 = vadd.f32 0.0, %v1488
      %v1490 = vpop.f32.mrb[0].mxu0
      %1491 = vmatprep.mubr.f32.mxu0 0.0
      %1492 = vmatmul.mubr.f32.gmra.mrb[0].mxu0 %v1356
      %v1493 = vpop.f32.mrb[0].mxu0
      %v1494 = vadd.f32 0.0, %v1493
      %v1495 = vpop.f32.mrb[0].mxu0
      %1496 = vmatprep.mubr.f32.mxu0 0.0
      %1497 = vmatmul.mubr.f32.gmra.mrb[0].mxu0 %v1358
      %v1498 = vpop.f32.mrb[0].mxu0
      %v1499 = vadd.f32 0.0, %v1498
      %v1500 = vpop.f32.mrb[0].mxu0
      %1501 = vmatprep.mubr.f32.mxu0 0.0
      %1502 = vmatmul.mubr.f32.gmra.mrb[0].mxu0 %v1360
      %v1503 = vpop.f32.mrb[0].mxu0
      %v1504 = vadd.f32 0.0, %v1503
      %v1505 = vpop.f32.mrb[0].mxu0
      %1506 = vmatprep.mubr.f32.mxu0 0.0
      %1507 = vmatmul.mubr.f32.gmra.mrb[0].mxu0 %v1362
      %v1508 = vpop.f32.mrb[0].mxu0
      %v1509 = vadd.f32 0.0, %v1508
      %v1510 = vpop.f32.mrb[0].mxu0
      %1511 = vdwg.mxu0
      %v1512 = vadd.f32 %v1211, %v1434
      %v1513 = vadd.f32 %v1216, %v1439
      %v1514 = vadd.f32 %v1221, %v1444
      %v1515 = vadd.f32 %v1226, %v1449
      %v1516 = vadd.f32 %v1231, %v1454
      %v1517 = vadd.f32 %v1236, %v1459
      %v1518 = vadd.f32 %v1241, %v1464
      %v1519 = vadd.f32 %v1246, %v1469
      %v1520 = vadd.f32 %v1251, %v1474
      %v1521 = vadd.f32 %v1256, %v1479
      %v1522 = vadd.f32 %v1261, %v1484
      %v1523 = vadd.f32 %v1266, %v1489
      %v1524 = vadd.f32 %v1271, %v1494
      %v1525 = vadd.f32 %v1276, %v1499
      %v1526 = vadd.f32 %v1281, %v1504
      %v1527 = vadd.f32 %v1286, %v1509
      %s1528 = scalar_lea.vmem %s4, 12
      %v1529 = vld [vmem:[%s1528] sm:$0xf]
      %v1531 = vsel %vm927, %v855, 0
      %v1533 = vsel %vm927, %v823, 0
      %v1536 = vsel %vm960, %v1529, 0
      %1538 = vmatprep.subr.mxu0 0.0
      %1539 = vmatpush1.msra.mxu0 %v1536
      %1540 = vmatprep.subr.mxu0 0.0
      %1541 = vmatpush1.msra.mxu0 0.0
      %1542 = vmatprep.subr.mxu0 0.0
      %1543 = vmatpush1.msra.mxu0 0.0
      %1544 = vmatprep.subr.mxu0 0.0
      %1545 = vmatpush1.msra.mxu0 0.0
      %1546 = vmatprep.subr.mxu0 0.0
      %1547 = vmatpush1.msra.mxu0 0.0
      %1548 = vmatprep.subr.mxu0 0.0
      %1549 = vmatpush1.msra.mxu0 0.0
      %1550 = vmatprep.subr.mxu0 0.0
      %1551 = vmatpush1.msra.mxu0 0.0
      %1552 = vmatprep.subr.mxu0 0.0
      %1553 = vmatpush1.msra.mxu0 0.0
      %1554 = vmatprep.subr.mxu0 0.0
      %1555 = vmatpush1.msra.mxu0 0.0
      %1556 = vmatprep.subr.mxu0 0.0
      %1557 = vmatpush1.msra.mxu0 0.0
      %1558 = vmatprep.subr.mxu0 0.0
      %1559 = vmatpush1.msra.mxu0 0.0
      %1560 = vmatprep.subr.mxu0 0.0
      %1561 = vmatpush1.msra.mxu0 0.0
      %1562 = vmatprep.subr.mxu0 0.0
      %1563 = vmatpush1.msra.mxu0 0.0
      %1564 = vmatprep.subr.mxu0 0.0
      %1565 = vmatpush1.msra.mxu0 0.0
      %1566 = vmatprep.subr.mxu0 0.0
      %1567 = vmatpush1.msra.mxu0 0.0
      %1568 = vmatprep.subr.mxu0 0.0
      %1569 = vmatpush1.msra.mxu0 0.0
      %1570 = vmatprep.subr.mxu0 0.0
      %1571 = vmatpush1.msra.mxu0 0.0
      %1572 = vmatprep.subr.mxu0 0.0
      %1573 = vmatpush1.msra.mxu0 0.0
      %1574 = vmatprep.subr.mxu0 0.0
      %1575 = vmatpush1.msra.mxu0 0.0
      %1576 = vmatprep.subr.mxu0 0.0
      %1577 = vmatpush1.msra.mxu0 0.0
      %1578 = vmatprep.subr.mxu0 0.0
      %1579 = vmatpush1.msra.mxu0 0.0
      %1580 = vmatprep.subr.mxu0 0.0
      %1581 = vmatpush1.msra.mxu0 0.0
      %1582 = vmatprep.subr.mxu0 0.0
      %1583 = vmatpush1.msra.mxu0 0.0
      %1584 = vmatprep.subr.mxu0 0.0
      %1585 = vmatpush1.msra.mxu0 0.0
      %1586 = vmatprep.subr.mxu0 0.0
      %1587 = vmatpush1.msra.mxu0 0.0
      %1588 = vmatprep.subr.mxu0 0.0
      %1589 = vmatpush1.msra.mxu0 0.0
      %1590 = vmatprep.subr.mxu0 0.0
      %1591 = vmatpush1.msra.mxu0 0.0
      %1592 = vmatprep.subr.mxu0 0.0
      %1593 = vmatpush1.msra.mxu0 0.0
      %1594 = vmatprep.subr.mxu0 0.0
      %1595 = vmatpush1.msra.mxu0 0.0
      %1596 = vmatprep.subr.mxu0 0.0
      %1597 = vmatpush1.msra.mxu0 0.0
      %1598 = vmatprep.subr.mxu0 0.0
      %1599 = vmatpush1.msra.mxu0 0.0
      %1600 = vmatprep.subr.mxu0 0.0
      %1601 = vmatpush1.msra.mxu0 0.0
      %1602 = vmatprep.mubr.f32.mxu0 0.0
      %1603 = vmatmul.mubr.f32.gmra.mrb[0].mxu0 %v1113
      %v1604 = vpop.f32.mrb[0].mxu0
      %v1605 = vadd.f32 0.0, %v1604
      %v1606 = vpop.f32.mrb[0].mxu0
      %1607 = vmatprep.mubr.f32.mxu0 0.0
      %1608 = vmatmul.mubr.f32.gmra.mrb[0].mxu0 %v1115
      %v1609 = vpop.f32.mrb[0].mxu0
      %v1610 = vadd.f32 0.0, %v1609
      %v1611 = vpop.f32.mrb[0].mxu0
      %1612 = vmatprep.mubr.f32.mxu0 0.0
      %1613 = vmatmul.mubr.f32.gmra.mrb[0].mxu0 %v1117
      %v1614 = vpop.f32.mrb[0].mxu0
      %v1615 = vadd.f32 0.0, %v1614
      %v1616 = vpop.f32.mrb[0].mxu0
      %1617 = vmatprep.mubr.f32.mxu0 0.0
      %1618 = vmatmul.mubr.f32.gmra.mrb[0].mxu0 %v1119
      %v1619 = vpop.f32.mrb[0].mxu0
      %v1620 = vadd.f32 0.0, %v1619
      %v1621 = vpop.f32.mrb[0].mxu0
      %1622 = vmatprep.mubr.f32.mxu0 0.0
      %1623 = vmatmul.mubr.f32.gmra.mrb[0].mxu0 %v1121
      %v1624 = vpop.f32.mrb[0].mxu0
      %v1625 = vadd.f32 0.0, %v1624
      %v1626 = vpop.f32.mrb[0].mxu0
      %1627 = vmatprep.mubr.f32.mxu0 0.0
      %1628 = vmatmul.mubr.f32.gmra.mrb[0].mxu0 %v1123
      %v1629 = vpop.f32.mrb[0].mxu0
      %v1630 = vadd.f32 0.0, %v1629
      %v1631 = vpop.f32.mrb[0].mxu0
      %1632 = vmatprep.mubr.f32.mxu0 0.0
      %1633 = vmatmul.mubr.f32.gmra.mrb[0].mxu0 %v1125
      %v1634 = vpop.f32.mrb[0].mxu0
      %v1635 = vadd.f32 0.0, %v1634
      %v1636 = vpop.f32.mrb[0].mxu0
      %1637 = vmatprep.mubr.f32.mxu0 0.0
      %1638 = vmatmul.mubr.f32.gmra.mrb[0].mxu0 %v1127
      %v1639 = vpop.f32.mrb[0].mxu0
      %v1640 = vadd.f32 0.0, %v1639
      %v1641 = vpop.f32.mrb[0].mxu0
      %1642 = vmatprep.mubr.f32.mxu0 0.0
      %1643 = vmatmul.mubr.f32.gmra.mrb[0].mxu0 %v1129
      %v1644 = vpop.f32.mrb[0].mxu0
      %v1645 = vadd.f32 0.0, %v1644
      %v1646 = vpop.f32.mrb[0].mxu0
      %1647 = vmatprep.mubr.f32.mxu0 0.0
      %1648 = vmatmul.mubr.f32.gmra.mrb[0].mxu0 %v1131
      %v1649 = vpop.f32.mrb[0].mxu0
      %v1650 = vadd.f32 0.0, %v1649
      %v1651 = vpop.f32.mrb[0].mxu0
      %1652 = vmatprep.mubr.f32.mxu0 0.0
      %1653 = vmatmul.mubr.f32.gmra.mrb[0].mxu0 %v1133
      %v1654 = vpop.f32.mrb[0].mxu0
      %v1655 = vadd.f32 0.0, %v1654
      %v1656 = vpop.f32.mrb[0].mxu0
      %1657 = vmatprep.mubr.f32.mxu0 0.0
      %1658 = vmatmul.mubr.f32.gmra.mrb[0].mxu0 %v1135
      %v1659 = vpop.f32.mrb[0].mxu0
      %v1660 = vadd.f32 0.0, %v1659
      %v1661 = vpop.f32.mrb[0].mxu0
      %1662 = vmatprep.mubr.f32.mxu0 0.0
      %1663 = vmatmul.mubr.f32.gmra.mrb[0].mxu0 %v1137
      %v1664 = vpop.f32.mrb[0].mxu0
      %v1665 = vadd.f32 0.0, %v1664
      %v1666 = vpop.f32.mrb[0].mxu0
      %1667 = vmatprep.mubr.f32.mxu0 0.0
      %1668 = vmatmul.mubr.f32.gmra.mrb[0].mxu0 %v1139
      %v1669 = vpop.f32.mrb[0].mxu0
      %v1670 = vadd.f32 0.0, %v1669
      %v1671 = vpop.f32.mrb[0].mxu0
      %1672 = vmatprep.mubr.f32.mxu0 0.0
      %1673 = vmatmul.mubr.f32.gmra.mrb[0].mxu0 %v1531
      %v1674 = vpop.f32.mrb[0].mxu0
      %v1675 = vadd.f32 0.0, %v1674
      %v1676 = vpop.f32.mrb[0].mxu0
      %1677 = vmatprep.mubr.f32.mxu0 0.0
      %1678 = vmatmul.mubr.f32.gmra.mrb[0].mxu0 %v1533
      %v1679 = vpop.f32.mrb[0].mxu0
      %v1680 = vadd.f32 0.0, %v1679
      %v1681 = vpop.f32.mrb[0].mxu0
      %1682 = vdwg.mxu0
      %v1683 = vadd.f32 %v1512, %v1605
      %v1684 = vadd.f32 %v1513, %v1610
      %v1685 = vadd.f32 %v1514, %v1615
      %v1686 = vadd.f32 %v1515, %v1620
      %v1687 = vadd.f32 %v1516, %v1625
      %v1688 = vadd.f32 %v1517, %v1630
      %v1689 = vadd.f32 %v1518, %v1635
      %v1690 = vadd.f32 %v1519, %v1640
      %v1691 = vadd.f32 %v1520, %v1645
      %v1692 = vadd.f32 %v1521, %v1650
      %v1693 = vadd.f32 %v1522, %v1655
      %v1694 = vadd.f32 %v1523, %v1660
      %v1695 = vadd.f32 %v1524, %v1665
      %v1696 = vadd.f32 %v1525, %v1670
      %v1697 = vadd.f32 %v1526, %v1675
      %v1698 = vadd.f32 %v1527, %v1680
      %v1700 = vrot.slane %v855, 1
      %v1701 = vrot.slane %v823, 1
      %v1702 = vsel %vm884, %v1700, %v1701
      %v1703 = vrot.slane %v865, 1
      %v1704 = vsel %vm884, %v1701, %v1703
      %s1705 = scalar_lea.vmem %s4, 16
      %v1706 = vld [vmem:[%s1705] sm:$0xf]
      %v1707 = vsel %vm927, %v1702, 0
      %v1709 = vsel %vm927, %v1704, 0
      %v1712 = vsel %vm960, %v1706, 0
      %1714 = vmatprep.subr.mxu0 0.0
      %1715 = vmatpush1.msra.mxu0 %v1712
      %1716 = vmatprep.subr.mxu0 0.0
      %1717 = vmatpush1.msra.mxu0 0.0
      %1718 = vmatprep.subr.mxu0 0.0
      %1719 = vmatpush1.msra.mxu0 0.0
      %1720 = vmatprep.subr.mxu0 0.0
      %1721 = vmatpush1.msra.mxu0 0.0
      %1722 = vmatprep.subr.mxu0 0.0
      %1723 = vmatpush1.msra.mxu0 0.0
      %1724 = vmatprep.subr.mxu0 0.0
      %1725 = vmatpush1.msra.mxu0 0.0
      %1726 = vmatprep.subr.mxu0 0.0
      %1727 = vmatpush1.msra.mxu0 0.0
      %1728 = vmatprep.subr.mxu0 0.0
      %1729 = vmatpush1.msra.mxu0 0.0
      %1730 = vmatprep.subr.mxu0 0.0
      %1731 = vmatpush1.msra.mxu0 0.0
      %1732 = vmatprep.subr.mxu0 0.0
      %1733 = vmatpush1.msra.mxu0 0.0
      %1734 = vmatprep.subr.mxu0 0.0
      %1735 = vmatpush1.msra.mxu0 0.0
      %1736 = vmatprep.subr.mxu0 0.0
      %1737 = vmatpush1.msra.mxu0 0.0
      %1738 = vmatprep.subr.mxu0 0.0
      %1739 = vmatpush1.msra.mxu0 0.0
      %1740 = vmatprep.subr.mxu0 0.0
      %1741 = vmatpush1.msra.mxu0 0.0
      %1742 = vmatprep.subr.mxu0 0.0
      %1743 = vmatpush1.msra.mxu0 0.0
      %1744 = vmatprep.subr.mxu0 0.0
      %1745 = vmatpush1.msra.mxu0 0.0
      %1746 = vmatprep.subr.mxu0 0.0
      %1747 = vmatpush1.msra.mxu0 0.0
      %1748 = vmatprep.subr.mxu0 0.0
      %1749 = vmatpush1.msra.mxu0 0.0
      %1750 = vmatprep.subr.mxu0 0.0
      %1751 = vmatpush1.msra.mxu0 0.0
      %1752 = vmatprep.subr.mxu0 0.0
      %1753 = vmatpush1.msra.mxu0 0.0
      %1754 = vmatprep.subr.mxu0 0.0
      %1755 = vmatpush1.msra.mxu0 0.0
      %1756 = vmatprep.subr.mxu0 0.0
      %1757 = vmatpush1.msra.mxu0 0.0
      %1758 = vmatprep.subr.mxu0 0.0
      %1759 = vmatpush1.msra.mxu0 0.0
      %1760 = vmatprep.subr.mxu0 0.0
      %1761 = vmatpush1.msra.mxu0 0.0
      %1762 = vmatprep.subr.mxu0 0.0
      %1763 = vmatpush1.msra.mxu0 0.0
      %1764 = vmatprep.subr.mxu0 0.0
      %1765 = vmatpush1.msra.mxu0 0.0
      %1766 = vmatprep.subr.mxu0 0.0
      %1767 = vmatpush1.msra.mxu0 0.0
      %1768 = vmatprep.subr.mxu0 0.0
      %1769 = vmatpush1.msra.mxu0 0.0
      %1770 = vmatprep.subr.mxu0 0.0
      %1771 = vmatpush1.msra.mxu0 0.0
      %1772 = vmatprep.subr.mxu0 0.0
      %1773 = vmatpush1.msra.mxu0 0.0
      %1774 = vmatprep.subr.mxu0 0.0
      %1775 = vmatpush1.msra.mxu0 0.0
      %1776 = vmatprep.subr.mxu0 0.0
      %1777 = vmatpush1.msra.mxu0 0.0
      %1778 = vmatprep.mubr.f32.mxu0 0.0
      %1779 = vmatmul.mubr.f32.gmra.mrb[0].mxu0 %v932
      %v1780 = vpop.f32.mrb[0].mxu0
      %v1781 = vadd.f32 0.0, %v1780
      %v1782 = vpop.f32.mrb[0].mxu0
      %1783 = vmatprep.mubr.f32.mxu0 0.0
      %1784 = vmatmul.mubr.f32.gmra.mrb[0].mxu0 %v934
      %v1785 = vpop.f32.mrb[0].mxu0
      %v1786 = vadd.f32 0.0, %v1785
      %v1787 = vpop.f32.mrb[0].mxu0
      %1788 = vmatprep.mubr.f32.mxu0 0.0
      %1789 = vmatmul.mubr.f32.gmra.mrb[0].mxu0 %v936
      %v1790 = vpop.f32.mrb[0].mxu0
      %v1791 = vadd.f32 0.0, %v1790
      %v1792 = vpop.f32.mrb[0].mxu0
      %1793 = vmatprep.mubr.f32.mxu0 0.0
      %1794 = vmatmul.mubr.f32.gmra.mrb[0].mxu0 %v938
      %v1795 = vpop.f32.mrb[0].mxu0
      %v1796 = vadd.f32 0.0, %v1795
      %v1797 = vpop.f32.mrb[0].mxu0
      %1798 = vmatprep.mubr.f32.mxu0 0.0
      %1799 = vmatmul.mubr.f32.gmra.mrb[0].mxu0 %v940
      %v1800 = vpop.f32.mrb[0].mxu0
      %v1801 = vadd.f32 0.0, %v1800
      %v1802 = vpop.f32.mrb[0].mxu0
      %1803 = vmatprep.mubr.f32.mxu0 0.0
      %1804 = vmatmul.mubr.f32.gmra.mrb[0].mxu0 %v942
      %v1805 = vpop.f32.mrb[0].mxu0
      %v1806 = vadd.f32 0.0, %v1805
      %v1807 = vpop.f32.mrb[0].mxu0
      %1808 = vmatprep.mubr.f32.mxu0 0.0
      %1809 = vmatmul.mubr.f32.gmra.mrb[0].mxu0 %v944
      %v1810 = vpop.f32.mrb[0].mxu0
      %v1811 = vadd.f32 0.0, %v1810
      %v1812 = vpop.f32.mrb[0].mxu0
      %1813 = vmatprep.mubr.f32.mxu0 0.0
      %1814 = vmatmul.mubr.f32.gmra.mrb[0].mxu0 %v946
      %v1815 = vpop.f32.mrb[0].mxu0
      %v1816 = vadd.f32 0.0, %v1815
      %v1817 = vpop.f32.mrb[0].mxu0
      %1818 = vmatprep.mubr.f32.mxu0 0.0
      %1819 = vmatmul.mubr.f32.gmra.mrb[0].mxu0 %v948
      %v1820 = vpop.f32.mrb[0].mxu0
      %v1821 = vadd.f32 0.0, %v1820
      %v1822 = vpop.f32.mrb[0].mxu0
      %1823 = vmatprep.mubr.f32.mxu0 0.0
      %1824 = vmatmul.mubr.f32.gmra.mrb[0].mxu0 %v950
      %v1825 = vpop.f32.mrb[0].mxu0
      %v1826 = vadd.f32 0.0, %v1825
      %v1827 = vpop.f32.mrb[0].mxu0
      %1828 = vmatprep.mubr.f32.mxu0 0.0
      %1829 = vmatmul.mubr.f32.gmra.mrb[0].mxu0 %v952
      %v1830 = vpop.f32.mrb[0].mxu0
      %v1831 = vadd.f32 0.0, %v1830
      %v1832 = vpop.f32.mrb[0].mxu0
      %1833 = vmatprep.mubr.f32.mxu0 0.0
      %1834 = vmatmul.mubr.f32.gmra.mrb[0].mxu0 %v954
      %v1835 = vpop.f32.mrb[0].mxu0
      %v1836 = vadd.f32 0.0, %v1835
      %v1837 = vpop.f32.mrb[0].mxu0
      %1838 = vmatprep.mubr.f32.mxu0 0.0
      %1839 = vmatmul.mubr.f32.gmra.mrb[0].mxu0 %v956
      %v1840 = vpop.f32.mrb[0].mxu0
      %v1841 = vadd.f32 0.0, %v1840
      %v1842 = vpop.f32.mrb[0].mxu0
      %1843 = vmatprep.mubr.f32.mxu0 0.0
      %1844 = vmatmul.mubr.f32.gmra.mrb[0].mxu0 %v958
      %v1845 = vpop.f32.mrb[0].mxu0
      %v1846 = vadd.f32 0.0, %v1845
      %v1847 = vpop.f32.mrb[0].mxu0
      %1848 = vmatprep.mubr.f32.mxu0 0.0
      %1849 = vmatmul.mubr.f32.gmra.mrb[0].mxu0 %v1707
      %v1850 = vpop.f32.mrb[0].mxu0
      %v1851 = vadd.f32 0.0, %v1850
      %v1852 = vpop.f32.mrb[0].mxu0
      %1853 = vmatprep.mubr.f32.mxu0 0.0
      %1854 = vmatmul.mubr.f32.gmra.mrb[0].mxu0 %v1709
      %v1855 = vpop.f32.mrb[0].mxu0
      %v1856 = vadd.f32 0.0, %v1855
      %v1857 = vpop.f32.mrb[0].mxu0
      %1858 = vdwg.mxu0
      %v1859 = vadd.f32 %v1683, %v1781
      %v1860 = vadd.f32 %v1684, %v1786
      %v1861 = vadd.f32 %v1685, %v1791
      %v1862 = vadd.f32 %v1686, %v1796
      %v1863 = vadd.f32 %v1687, %v1801
      %v1864 = vadd.f32 %v1688, %v1806
      %v1865 = vadd.f32 %v1689, %v1811
      %v1866 = vadd.f32 %v1690, %v1816
      %v1867 = vadd.f32 %v1691, %v1821
      %v1868 = vadd.f32 %v1692, %v1826
      %v1869 = vadd.f32 %v1693, %v1831
      %v1870 = vadd.f32 %v1694, %v1836
      %v1871 = vadd.f32 %v1695, %v1841
      %v1872 = vadd.f32 %v1696, %v1846
      %v1873 = vadd.f32 %v1697, %v1851
      %v1874 = vadd.f32 %v1698, %v1856
      %v1875 = vrot.slane %v855, 2
      %v1876 = vrot.slane %v823, 2
      %v1877 = vsel %vm1289, %v1875, %v1876
      %v1878 = vrot.slane %v865, 2
      %v1879 = vsel %vm1289, %v1876, %v1878
      %s1880 = scalar_lea.vmem %s4, 20
      %v1881 = vld [vmem:[%s1880] sm:$0xf]
      %v1882 = vsel %vm927, %v1877, 0
      %v1884 = vsel %vm927, %v1879, 0
      %v1887 = vsel %vm960, %v1881, 0
      %1889 = vmatprep.subr.mxu0 0.0
      %1890 = vmatpush1.msra.mxu0 %v1887
      %1891 = vmatprep.subr.mxu0 0.0
      %1892 = vmatpush1.msra.mxu0 0.0
      %1893 = vmatprep.subr.mxu0 0.0
      %1894 = vmatpush1.msra.mxu0 0.0
      %1895 = vmatprep.subr.mxu0 0.0
      %1896 = vmatpush1.msra.mxu0 0.0
      %1897 = vmatprep.subr.mxu0 0.0
      %1898 = vmatpush1.msra.mxu0 0.0
      %1899 = vmatprep.subr.mxu0 0.0
      %1900 = vmatpush1.msra.mxu0 0.0
      %1901 = vmatprep.subr.mxu0 0.0
      %1902 = vmatpush1.msra.mxu0 0.0
      %1903 = vmatprep.subr.mxu0 0.0
      %1904 = vmatpush1.msra.mxu0 0.0
      %1905 = vmatprep.subr.mxu0 0.0
      %1906 = vmatpush1.msra.mxu0 0.0
      %1907 = vmatprep.subr.mxu0 0.0
      %1908 = vmatpush1.msra.mxu0 0.0
      %1909 = vmatprep.subr.mxu0 0.0
      %1910 = vmatpush1.msra.mxu0 0.0
      %1911 = vmatprep.subr.mxu0 0.0
      %1912 = vmatpush1.msra.mxu0 0.0
      %1913 = vmatprep.subr.mxu0 0.0
      %1914 = vmatpush1.msra.mxu0 0.0
      %1915 = vmatprep.subr.mxu0 0.0
      %1916 = vmatpush1.msra.mxu0 0.0
      %1917 = vmatprep.subr.mxu0 0.0
      %1918 = vmatpush1.msra.mxu0 0.0
      %1919 = vmatprep.subr.mxu0 0.0
      %1920 = vmatpush1.msra.mxu0 0.0
      %1921 = vmatprep.subr.mxu0 0.0
      %1922 = vmatpush1.msra.mxu0 0.0
      %1923 = vmatprep.subr.mxu0 0.0
      %1924 = vmatpush1.msra.mxu0 0.0
      %1925 = vmatprep.subr.mxu0 0.0
      %1926 = vmatpush1.msra.mxu0 0.0
      %1927 = vmatprep.subr.mxu0 0.0
      %1928 = vmatpush1.msra.mxu0 0.0
      %1929 = vmatprep.subr.mxu0 0.0
      %1930 = vmatpush1.msra.mxu0 0.0
      %1931 = vmatprep.subr.mxu0 0.0
      %1932 = vmatpush1.msra.mxu0 0.0
      %1933 = vmatprep.subr.mxu0 0.0
      %1934 = vmatpush1.msra.mxu0 0.0
      %1935 = vmatprep.subr.mxu0 0.0
      %1936 = vmatpush1.msra.mxu0 0.0
      %1937 = vmatprep.subr.mxu0 0.0
      %1938 = vmatpush1.msra.mxu0 0.0
      %1939 = vmatprep.subr.mxu0 0.0
      %1940 = vmatpush1.msra.mxu0 0.0
      %1941 = vmatprep.subr.mxu0 0.0
      %1942 = vmatpush1.msra.mxu0 0.0
      %1943 = vmatprep.subr.mxu0 0.0
      %1944 = vmatpush1.msra.mxu0 0.0
      %1945 = vmatprep.subr.mxu0 0.0
      %1946 = vmatpush1.msra.mxu0 0.0
      %1947 = vmatprep.subr.mxu0 0.0
      %1948 = vmatpush1.msra.mxu0 0.0
      %1949 = vmatprep.subr.mxu0 0.0
      %1950 = vmatpush1.msra.mxu0 0.0
      %1951 = vmatprep.subr.mxu0 0.0
      %1952 = vmatpush1.msra.mxu0 0.0
      %1953 = vmatprep.mubr.f32.mxu0 0.0
      %1954 = vmatmul.mubr.f32.gmra.mrb[0].mxu0 %v1336
      %v1955 = vpop.f32.mrb[0].mxu0
      %v1956 = vadd.f32 0.0, %v1955
      %v1957 = vpop.f32.mrb[0].mxu0
      %1958 = vmatprep.mubr.f32.mxu0 0.0
      %1959 = vmatmul.mubr.f32.gmra.mrb[0].mxu0 %v1338
      %v1960 = vpop.f32.mrb[0].mxu0
      %v1961 = vadd.f32 0.0, %v1960
      %v1962 = vpop.f32.mrb[0].mxu0
      %1963 = vmatprep.mubr.f32.mxu0 0.0
      %1964 = vmatmul.mubr.f32.gmra.mrb[0].mxu0 %v1340
      %v1965 = vpop.f32.mrb[0].mxu0
      %v1966 = vadd.f32 0.0, %v1965
      %v1967 = vpop.f32.mrb[0].mxu0
      %1968 = vmatprep.mubr.f32.mxu0 0.0
      %1969 = vmatmul.mubr.f32.gmra.mrb[0].mxu0 %v1342
      %v1970 = vpop.f32.mrb[0].mxu0
      %v1971 = vadd.f32 0.0, %v1970
      %v1972 = vpop.f32.mrb[0].mxu0
      %1973 = vmatprep.mubr.f32.mxu0 0.0
      %1974 = vmatmul.mubr.f32.gmra.mrb[0].mxu0 %v1344
      %v1975 = vpop.f32.mrb[0].mxu0
      %v1976 = vadd.f32 0.0, %v1975
      %v1977 = vpop.f32.mrb[0].mxu0
      %1978 = vmatprep.mubr.f32.mxu0 0.0
      %1979 = vmatmul.mubr.f32.gmra.mrb[0].mxu0 %v1346
      %v1980 = vpop.f32.mrb[0].mxu0
      %v1981 = vadd.f32 0.0, %v1980
      %v1982 = vpop.f32.mrb[0].mxu0
      %1983 = vmatprep.mubr.f32.mxu0 0.0
      %1984 = vmatmul.mubr.f32.gmra.mrb[0].mxu0 %v1348
      %v1985 = vpop.f32.mrb[0].mxu0
      %v1986 = vadd.f32 0.0, %v1985
      %v1987 = vpop.f32.mrb[0].mxu0
      %1988 = vmatprep.mubr.f32.mxu0 0.0
      %1989 = vmatmul.mubr.f32.gmra.mrb[0].mxu0 %v1350
      %v1990 = vpop.f32.mrb[0].mxu0
      %v1991 = vadd.f32 0.0, %v1990
      %v1992 = vpop.f32.mrb[0].mxu0
      %1993 = vmatprep.mubr.f32.mxu0 0.0
      %1994 = vmatmul.mubr.f32.gmra.mrb[0].mxu0 %v1352
      %v1995 = vpop.f32.mrb[0].mxu0
      %v1996 = vadd.f32 0.0, %v1995
      %v1997 = vpop.f32.mrb[0].mxu0
      %1998 = vmatprep.mubr.f32.mxu0 0.0
      %1999 = vmatmul.mubr.f32.gmra.mrb[0].mxu0 %v1354
      %v2000 = vpop.f32.mrb[0].mxu0
      %v2001 = vadd.f32 0.0, %v2000
      %v2002 = vpop.f32.mrb[0].mxu0
      %2003 = vmatprep.mubr.f32.mxu0 0.0
      %2004 = vmatmul.mubr.f32.gmra.mrb[0].mxu0 %v1356
      %v2005 = vpop.f32.mrb[0].mxu0
      %v2006 = vadd.f32 0.0, %v2005
      %v2007 = vpop.f32.mrb[0].mxu0
      %2008 = vmatprep.mubr.f32.mxu0 0.0
      %2009 = vmatmul.mubr.f32.gmra.mrb[0].mxu0 %v1358
      %v2010 = vpop.f32.mrb[0].mxu0
      %v2011 = vadd.f32 0.0, %v2010
      %v2012 = vpop.f32.mrb[0].mxu0
      %2013 = vmatprep.mubr.f32.mxu0 0.0
      %2014 = vmatmul.mubr.f32.gmra.mrb[0].mxu0 %v1360
      %v2015 = vpop.f32.mrb[0].mxu0
      %v2016 = vadd.f32 0.0, %v2015
      %v2017 = vpop.f32.mrb[0].mxu0
      %2018 = vmatprep.mubr.f32.mxu0 0.0
      %2019 = vmatmul.mubr.f32.gmra.mrb[0].mxu0 %v1362
      %v2020 = vpop.f32.mrb[0].mxu0
      %v2021 = vadd.f32 0.0, %v2020
      %v2022 = vpop.f32.mrb[0].mxu0
      %2023 = vmatprep.mubr.f32.mxu0 0.0
      %2024 = vmatmul.mubr.f32.gmra.mrb[0].mxu0 %v1882
      %v2025 = vpop.f32.mrb[0].mxu0
      %v2026 = vadd.f32 0.0, %v2025
      %v2027 = vpop.f32.mrb[0].mxu0
      %2028 = vmatprep.mubr.f32.mxu0 0.0
      %2029 = vmatmul.mubr.f32.gmra.mrb[0].mxu0 %v1884
      %v2030 = vpop.f32.mrb[0].mxu0
      %v2031 = vadd.f32 0.0, %v2030
      %v2032 = vpop.f32.mrb[0].mxu0
      %2033 = vdwg.mxu0
      %v2034 = vadd.f32 %v1859, %v1956
      %v2035 = vadd.f32 %v1860, %v1961
      %v2036 = vadd.f32 %v1861, %v1966
      %v2037 = vadd.f32 %v1862, %v1971
      %v2038 = vadd.f32 %v1863, %v1976
      %v2039 = vadd.f32 %v1864, %v1981
      %v2040 = vadd.f32 %v1865, %v1986
      %v2041 = vadd.f32 %v1866, %v1991
      %v2042 = vadd.f32 %v1867, %v1996
      %v2043 = vadd.f32 %v1868, %v2001
      %v2044 = vadd.f32 %v1869, %v2006
      %v2045 = vadd.f32 %v1870, %v2011
      %v2046 = vadd.f32 %v1871, %v2016
      %v2047 = vadd.f32 %v1872, %v2021
      %v2048 = vadd.f32 %v1873, %v2026
      %v2049 = vadd.f32 %v1874, %v2031
      %s2050 = scalar_lea.vmem %s4, 24
      %v2051 = vld [vmem:[%s2050] sm:$0xf]
      %v2053 = vsel %vm927, %v856, 0
      %v2055 = vsel %vm927, %v826, 0
      %v2058 = vsel %vm960, %v2051, 0
      %2060 = vmatprep.subr.mxu0 0.0
      %2061 = vmatpush1.msra.mxu0 %v2058
      %2062 = vmatprep.subr.mxu0 0.0
      %2063 = vmatpush1.msra.mxu0 0.0
      %2064 = vmatprep.subr.mxu0 0.0
      %2065 = vmatpush1.msra.mxu0 0.0
      %2066 = vmatprep.subr.mxu0 0.0
      %2067 = vmatpush1.msra.mxu0 0.0
      %2068 = vmatprep.subr.mxu0 0.0
      %2069 = vmatpush1.msra.mxu0 0.0
      %2070 = vmatprep.subr.mxu0 0.0
      %2071 = vmatpush1.msra.mxu0 0.0
      %2072 = vmatprep.subr.mxu0 0.0
      %2073 = vmatpush1.msra.mxu0 0.0
      %2074 = vmatprep.subr.mxu0 0.0
      %2075 = vmatpush1.msra.mxu0 0.0
      %2076 = vmatprep.subr.mxu0 0.0
      %2077 = vmatpush1.msra.mxu0 0.0
      %2078 = vmatprep.subr.mxu0 0.0
      %2079 = vmatpush1.msra.mxu0 0.0
      %2080 = vmatprep.subr.mxu0 0.0
      %2081 = vmatpush1.msra.mxu0 0.0
      %2082 = vmatprep.subr.mxu0 0.0
      %2083 = vmatpush1.msra.mxu0 0.0
      %2084 = vmatprep.subr.mxu0 0.0
      %2085 = vmatpush1.msra.mxu0 0.0
      %2086 = vmatprep.subr.mxu0 0.0
      %2087 = vmatpush1.msra.mxu0 0.0
      %2088 = vmatprep.subr.mxu0 0.0
      %2089 = vmatpush1.msra.mxu0 0.0
      %2090 = vmatprep.subr.mxu0 0.0
      %2091 = vmatpush1.msra.mxu0 0.0
      %2092 = vmatprep.subr.mxu0 0.0
      %2093 = vmatpush1.msra.mxu0 0.0
      %2094 = vmatprep.subr.mxu0 0.0
      %2095 = vmatpush1.msra.mxu0 0.0
      %2096 = vmatprep.subr.mxu0 0.0
      %2097 = vmatpush1.msra.mxu0 0.0
      %2098 = vmatprep.subr.mxu0 0.0
      %2099 = vmatpush1.msra.mxu0 0.0
      %2100 = vmatprep.subr.mxu0 0.0
      %2101 = vmatpush1.msra.mxu0 0.0
      %2102 = vmatprep.subr.mxu0 0.0
      %2103 = vmatpush1.msra.mxu0 0.0
      %2104 = vmatprep.subr.mxu0 0.0
      %2105 = vmatpush1.msra.mxu0 0.0
      %2106 = vmatprep.subr.mxu0 0.0
      %2107 = vmatpush1.msra.mxu0 0.0
      %2108 = vmatprep.subr.mxu0 0.0
      %2109 = vmatpush1.msra.mxu0 0.0
      %2110 = vmatprep.subr.mxu0 0.0
      %2111 = vmatpush1.msra.mxu0 0.0
      %2112 = vmatprep.subr.mxu0 0.0
      %2113 = vmatpush1.msra.mxu0 0.0
      %2114 = vmatprep.subr.mxu0 0.0
      %2115 = vmatpush1.msra.mxu0 0.0
      %2116 = vmatprep.subr.mxu0 0.0
      %2117 = vmatpush1.msra.mxu0 0.0
      %2118 = vmatprep.subr.mxu0 0.0
      %2119 = vmatpush1.msra.mxu0 0.0
      %2120 = vmatprep.subr.mxu0 0.0
      %2121 = vmatpush1.msra.mxu0 0.0
      %2122 = vmatprep.subr.mxu0 0.0
      %2123 = vmatpush1.msra.mxu0 0.0
      %2124 = vmatprep.mubr.f32.mxu0 0.0
      %2125 = vmatmul.mubr.f32.gmra.mrb[0].mxu0 %v1117
      %v2126 = vpop.f32.mrb[0].mxu0
      %v2127 = vadd.f32 0.0, %v2126
      %v2128 = vpop.f32.mrb[0].mxu0
      %2129 = vmatprep.mubr.f32.mxu0 0.0
      %2130 = vmatmul.mubr.f32.gmra.mrb[0].mxu0 %v1119
      %v2131 = vpop.f32.mrb[0].mxu0
      %v2132 = vadd.f32 0.0, %v2131
      %v2133 = vpop.f32.mrb[0].mxu0
      %2134 = vmatprep.mubr.f32.mxu0 0.0
      %2135 = vmatmul.mubr.f32.gmra.mrb[0].mxu0 %v1121
      %v2136 = vpop.f32.mrb[0].mxu0
      %v2137 = vadd.f32 0.0, %v2136
      %v2138 = vpop.f32.mrb[0].mxu0
      %2139 = vmatprep.mubr.f32.mxu0 0.0
      %2140 = vmatmul.mubr.f32.gmra.mrb[0].mxu0 %v1123
      %v2141 = vpop.f32.mrb[0].mxu0
      %v2142 = vadd.f32 0.0, %v2141
      %v2143 = vpop.f32.mrb[0].mxu0
      %2144 = vmatprep.mubr.f32.mxu0 0.0
      %2145 = vmatmul.mubr.f32.gmra.mrb[0].mxu0 %v1125
      %v2146 = vpop.f32.mrb[0].mxu0
      %v2147 = vadd.f32 0.0, %v2146
      %v2148 = vpop.f32.mrb[0].mxu0
      %2149 = vmatprep.mubr.f32.mxu0 0.0
      %2150 = vmatmul.mubr.f32.gmra.mrb[0].mxu0 %v1127
      %v2151 = vpop.f32.mrb[0].mxu0
      %v2152 = vadd.f32 0.0, %v2151
      %v2153 = vpop.f32.mrb[0].mxu0
      %2154 = vmatprep.mubr.f32.mxu0 0.0
      %2155 = vmatmul.mubr.f32.gmra.mrb[0].mxu0 %v1129
      %v2156 = vpop.f32.mrb[0].mxu0
      %v2157 = vadd.f32 0.0, %v2156
      %v2158 = vpop.f32.mrb[0].mxu0
      %2159 = vmatprep.mubr.f32.mxu0 0.0
      %2160 = vmatmul.mubr.f32.gmra.mrb[0].mxu0 %v1131
      %v2161 = vpop.f32.mrb[0].mxu0
      %v2162 = vadd.f32 0.0, %v2161
      %v2163 = vpop.f32.mrb[0].mxu0
      %2164 = vmatprep.mubr.f32.mxu0 0.0
      %2165 = vmatmul.mubr.f32.gmra.mrb[0].mxu0 %v1133
      %v2166 = vpop.f32.mrb[0].mxu0
      %v2167 = vadd.f32 0.0, %v2166
      %v2168 = vpop.f32.mrb[0].mxu0
      %2169 = vmatprep.mubr.f32.mxu0 0.0
      %2170 = vmatmul.mubr.f32.gmra.mrb[0].mxu0 %v1135
      %v2171 = vpop.f32.mrb[0].mxu0
      %v2172 = vadd.f32 0.0, %v2171
      %v2173 = vpop.f32.mrb[0].mxu0
      %2174 = vmatprep.mubr.f32.mxu0 0.0
      %2175 = vmatmul.mubr.f32.gmra.mrb[0].mxu0 %v1137
      %v2176 = vpop.f32.mrb[0].mxu0
      %v2177 = vadd.f32 0.0, %v2176
      %v2178 = vpop.f32.mrb[0].mxu0
      %2179 = vmatprep.mubr.f32.mxu0 0.0
      %2180 = vmatmul.mubr.f32.gmra.mrb[0].mxu0 %v1139
      %v2181 = vpop.f32.mrb[0].mxu0
      %v2182 = vadd.f32 0.0, %v2181
      %v2183 = vpop.f32.mrb[0].mxu0
      %2184 = vmatprep.mubr.f32.mxu0 0.0
      %2185 = vmatmul.mubr.f32.gmra.mrb[0].mxu0 %v1531
      %v2186 = vpop.f32.mrb[0].mxu0
      %v2187 = vadd.f32 0.0, %v2186
      %v2188 = vpop.f32.mrb[0].mxu0
      %2189 = vmatprep.mubr.f32.mxu0 0.0
      %2190 = vmatmul.mubr.f32.gmra.mrb[0].mxu0 %v1533
      %v2191 = vpop.f32.mrb[0].mxu0
      %v2192 = vadd.f32 0.0, %v2191
      %v2193 = vpop.f32.mrb[0].mxu0
      %2194 = vmatprep.mubr.f32.mxu0 0.0
      %2195 = vmatmul.mubr.f32.gmra.mrb[0].mxu0 %v2053
      %v2196 = vpop.f32.mrb[0].mxu0
      %v2197 = vadd.f32 0.0, %v2196
      %v2198 = vpop.f32.mrb[0].mxu0
      %2199 = vmatprep.mubr.f32.mxu0 0.0
      %2200 = vmatmul.mubr.f32.gmra.mrb[0].mxu0 %v2055
      %v2201 = vpop.f32.mrb[0].mxu0
      %v2202 = vadd.f32 0.0, %v2201
      %v2203 = vpop.f32.mrb[0].mxu0
      %2204 = vdwg.mxu0
      %v2205 = vadd.f32 %v2034, %v2127
      %v2206 = vadd.f32 %v2035, %v2132
      %v2207 = vadd.f32 %v2036, %v2137
      %v2208 = vadd.f32 %v2037, %v2142
      %v2209 = vadd.f32 %v2038, %v2147
      %v2210 = vadd.f32 %v2039, %v2152
      %v2211 = vadd.f32 %v2040, %v2157
      %v2212 = vadd.f32 %v2041, %v2162
      %v2213 = vadd.f32 %v2042, %v2167
      %v2214 = vadd.f32 %v2043, %v2172
      %v2215 = vadd.f32 %v2044, %v2177
      %v2216 = vadd.f32 %v2045, %v2182
      %v2217 = vadd.f32 %v2046, %v2187
      %v2218 = vadd.f32 %v2047, %v2192
      %v2219 = vadd.f32 %v2048, %v2197
      %v2220 = vadd.f32 %v2049, %v2202
      %v2222 = vrot.slane %v856, 1
      %v2223 = vrot.slane %v826, 1
      %v2224 = vsel %vm884, %v2222, %v2223
      %v2225 = vrot.slane %v866, 1
      %v2226 = vsel %vm884, %v2223, %v2225
      %s2227 = scalar_lea.vmem %s4, 28
      %v2228 = vld [vmem:[%s2227] sm:$0xf]
      %v2229 = vsel %vm927, %v2224, 0
      %v2231 = vsel %vm927, %v2226, 0
      %v2234 = vsel %vm960, %v2228, 0
      %2236 = vmatprep.subr.mxu0 0.0
      %2237 = vmatpush1.msra.mxu0 %v2234
      %2238 = vmatprep.subr.mxu0 0.0
      %2239 = vmatpush1.msra.mxu0 0.0
      %2240 = vmatprep.subr.mxu0 0.0
      %2241 = vmatpush1.msra.mxu0 0.0
      %2242 = vmatprep.subr.mxu0 0.0
      %2243 = vmatpush1.msra.mxu0 0.0
      %2244 = vmatprep.subr.mxu0 0.0
      %2245 = vmatpush1.msra.mxu0 0.0
      %2246 = vmatprep.subr.mxu0 0.0
      %2247 = vmatpush1.msra.mxu0 0.0
      %2248 = vmatprep.subr.mxu0 0.0
      %2249 = vmatpush1.msra.mxu0 0.0
      %2250 = vmatprep.subr.mxu0 0.0
      %2251 = vmatpush1.msra.mxu0 0.0
      %2252 = vmatprep.subr.mxu0 0.0
      %2253 = vmatpush1.msra.mxu0 0.0
      %2254 = vmatprep.subr.mxu0 0.0
      %2255 = vmatpush1.msra.mxu0 0.0
      %2256 = vmatprep.subr.mxu0 0.0
      %2257 = vmatpush1.msra.mxu0 0.0
      %2258 = vmatprep.subr.mxu0 0.0
      %2259 = vmatpush1.msra.mxu0 0.0
      %2260 = vmatprep.subr.mxu0 0.0
      %2261 = vmatpush1.msra.mxu0 0.0
      %2262 = vmatprep.subr.mxu0 0.0
      %2263 = vmatpush1.msra.mxu0 0.0
      %2264 = vmatprep.subr.mxu0 0.0
      %2265 = vmatpush1.msra.mxu0 0.0
      %2266 = vmatprep.subr.mxu0 0.0
      %2267 = vmatpush1.msra.mxu0 0.0
      %2268 = vmatprep.subr.mxu0 0.0
      %2269 = vmatpush1.msra.mxu0 0.0
      %2270 = vmatprep.subr.mxu0 0.0
      %2271 = vmatpush1.msra.mxu0 0.0
      %2272 = vmatprep.subr.mxu0 0.0
      %2273 = vmatpush1.msra.mxu0 0.0
      %2274 = vmatprep.subr.mxu0 0.0
      %2275 = vmatpush1.msra.mxu0 0.0
      %2276 = vmatprep.subr.mxu0 0.0
      %2277 = vmatpush1.msra.mxu0 0.0
      %2278 = vmatprep.subr.mxu0 0.0
      %2279 = vmatpush1.msra.mxu0 0.0
      %2280 = vmatprep.subr.mxu0 0.0
      %2281 = vmatpush1.msra.mxu0 0.0
      %2282 = vmatprep.subr.mxu0 0.0
      %2283 = vmatpush1.msra.mxu0 0.0
      %2284 = vmatprep.subr.mxu0 0.0
      %2285 = vmatpush1.msra.mxu0 0.0
      %2286 = vmatprep.subr.mxu0 0.0
      %2287 = vmatpush1.msra.mxu0 0.0
      %2288 = vmatprep.subr.mxu0 0.0
      %2289 = vmatpush1.msra.mxu0 0.0
      %2290 = vmatprep.subr.mxu0 0.0
      %2291 = vmatpush1.msra.mxu0 0.0
      %2292 = vmatprep.subr.mxu0 0.0
      %2293 = vmatpush1.msra.mxu0 0.0
      %2294 = vmatprep.subr.mxu0 0.0
      %2295 = vmatpush1.msra.mxu0 0.0
      %2296 = vmatprep.subr.mxu0 0.0
      %2297 = vmatpush1.msra.mxu0 0.0
      %2298 = vmatprep.subr.mxu0 0.0
      %2299 = vmatpush1.msra.mxu0 0.0
      %2300 = vmatprep.mubr.f32.mxu0 0.0
      %2301 = vmatmul.mubr.f32.gmra.mrb[0].mxu0 %v936
      %v2302 = vpop.f32.mrb[0].mxu0
      %v2303 = vadd.f32 0.0, %v2302
      %v2304 = vpop.f32.mrb[0].mxu0
      %2305 = vmatprep.mubr.f32.mxu0 0.0
      %2306 = vmatmul.mubr.f32.gmra.mrb[0].mxu0 %v938
      %v2307 = vpop.f32.mrb[0].mxu0
      %v2308 = vadd.f32 0.0, %v2307
      %v2309 = vpop.f32.mrb[0].mxu0
      %2310 = vmatprep.mubr.f32.mxu0 0.0
      %2311 = vmatmul.mubr.f32.gmra.mrb[0].mxu0 %v940
      %v2312 = vpop.f32.mrb[0].mxu0
      %v2313 = vadd.f32 0.0, %v2312
      %v2314 = vpop.f32.mrb[0].mxu0
      %2315 = vmatprep.mubr.f32.mxu0 0.0
      %2316 = vmatmul.mubr.f32.gmra.mrb[0].mxu0 %v942
      %v2317 = vpop.f32.mrb[0].mxu0
      %v2318 = vadd.f32 0.0, %v2317
      %v2319 = vpop.f32.mrb[0].mxu0
      %2320 = vmatprep.mubr.f32.mxu0 0.0
      %2321 = vmatmul.mubr.f32.gmra.mrb[0].mxu0 %v944
      %v2322 = vpop.f32.mrb[0].mxu0
      %v2323 = vadd.f32 0.0, %v2322
      %v2324 = vpop.f32.mrb[0].mxu0
      %2325 = vmatprep.mubr.f32.mxu0 0.0
      %2326 = vmatmul.mubr.f32.gmra.mrb[0].mxu0 %v946
      %v2327 = vpop.f32.mrb[0].mxu0
      %v2328 = vadd.f32 0.0, %v2327
      %v2329 = vpop.f32.mrb[0].mxu0
      %2330 = vmatprep.mubr.f32.mxu0 0.0
      %2331 = vmatmul.mubr.f32.gmra.mrb[0].mxu0 %v948
      %v2332 = vpop.f32.mrb[0].mxu0
      %v2333 = vadd.f32 0.0, %v2332
      %v2334 = vpop.f32.mrb[0].mxu0
      %2335 = vmatprep.mubr.f32.mxu0 0.0
      %2336 = vmatmul.mubr.f32.gmra.mrb[0].mxu0 %v950
      %v2337 = vpop.f32.mrb[0].mxu0
      %v2338 = vadd.f32 0.0, %v2337
      %v2339 = vpop.f32.mrb[0].mxu0
      %2340 = vmatprep.mubr.f32.mxu0 0.0
      %2341 = vmatmul.mubr.f32.gmra.mrb[0].mxu0 %v952
      %v2342 = vpop.f32.mrb[0].mxu0
      %v2343 = vadd.f32 0.0, %v2342
      %v2344 = vpop.f32.mrb[0].mxu0
      %2345 = vmatprep.mubr.f32.mxu0 0.0
      %2346 = vmatmul.mubr.f32.gmra.mrb[0].mxu0 %v954
      %v2347 = vpop.f32.mrb[0].mxu0
      %v2348 = vadd.f32 0.0, %v2347
      %v2349 = vpop.f32.mrb[0].mxu0
      %2350 = vmatprep.mubr.f32.mxu0 0.0
      %2351 = vmatmul.mubr.f32.gmra.mrb[0].mxu0 %v956
      %v2352 = vpop.f32.mrb[0].mxu0
      %v2353 = vadd.f32 0.0, %v2352
      %v2354 = vpop.f32.mrb[0].mxu0
      %2355 = vmatprep.mubr.f32.mxu0 0.0
      %2356 = vmatmul.mubr.f32.gmra.mrb[0].mxu0 %v958
      %v2357 = vpop.f32.mrb[0].mxu0
      %v2358 = vadd.f32 0.0, %v2357
      %v2359 = vpop.f32.mrb[0].mxu0
      %2360 = vmatprep.mubr.f32.mxu0 0.0
      %2361 = vmatmul.mubr.f32.gmra.mrb[0].mxu0 %v1707
      %v2362 = vpop.f32.mrb[0].mxu0
      %v2363 = vadd.f32 0.0, %v2362
      %v2364 = vpop.f32.mrb[0].mxu0
      %2365 = vmatprep.mubr.f32.mxu0 0.0
      %2366 = vmatmul.mubr.f32.gmra.mrb[0].mxu0 %v1709
      %v2367 = vpop.f32.mrb[0].mxu0
      %v2368 = vadd.f32 0.0, %v2367
      %v2369 = vpop.f32.mrb[0].mxu0
      %2370 = vmatprep.mubr.f32.mxu0 0.0
      %2371 = vmatmul.mubr.f32.gmra.mrb[0].mxu0 %v2229
      %v2372 = vpop.f32.mrb[0].mxu0
      %v2373 = vadd.f32 0.0, %v2372
      %v2374 = vpop.f32.mrb[0].mxu0
      %2375 = vmatprep.mubr.f32.mxu0 0.0
      %2376 = vmatmul.mubr.f32.gmra.mrb[0].mxu0 %v2231
      %v2377 = vpop.f32.mrb[0].mxu0
      %v2378 = vadd.f32 0.0, %v2377
      %v2379 = vpop.f32.mrb[0].mxu0
      %2380 = vdwg.mxu0
      %v2381 = vadd.f32 %v2205, %v2303
      %v2382 = vadd.f32 %v2206, %v2308
      %v2383 = vadd.f32 %v2207, %v2313
      %v2384 = vadd.f32 %v2208, %v2318
      %v2385 = vadd.f32 %v2209, %v2323
      %v2386 = vadd.f32 %v2210, %v2328
      %v2387 = vadd.f32 %v2211, %v2333
      %v2388 = vadd.f32 %v2212, %v2338
      %v2389 = vadd.f32 %v2213, %v2343
      %v2390 = vadd.f32 %v2214, %v2348
      %v2391 = vadd.f32 %v2215, %v2353
      %v2392 = vadd.f32 %v2216, %v2358
      %v2393 = vadd.f32 %v2217, %v2363
      %v2394 = vadd.f32 %v2218, %v2368
      %v2395 = vadd.f32 %v2219, %v2373
      %v2396 = vadd.f32 %v2220, %v2378
      %v2397 = vrot.slane %v856, 2
      %v2398 = vrot.slane %v826, 2
      %v2399 = vsel %vm1289, %v2397, %v2398
      %v2400 = vrot.slane %v866, 2
      %v2401 = vsel %vm1289, %v2398, %v2400
      %s2402 = scalar_lea.vmem %s4, 32
      %v2403 = vld [vmem:[%s2402] sm:$0xf]
      %v2404 = vsel %vm927, %v2399, 0
      %v2406 = vsel %vm927, %v2401, 0
      %v2409 = vsel %vm960, %v2403, 0
      %2411 = vmatprep.subr.mxu0 0.0
      %2412 = vmatpush1.msra.mxu0 %v2409
      %2413 = vmatprep.subr.mxu0 0.0
      %2414 = vmatpush1.msra.mxu0 0.0
      %2415 = vmatprep.subr.mxu0 0.0
      %2416 = vmatpush1.msra.mxu0 0.0
      %2417 = vmatprep.subr.mxu0 0.0
      %2418 = vmatpush1.msra.mxu0 0.0
      %2419 = vmatprep.subr.mxu0 0.0
      %2420 = vmatpush1.msra.mxu0 0.0
      %2421 = vmatprep.subr.mxu0 0.0
      %2422 = vmatpush1.msra.mxu0 0.0
      %2423 = vmatprep.subr.mxu0 0.0
      %2424 = vmatpush1.msra.mxu0 0.0
      %2425 = vmatprep.subr.mxu0 0.0
      %2426 = vmatpush1.msra.mxu0 0.0
      %2427 = vmatprep.subr.mxu0 0.0
      %2428 = vmatpush1.msra.mxu0 0.0
      %2429 = vmatprep.subr.mxu0 0.0
      %2430 = vmatpush1.msra.mxu0 0.0
      %2431 = vmatprep.subr.mxu0 0.0
      %2432 = vmatpush1.msra.mxu0 0.0
      %2433 = vmatprep.subr.mxu0 0.0
      %2434 = vmatpush1.msra.mxu0 0.0
      %2435 = vmatprep.subr.mxu0 0.0
      %2436 = vmatpush1.msra.mxu0 0.0
      %2437 = vmatprep.subr.mxu0 0.0
      %2438 = vmatpush1.msra.mxu0 0.0
      %2439 = vmatprep.subr.mxu0 0.0
      %2440 = vmatpush1.msra.mxu0 0.0
      %2441 = vmatprep.subr.mxu0 0.0
      %2442 = vmatpush1.msra.mxu0 0.0
      %2443 = vmatprep.subr.mxu0 0.0
      %2444 = vmatpush1.msra.mxu0 0.0
      %2445 = vmatprep.subr.mxu0 0.0
      %2446 = vmatpush1.msra.mxu0 0.0
      %2447 = vmatprep.subr.mxu0 0.0
      %2448 = vmatpush1.msra.mxu0 0.0
      %2449 = vmatprep.subr.mxu0 0.0
      %2450 = vmatpush1.msra.mxu0 0.0
      %2451 = vmatprep.subr.mxu0 0.0
      %2452 = vmatpush1.msra.mxu0 0.0
      %2453 = vmatprep.subr.mxu0 0.0
      %2454 = vmatpush1.msra.mxu0 0.0
      %2455 = vmatprep.subr.mxu0 0.0
      %2456 = vmatpush1.msra.mxu0 0.0
      %2457 = vmatprep.subr.mxu0 0.0
      %2458 = vmatpush1.msra.mxu0 0.0
      %2459 = vmatprep.subr.mxu0 0.0
      %2460 = vmatpush1.msra.mxu0 0.0
      %2461 = vmatprep.subr.mxu0 0.0
      %2462 = vmatpush1.msra.mxu0 0.0
      %2463 = vmatprep.subr.mxu0 0.0
      %2464 = vmatpush1.msra.mxu0 0.0
      %2465 = vmatprep.subr.mxu0 0.0
      %2466 = vmatpush1.msra.mxu0 0.0
      %2467 = vmatprep.subr.mxu0 0.0
      %2468 = vmatpush1.msra.mxu0 0.0
      %2469 = vmatprep.subr.mxu0 0.0
      %2470 = vmatpush1.msra.mxu0 0.0
      %2471 = vmatprep.subr.mxu0 0.0
      %2472 = vmatpush1.msra.mxu0 0.0
      %2473 = vmatprep.subr.mxu0 0.0
      %2474 = vmatpush1.msra.mxu0 0.0
      %2475 = vmatprep.mubr.f32.mxu0 0.0
      %2476 = vmatmul.mubr.f32.gmra.mrb[0].mxu0 %v1340
      %v2477 = vpop.f32.mrb[0].mxu0
      %v2478 = vadd.f32 0.0, %v2477
      %v2479 = vpop.f32.mrb[0].mxu0
      %2480 = vmatprep.mubr.f32.mxu0 0.0
      %2481 = vmatmul.mubr.f32.gmra.mrb[0].mxu0 %v1342
      %v2482 = vpop.f32.mrb[0].mxu0
      %v2483 = vadd.f32 0.0, %v2482
      %v2484 = vpop.f32.mrb[0].mxu0
      %2485 = vmatprep.mubr.f32.mxu0 0.0
      %2486 = vmatmul.mubr.f32.gmra.mrb[0].mxu0 %v1344
      %v2487 = vpop.f32.mrb[0].mxu0
      %v2488 = vadd.f32 0.0, %v2487
      %v2489 = vpop.f32.mrb[0].mxu0
      %2490 = vmatprep.mubr.f32.mxu0 0.0
      %2491 = vmatmul.mubr.f32.gmra.mrb[0].mxu0 %v1346
      %v2492 = vpop.f32.mrb[0].mxu0
      %v2493 = vadd.f32 0.0, %v2492
      %v2494 = vpop.f32.mrb[0].mxu0
      %2495 = vmatprep.mubr.f32.mxu0 0.0
      %2496 = vmatmul.mubr.f32.gmra.mrb[0].mxu0 %v1348
      %v2497 = vpop.f32.mrb[0].mxu0
      %v2498 = vadd.f32 0.0, %v2497
      %v2499 = vpop.f32.mrb[0].mxu0
      %2500 = vmatprep.mubr.f32.mxu0 0.0
      %2501 = vmatmul.mubr.f32.gmra.mrb[0].mxu0 %v1350
      %v2502 = vpop.f32.mrb[0].mxu0
      %v2503 = vadd.f32 0.0, %v2502
      %v2504 = vpop.f32.mrb[0].mxu0
      %2505 = vmatprep.mubr.f32.mxu0 0.0
      %2506 = vmatmul.mubr.f32.gmra.mrb[0].mxu0 %v1352
      %v2507 = vpop.f32.mrb[0].mxu0
      %v2508 = vadd.f32 0.0, %v2507
      %v2509 = vpop.f32.mrb[0].mxu0
      %2510 = vmatprep.mubr.f32.mxu0 0.0
      %2511 = vmatmul.mubr.f32.gmra.mrb[0].mxu0 %v1354
      %v2512 = vpop.f32.mrb[0].mxu0
      %v2513 = vadd.f32 0.0, %v2512
      %v2514 = vpop.f32.mrb[0].mxu0
      %2515 = vmatprep.mubr.f32.mxu0 0.0
      %2516 = vmatmul.mubr.f32.gmra.mrb[0].mxu0 %v1356
      %v2517 = vpop.f32.mrb[0].mxu0
      %v2518 = vadd.f32 0.0, %v2517
      %v2519 = vpop.f32.mrb[0].mxu0
      %2520 = vmatprep.mubr.f32.mxu0 0.0
      %2521 = vmatmul.mubr.f32.gmra.mrb[0].mxu0 %v1358
      %v2522 = vpop.f32.mrb[0].mxu0
      %v2523 = vadd.f32 0.0, %v2522
      %v2524 = vpop.f32.mrb[0].mxu0
      %2525 = vmatprep.mubr.f32.mxu0 0.0
      %2526 = vmatmul.mubr.f32.gmra.mrb[0].mxu0 %v1360
      %v2527 = vpop.f32.mrb[0].mxu0
      %v2528 = vadd.f32 0.0, %v2527
      %v2529 = vpop.f32.mrb[0].mxu0
      %2530 = vmatprep.mubr.f32.mxu0 0.0
      %2531 = vmatmul.mubr.f32.gmra.mrb[0].mxu0 %v1362
      %v2532 = vpop.f32.mrb[0].mxu0
      %v2533 = vadd.f32 0.0, %v2532
      %v2534 = vpop.f32.mrb[0].mxu0
      %2535 = vmatprep.mubr.f32.mxu0 0.0
      %2536 = vmatmul.mubr.f32.gmra.mrb[0].mxu0 %v1882
      %v2537 = vpop.f32.mrb[0].mxu0
      %v2538 = vadd.f32 0.0, %v2537
      %v2539 = vpop.f32.mrb[0].mxu0
      %2540 = vmatprep.mubr.f32.mxu0 0.0
      %2541 = vmatmul.mubr.f32.gmra.mrb[0].mxu0 %v1884
      %v2542 = vpop.f32.mrb[0].mxu0
      %v2543 = vadd.f32 0.0, %v2542
      %v2544 = vpop.f32.mrb[0].mxu0
      %2545 = vmatprep.mubr.f32.mxu0 0.0
      %2546 = vmatmul.mubr.f32.gmra.mrb[0].mxu0 %v2404
      %v2547 = vpop.f32.mrb[0].mxu0
      %v2548 = vadd.f32 0.0, %v2547
      %v2549 = vpop.f32.mrb[0].mxu0
      %2550 = vmatprep.mubr.f32.mxu0 0.0
      %2551 = vmatmul.mubr.f32.gmra.mrb[0].mxu0 %v2406
      %v2552 = vpop.f32.mrb[0].mxu0
      %v2553 = vadd.f32 0.0, %v2552
      %v2554 = vpop.f32.mrb[0].mxu0
      %2555 = vdwg.mxu0
      %v2556 = vadd.f32 %v2381, %v2478
      %v2557 = vadd.f32 %v2382, %v2483
      %v2558 = vadd.f32 %v2383, %v2488
      %v2559 = vadd.f32 %v2384, %v2493
      %v2560 = vadd.f32 %v2385, %v2498
      %v2561 = vadd.f32 %v2386, %v2503
      %v2562 = vadd.f32 %v2387, %v2508
      %v2563 = vadd.f32 %v2388, %v2513
      %v2564 = vadd.f32 %v2389, %v2518
      %v2565 = vadd.f32 %v2390, %v2523
      %v2566 = vadd.f32 %v2391, %v2528
      %v2567 = vadd.f32 %v2392, %v2533
      %v2568 = vadd.f32 %v2393, %v2538
      %v2569 = vadd.f32 %v2394, %v2543
      %v2570 = vadd.f32 %v2395, %v2548
      %v2571 = vadd.f32 %v2396, %v2553
      %v2572 = vld [vmem:[%s5] sm:$0x1]
      %v2574 = vlaneseq
      %v2575 = vshrl.u32 %v2574, 7
      %v2576 = vsub.s32 0, %v2575
      %v2577 = vrot.slane %v2572, %v2576
      %v2579 = vadd.f32 %v2556, %v2577
      %v2580 = vadd.f32 %v2557, %v2577
      %v2581 = vadd.f32 %v2558, %v2577
      %v2582 = vadd.f32 %v2559, %v2577
      %v2583 = vadd.f32 %v2560, %v2577
      %v2584 = vadd.f32 %v2561, %v2577
      %v2585 = vadd.f32 %v2562, %v2577
      %v2586 = vadd.f32 %v2563, %v2577
      %v2587 = vadd.f32 %v2564, %v2577
      %v2588 = vadd.f32 %v2565, %v2577
      %v2589 = vadd.f32 %v2566, %v2577
      %v2590 = vadd.f32 %v2567, %v2577
      %v2591 = vadd.f32 %v2568, %v2577
      %v2592 = vadd.f32 %v2569, %v2577
      %v2593 = vadd.f32 %v2570, %v2577
      %v2594 = vadd.f32 %v2571, %v2577
      %vm2595 = vcmask 64512
      %2596 = vst.msk [vmem:[%s475] sm:$0xff] %vm2595, %v2579
      %2597 = vst.msk [vmem:[%s475 + $0x8] sm:$0xff] %vm2595, %v2580
      %2598 = vst.msk [vmem:[%s475 + $0x10] sm:$0xff] %vm2595, %v2581
      %2599 = vst.msk [vmem:[%s475 + $0x18] sm:$0xff] %vm2595, %v2582
      %2600 = vst.msk [vmem:[%s475 + $0x20] sm:$0xff] %vm2595, %v2583
      %2601 = vst.msk [vmem:[%s475 + $0x28] sm:$0xff] %vm2595, %v2584
      %2602 = vst.msk [vmem:[%s475 + $0x30] sm:$0xff] %vm2595, %v2585
      %2603 = vst.msk [vmem:[%s475 + $0x38] sm:$0xff] %vm2595, %v2586
      %2604 = vst.msk [vmem:[%s475 + $0x40] sm:$0xff] %vm2595, %v2587
      %2605 = vst.msk [vmem:[%s475 + $0x48] sm:$0xff] %vm2595, %v2588
      %2606 = vst.msk [vmem:[%s475 + $0x50] sm:$0xff] %vm2595, %v2589
      %2607 = vst.msk [vmem:[%s475 + $0x58] sm:$0xff] %vm2595, %v2590
      %2608 = vst.msk [vmem:[%s475 + $0x60] sm:$0xff] %vm2595, %v2591
      %2609 = vst.msk [vmem:[%s475 + $0x68] sm:$0xff] %vm2595, %v2592
      %2610 = vst.msk [vmem:[%s475 + $0x70] sm:$0xff] %vm2595, %v2593
      %2611 = vst.msk [vmem:[%s475 + $0x78] sm:$0xff] %vm2595, %v2594
      %v2612 = vsel %vm2595, %v2579, 0.0
      %v2613 = vsel %vm2595, %v2580, 0.0
      %v2614 = vadd.f32 %v2612, %v2613
      %v2615 = vsel %vm2595, %v2581, 0.0
      %v2616 = vadd.f32 %v2614, %v2615
      %v2617 = vsel %vm2595, %v2582, 0.0
      %v2618 = vadd.f32 %v2616, %v2617
      %v2619 = vsel %vm2595, %v2583, 0.0
      %v2620 = vadd.f32 %v2618, %v2619
      %v2621 = vsel %vm2595, %v2584, 0.0
      %v2622 = vadd.f32 %v2620, %v2621
      %v2623 = vsel %vm2595, %v2585, 0.0
      %v2624 = vadd.f32 %v2622, %v2623
      %v2625 = vsel %vm2595, %v2586, 0.0
      %v2626 = vadd.f32 %v2624, %v2625
      %v2627 = vsel %vm2595, %v2587, 0.0
      %v2628 = vadd.f32 %v2626, %v2627
      %v2629 = vsel %vm2595, %v2588, 0.0
      %v2630 = vadd.f32 %v2628, %v2629
      %v2631 = vsel %vm2595, %v2589, 0.0
      %v2632 = vadd.f32 %v2630, %v2631
      %v2633 = vsel %vm2595, %v2590, 0.0
      %v2634 = vadd.f32 %v2632, %v2633
      %v2635 = vsel %vm2595, %v2591, 0.0
      %v2636 = vadd.f32 %v2634, %v2635
      %v2637 = vsel %vm2595, %v2592, 0.0
      %v2638 = vadd.f32 %v2636, %v2637
      %v2639 = vsel %vm2595, %v2593, 0.0
      %v2640 = vadd.f32 %v2638, %v2639
      %v2641 = vsel %vm2595, %v2594, 0.0
      %v2642 = vadd.f32 %v2640, %v2641
      %v2643 = vrot.slane %v2642, 4
      %v2644 = vadd.f32 %v2642, %v2643
      %v2645 = vrot.slane %v2644, 2
      %v2646 = vadd.f32 %v2644, %v2645
      %v2647 = vrot.slane %v2646, 1
      %v2648 = vadd.f32 %v2646, %v2647
      %v2649 = vmul.f32 %v2579, %v2579
      %v2650 = vmul.f32 %v2580, %v2580
      %v2651 = vmul.f32 %v2581, %v2581
      %v2652 = vmul.f32 %v2582, %v2582
      %v2653 = vmul.f32 %v2583, %v2583
      %v2654 = vmul.f32 %v2584, %v2584
      %v2655 = vmul.f32 %v2585, %v2585
      %v2656 = vmul.f32 %v2586, %v2586
      %v2657 = vmul.f32 %v2587, %v2587
      %v2658 = vmul.f32 %v2588, %v2588
      %v2659 = vmul.f32 %v2589, %v2589
      %v2660 = vmul.f32 %v2590, %v2590
      %v2661 = vmul.f32 %v2591, %v2591
      %v2662 = vmul.f32 %v2592, %v2592
      %v2663 = vmul.f32 %v2593, %v2593
      %v2664 = vmul.f32 %v2594, %v2594
      %v2665 = vsel %vm2595, %v2649, 0.0
      %v2666 = vsel %vm2595, %v2650, 0.0
      %v2667 = vadd.f32 %v2665, %v2666
      %v2668 = vsel %vm2595, %v2651, 0.0
      %v2669 = vadd.f32 %v2667, %v2668
      %v2670 = vsel %vm2595, %v2652, 0.0
      %v2671 = vadd.f32 %v2669, %v2670
      %v2672 = vsel %vm2595, %v2653, 0.0
      %v2673 = vadd.f32 %v2671, %v2672
      %v2674 = vsel %vm2595, %v2654, 0.0
      %v2675 = vadd.f32 %v2673, %v2674
      %v2676 = vsel %vm2595, %v2655, 0.0
      %v2677 = vadd.f32 %v2675, %v2676
      %v2678 = vsel %vm2595, %v2656, 0.0
      %v2679 = vadd.f32 %v2677, %v2678
      %v2680 = vsel %vm2595, %v2657, 0.0
      %v2681 = vadd.f32 %v2679, %v2680
      %v2682 = vsel %vm2595, %v2658, 0.0
      %v2683 = vadd.f32 %v2681, %v2682
      %v2684 = vsel %vm2595, %v2659, 0.0
      %v2685 = vadd.f32 %v2683, %v2684
      %v2686 = vsel %vm2595, %v2660, 0.0
      %v2687 = vadd.f32 %v2685, %v2686
      %v2688 = vsel %vm2595, %v2661, 0.0
      %v2689 = vadd.f32 %v2687, %v2688
      %v2690 = vsel %vm2595, %v2662, 0.0
      %v2691 = vadd.f32 %v2689, %v2690
      %v2692 = vsel %vm2595, %v2663, 0.0
      %v2693 = vadd.f32 %v2691, %v2692
      %v2694 = vsel %vm2595, %v2664, 0.0
      %v2695 = vadd.f32 %v2693, %v2694
      %v2696 = vrot.slane %v2695, 4
      %v2697 = vadd.f32 %v2695, %v2696
      %v2698 = vrot.slane %v2697, 2
      %v2699 = vadd.f32 %v2697, %v2698
      %v2700 = vrot.slane %v2699, 1
      %v2701 = vadd.f32 %v2699, %v2700
      %v2702 = vsel %vm796, %v2648, %v2701
      %vm2703 = vcmask 58368
      %2704 = vst.msk [vmem:[%s484] sm:$0x3] %vm2703, %v2702
      %s2705 = smul.u32 8, %s24
      %p2706 = scmp.lt.s32.totalorder %s23, 1
      %s2707 = scalar_select %p2706, %s23, 1
      %p2708 = scmp.lt.s32.totalorder %s2705, 15
      %s2709 = scalar_select %p2708, %s2705, 15
      %s2710 = smul.addr %s2709, 2
      %s2711 = smul.addr %s2707, 32
      %s2712 = sadd.s32 %s2710, %s2711
      %s2713 = smul.addr %s2712, 8
      %s2714 = scalar_lea.vmem %s6, %s2713
      %p2715 = scmp.lt.s32.totalorder %s23, 1
      %s2716 = scalar_select %p2715, %s23, 1
      %p2717 = scmp.lt.s32.totalorder %s24, 1
      %s2718 = scalar_select %p2717, %s24, 1
      %s2719 = smul.addr %s2716, 2
      %s2720 = sadd.s32 %s2718, %s2719
      %s2721 = smul.addr %s2720, 2
      %s2722 = scalar_lea.vmem %s7, %s2721
      // Predicated region
      $region45: #{resnet_encoder_block_pallas.2} parent=43 // pred_check
        %p2723 = pneg %p219
      $region46: #{resnet_encoder_block_pallas.2} parent=43 // pred_check_branch
        %2725 = sbr.rel (%p2723) target = $region48
      $region47: #{resnet_encoder_block_pallas.2} parent=43 // pred_region
        %s2726 = smul.u32 8, %s24
      $region48: #{resnet_encoder_block_pallas.2} parent=43 // pred_fallthru
        _
      // Predicated region
      $region49: #{resnet_encoder_block_pallas.2} parent=43 // pred_check
        %p2727 = pneg %p247
      $region50: #{resnet_encoder_block_pallas.2} parent=43 // pred_check_branch
        %2729 = sbr.rel (%p2727) target = $region52
      $region51: #{resnet_encoder_block_pallas.2} parent=43 // pred_region
        _
      $region52: #{resnet_encoder_block_pallas.2} parent=43 // pred_fallthru
        _
    $region44: #{resnet_encoder_block_pallas.2} parent=5 // pred_fallthru
      _
    %p2730 = scmp.le.s32.totalorder 2, %s14
    // Predicated region
    $region53: #{resnet_encoder_block_pallas.2} parent=5 // pred_check
      %p2731 = pneg %p2730
    $region54: #{resnet_encoder_block_pallas.2} parent=5 // pred_check_branch
      %2733 = sbr.rel (%p2731) target = $region56
    $region55: #{resnet_encoder_block_pallas.2} parent=5 // pred_region
      %s2734 = ssub.s32 %s14, 2
      // Predicated region
      $region57: #{resnet_encoder_block_pallas.2} parent=55 // pred_check
        %p2735 = pneg %p225
      $region58: #{resnet_encoder_block_pallas.2} parent=55 // pred_check_branch
        %2737 = sbr.rel (%p2735) target = $region60
      $region59: #{resnet_encoder_block_pallas.2} parent=55 // pred_region
        %s2738 = smul.u32 8, %s26
        %p2739 = scmp.lt.s32.totalorder %s25, 1
        %s2740 = scalar_select %p2739, %s25, 1
        %p2741 = scmp.lt.s32.totalorder %s2738, 15
        %s2742 = scalar_select %p2741, %s2738, 15
        %s2743 = smul.addr %s2742, 2
        %s2744 = smul.addr %s2740, 32
        %s2745 = sadd.s32 %s2743, %s2744
        %s2746 = smul.addr %s2745, 8
        %s2747 = scalar_lea.vmem %s6, %s2746
      $region60: #{resnet_encoder_block_pallas.2} parent=55 // pred_fallthru
        _
      // Predicated region
      $region61: #{resnet_encoder_block_pallas.2} parent=55 // pred_check
        %p2748 = pneg %p253
      $region62: #{resnet_encoder_block_pallas.2} parent=55 // pred_check_branch
        %2750 = sbr.rel (%p2748) target = $region64
      $region63: #{resnet_encoder_block_pallas.2} parent=55 // pred_region
        %p2751 = scmp.lt.s32.totalorder %s25, 1
        %s2752 = scalar_select %p2751, %s25, 1
        %p2753 = scmp.lt.s32.totalorder %s26, 1
        %s2754 = scalar_select %p2753, %s26, 1
        %s2755 = smul.addr %s2752, 2
        %s2756 = sadd.s32 %s2754, %s2755
        %s2757 = smul.addr %s2756, 2
        %s2758 = scalar_lea.vmem %s7, %s2757
      $region64: #{resnet_encoder_block_pallas.2} parent=55 // pred_fallthru
        _
    $region56: #{resnet_encoder_block_pallas.2} parent=5 // pred_fallthru
      _
  $region6: #{resnet_encoder_block_pallas.2} parent=0 // loop_footer
    %s18 = sadd.s32 1, %s14
  $region7: #{resnet_encoder_block_pallas.2} parent=0 // loop_footer_branch
    %13 = sbr.rel target = $region3
  $region8: #{resnet_encoder_block_pallas.2} parent=0 // loop_exit
    _

</llo_original>
